<compile_context>
chip_gen: v7x
topology: tpu7x:2x2x1
jax: 0.10.0
libtpu: 0.0.40
codegen_flags: <defaults>
</compile_context>

<pallas_src>
import functools

import jax
import jax.numpy as jnp
from jax.experimental import pallas as pl
from jax.experimental.pallas import tpu as pltpu

# ----------------------------- config (small) -------------------------------
VOCAB = 100
MAX_POS = 16
HIDDEN = 32
NUM_HEADS = 4
HEAD_DIM = HIDDEN // NUM_HEADS
FFN = 64
NUM_LAYERS = 2
NUM_EXTRA_DIMS = 4
NUM_LABELS = 6          # len(Constants.OUTPUT_LABELS)
LN_EPS = 1e-5

VMEM_SPEC = pl.BlockSpec(memory_space=pltpu.MemorySpace.VMEM)

# --- packed constants slab layout (one [R,128] f32 array, one DMA) ----------
ROW_ELN_G, ROW_ELN_B, ROW_CLS_B = 0, 1, 2
LAYER_ROW0 = 3
LAYER_ROWS = 10
(R_BQ, R_BK, R_BV, R_BO, R_LN1G, R_LN1B, R_B1, R_B2, R_LN2G, R_LN2B) = range(10)


# --------------------------- fused forward kernel ----------------------------
def _fused_forward_kernel(emb_ref, mask_ref, extra_ref, slab_ref,
                          wqkv_ref, wo_ref, w1_ref, w2_ref, wcls_ref,
                          o_ref,
                          *, num_layers, num_heads, head_dim, batch, seq):
    f32 = jnp.float32
    bf16 = jnp.bfloat16
    hidden = num_heads * head_dim
    bs = batch * seq

    def srow(r, w):
        # static row / static prefix width -> lane-offset-0 slice, no relayout
        return slab_ref[r:r + 1, :w]                              # [1, w] f32

    def layernorm(x, g, b):
        mean = jnp.mean(x, axis=-1, keepdims=True)
        var = jnp.mean(jnp.square(x - mean), axis=-1, keepdims=True)
        return (x - mean) * jax.lax.rsqrt(var + LN_EPS) * g + b

    # ---- additive attention bias, rebuilt in-kernel from the [1,BS] key mask.
    # same-batch structure via a tiny one-hot outer product (no int division).
    ti = jax.lax.broadcasted_iota(jnp.int32, (bs, batch), 0)      # token index
    bi = jax.lax.broadcasted_iota(jnp.int32, (bs, batch), 1)      # batch index
    tok_in_batch = ((ti >= bi * seq) & (ti < (bi + 1) * seq)).astype(bf16)
    same_batch = jax.lax.dot_general(                             # [BS,BS] 0/1
        tok_in_batch, tok_in_batch, (((1,), (1,)), ((), ())),
        preferred_element_type=f32)
    # allowed -> 0.0 ; disallowed (other batch or padded key) -> -1e9
    bias = (same_batch * mask_ref[...] - 1.0) * 1e9               # [BS, BS]

    # ---- per-head lane masks (trace-time constants, built once) ----
    lane = jax.lax.broadcasted_iota(jnp.int32, (1, hidden), 1)
    head_masks = [
        ((lane >= hd * head_dim) & (lane < (hd + 1) * head_dim)).astype(f32)
        for hd in range(num_heads)]

    # ---- embedding LayerNorm ----
    h = layernorm(emb_ref[...], srow(ROW_ELN_G, hidden), srow(ROW_ELN_B, hidden))

    for layer in range(num_layers):            # static unroll (toy depth only)
        base = LAYER_ROW0 + layer * LAYER_ROWS
        h_bf = h.astype(bf16)

        # Full-width Q/K/V projections (lane offset 0, no post-matmul slicing).
        # 1/sqrt(head_dim) is folded into the Q weights/bias at init time.
        q = (jnp.dot(h_bf, wqkv_ref[3 * layer + 0], preferred_element_type=f32)
             + srow(base + R_BQ, hidden))
        k = (jnp.dot(h_bf, wqkv_ref[3 * layer + 1], preferred_element_type=f32)
             + srow(base + R_BK, hidden))
        v = (jnp.dot(h_bf, wqkv_ref[3 * layer + 2], preferred_element_type=f32)
             + srow(base + R_BV, hidden))
        k_bf = k.astype(bf16)

        # ---- attention: head-masked full-width operands, no lane slices ----
        ctx = None
        for hd in range(num_heads):
            hm = head_masks[hd]
            qm = (q * hm).astype(bf16)                            # [BS, H]
            s = jax.lax.dot_general(qm, k_bf, (((1,), (1,)), ((), ())),
                                    preferred_element_type=f32)   # [BS, BS]
            s = s + bias
            s = s - jnp.max(s, axis=-1, keepdims=True)
            p = jnp.exp(s)
            p = p * pl.reciprocal(jnp.sum(p, axis=-1, keepdims=True),
                                  approx=True)
            vm = (v * hm).astype(bf16)                            # head lanes only
            c = jnp.dot(p.astype(bf16), vm, preferred_element_type=f32)
            ctx = c if ctx is None else ctx + c                   # [BS, H]

        # single output projection per layer (hoisted out of the head loop)
        attn = (jnp.dot(ctx.astype(bf16), wo_ref[layer],
                        preferred_element_type=f32)
                + srow(base + R_BO, hidden))

        # ---- post-LN residual 1 ----
        h1 = layernorm(attn + h, srow(base + R_LN1G, hidden),
                       srow(base + R_LN1B, hidden))

        # ---- FFN ----
        ffn = (jnp.dot(h1.astype(bf16), w1_ref[layer],
                       preferred_element_type=f32) + srow(base + R_B1, FFN))
        # TODO(synk): torch.nn.GELU defaults to the exact erf form; the tanh
        # approximation is used for guaranteed Mosaic lowering (diff < 1e-3).
        ffn = jax.nn.gelu(ffn)
        ffn = (jnp.dot(ffn.astype(bf16), w2_ref[layer],
                       preferred_element_type=f32) + srow(base + R_B2, hidden))

        # ---- post-LN residual 2 ----
        h = layernorm(ffn + h1, srow(base + R_LN2G, hidden),
                      srow(base + R_LN2B, hidden))

    # ---- classifier: gather CLS rows via one-hot MXU matmul, fused head ----
    rb = jax.lax.broadcasted_iota(jnp.int32, (batch, bs), 0)
    cb = jax.lax.broadcasted_iota(jnp.int32, (batch, bs), 1)
    sel = (cb == rb * seq).astype(bf16)                           # [B, BS]
    cls = jnp.dot(sel, h.astype(bf16), preferred_element_type=f32)  # [B, H]
    cw = wcls_ref[...]                                            # [H+E, labels]
    logits = (jnp.dot(cls.astype(bf16), cw[:hidden], preferred_element_type=f32)
              + jnp.dot(extra_ref[...].astype(bf16), cw[hidden:],
                        preferred_element_type=f32)
              + srow(ROW_CLS_B, NUM_LABELS))                      # [B, labels]
    o_ref[...] = logits.astype(o_ref.dtype)


# ------------------------------ parameter init -------------------------------
def init_params(key):
    f32 = jnp.float32

    def nrm(k, shape, scale=0.02):
        return scale * jax.random.normal(k, shape, dtype=f32)

    ks = jax.random.split(key, 10)
    L, H, E, F = NUM_LAYERS, HIDDEN, NUM_EXTRA_DIMS, FFN
    attn_scale = 1.0 / (HEAD_DIM ** 0.5)

    # TODO(synk): pretrained roberta-base weights are replaced by deterministic
    # synthetic initialization (no checkpoint loading in-script).
    wq = nrm(ks[0], (L, H, H)) * attn_scale    # 1/sqrt(dh) folded into Q proj
    wk = nrm(ks[1], (L, H, H))
    wv = nrm(ks[2], (L, H, H))
    wqkv = jnp.stack([wq, wk, wv], axis=1).reshape(L * 3, H, H)
    wo = nrm(ks[3], (L, H, H))
    w1 = nrm(ks[4], (L, H, F))
    w2 = nrm(ks[5], (L, F, H))
    # classifier Linear(hidden + num_extra_dims, num_labels): rows [0:H] act on
    # the CLS embedding, rows [H:] on extra_data (so no lane concat is needed).
    wcls = jnp.concatenate([nrm(ks[6], (H, NUM_LABELS)),
                            nrm(ks[7], (E, NUM_LABELS))], axis=0)

    # ---- pack every small vector into one 128-lane slab (single DMA) ----
    def row(v):
        v = jnp.asarray(v, f32).reshape(-1)
        return jnp.pad(v, (0, 128 - v.shape[0]))

    zeros_h = jnp.zeros((H,), f32)
    ones_h = jnp.ones((H,), f32)
    rows = [ones_h, zeros_h, jnp.zeros((NUM_LABELS,), f32)]   # eln_g, eln_b, cls_b
    for _ in range(L):
        rows += [zeros_h * attn_scale,      # bq (scale folded; zero at init)
                 zeros_h, zeros_h,          # bk, bv
                 zeros_h,                   # bo
                 ones_h, zeros_h,           # ln1_g, ln1_b
                 jnp.zeros((F,), f32),      # b1
                 zeros_h,                   # b2
                 ones_h, zeros_h]           # ln2_g, ln2_b
    pad_rows = (-len(rows)) % 8
    slab = jnp.stack([row(v) for v in rows]
                     + [jnp.zeros((128,), f32)] * pad_rows)

    # NOTE: self.dropout (p=0.3) and the unused self.linear exist in __init__
    # but are never applied in the module's forward, so they are omitted.
    return {
        "word_emb": nrm(ks[8], (VOCAB, H)),
        "pos_emb": nrm(ks[9], (MAX_POS, H)),
        "slab": slab,
        "wqkv": wqkv.astype(jnp.bfloat16),
        "wo": wo.astype(jnp.bfloat16),
        "w1": w1.astype(jnp.bfloat16),
        "w2": w2.astype(jnp.bfloat16),
        "wcls": wcls.astype(jnp.bfloat16),
    }


# -------------------------------- forward pass --------------------------------
@jax.jit
def pragtag_forward(params, input_ids, extra_data, attention_mask=None):
    B, S = input_ids.shape
    if attention_mask is None:
        attention_mask = jnp.ones((B, S), jnp.float32)

    # Embedding gather + position add: pure glue, stays in XLA.
    tok = jnp.take(params["word_emb"], input_ids, axis=0)         # [B, S, H]
    pos = params["pos_emb"][:S][None, :, :]                       # [1, S, H]
    emb = (tok + pos).reshape(B * S, HIDDEN).astype(jnp.float32)

    # Only the flattened [1, BS] key mask is shipped; the [BS,BS] additive bias
    # (same-batch AND key-not-padded) is rebuilt inside the kernel.
    key_mask = attention_mask.astype(jnp.float32).reshape(1, B * S)

    kernel = functools.partial(
        _fused_forward_kernel, num_layers=NUM_LAYERS, num_heads=NUM_HEADS,
        head_dim=HEAD_DIM, batch=B, seq=S)

    return pl.pallas_call(
        kernel,
        out_shape=jax.ShapeDtypeStruct((B, NUM_LABELS), jnp.float32),
        in_specs=[VMEM_SPEC] * 9,
        out_specs=VMEM_SPEC,
    )(emb, key_mask, extra_data.astype(jnp.float32), params["slab"],
      params["wqkv"], params["wo"], params["w1"], params["w2"], params["wcls"])


# ------------------------------------ main ------------------------------------
if __name__ == "__main__":
    key = jax.random.PRNGKey(0)
    pkey, ikey, ekey = jax.random.split(key, 3)

    B, S = 2, 8
    params = init_params(pkey)
    input_ids = jax.random.randint(ikey, (B, S), 0, VOCAB, dtype=jnp.int32)
    extra_data = jax.random.normal(ekey, (B, NUM_EXTRA_DIMS), dtype=jnp.float32)
    attention_mask = jnp.array(
        [[1, 1, 1, 1, 1, 1, 1, 1],
         [1, 1, 1, 1, 1, 1, 0, 0]], dtype=jnp.float32)

    logits = pragtag_forward(params, input_ids, extra_data, attention_mask)
    jax.block_until_ready(logits)
    assert logits.shape == (B, NUM_LABELS)
    assert bool(jnp.all(jnp.isfinite(logits)))
    print("KERNEL_OK")
</pallas_src>

<mosaic_0001>
module attributes {stable_mosaic.version = 11 : i64} {
  func.func @_fused_forward_kernel(%arg0: memref<16x32xf32, #tpu.memory_space<vmem>>, %arg1: memref<1x16xf32, #tpu.memory_space<vmem>>, %arg2: memref<2x4xf32, #tpu.memory_space<vmem>>, %arg3: memref<24x128xf32, #tpu.memory_space<vmem>>, %arg4: memref<6x32x32xbf16, #tpu.memory_space<vmem>>, %arg5: memref<2x32x32xbf16, #tpu.memory_space<vmem>>, %arg6: memref<2x32x64xbf16, #tpu.memory_space<vmem>>, %arg7: memref<2x64x32xbf16, #tpu.memory_space<vmem>>, %arg8: memref<36x6xbf16, #tpu.memory_space<vmem>>, %arg9: memref<2x6xf32, #tpu.memory_space<vmem>>) attributes {dimension_semantics = [], scalar_prefetch = 0 : i64, scratch_operands = 0 : i64, tpu.core_type = #tpu.core_type<tc>} {
    %0 = tpu.iota {dimensions = array<i32: 0>} : vector<16x2xi32>
    %1 = tpu.iota {dimensions = array<i32: 1>} : vector<16x2xi32>
    %c8_i32 = arith.constant 8 : i32
    %2 = vector.broadcast %c8_i32 : i32 to vector<16x2xi32>
    %3 = arith.muli %1, %2 : vector<16x2xi32>
    %4 = arith.cmpi sge, %0, %3 : vector<16x2xi32>
    %c1_i32 = arith.constant 1 : i32
    %5 = vector.broadcast %c1_i32 : i32 to vector<16x2xi32>
    %6 = arith.addi %1, %5 : vector<16x2xi32>
    %c8_i32_0 = arith.constant 8 : i32
    %7 = vector.broadcast %c8_i32_0 : i32 to vector<16x2xi32>
    %8 = arith.muli %6, %7 : vector<16x2xi32>
    %9 = arith.cmpi slt, %0, %8 : vector<16x2xi32>
    %10 = arith.andi %4, %9 : vector<16x2xi1>
    %11 = arith.extui %10 : vector<16x2xi1> to vector<16x2xi32>
    %12 = arith.sitofp %11 : vector<16x2xi32> to vector<16x2xf32>
    %13 = arith.truncf %12 : vector<16x2xf32> to vector<16x2xbf16>
    %cst = arith.constant dense<0.000000e+00> : vector<16x16xf32>
    %14 = tpu.matmul %13, %13, %cst {dimension_numbers = #tpu.dot_dimension_numbers<[1], [1], [0], [0], [0, 0, 1, 0], [], []>} : vector<16x2xbf16>, vector<16x2xbf16>, vector<16x16xf32> -> vector<16x16xf32>
    %c0 = arith.constant 0 : index
    %c0_1 = arith.constant 0 : index
    %15 = vector.load %arg1[%c0, %c0_1] : memref<1x16xf32, #tpu.memory_space<vmem>>, vector<1x16xf32>
    %16 = vector.broadcast %15 : vector<1x16xf32> to vector<16x16xf32>
    %17 = arith.mulf %14, %16 : vector<16x16xf32>
    %cst_2 = arith.constant 1.000000e+00 : f32
    %18 = vector.broadcast %cst_2 : f32 to vector<16x16xf32>
    %19 = arith.subf %17, %18 : vector<16x16xf32>
    %cst_3 = arith.constant 1.000000e+09 : f32
    %20 = vector.broadcast %cst_3 : f32 to vector<16x16xf32>
    %21 = arith.mulf %19, %20 : vector<16x16xf32>
    %22 = tpu.iota {dimensions = array<i32: 1>} : vector<1x32xi32>
    %c0_i32 = arith.constant 0 : i32
    %23 = vector.broadcast %c0_i32 : i32 to vector<1x32xi32>
    %24 = arith.cmpi sge, %22, %23 : vector<1x32xi32>
    %c8_i32_4 = arith.constant 8 : i32
    %25 = vector.broadcast %c8_i32_4 : i32 to vector<1x32xi32>
    %26 = arith.cmpi slt, %22, %25 : vector<1x32xi32>
    %27 = arith.andi %24, %26 : vector<1x32xi1>
    %28 = arith.extui %27 : vector<1x32xi1> to vector<1x32xi32>
    %29 = arith.sitofp %28 : vector<1x32xi32> to vector<1x32xf32>
    %c8_i32_5 = arith.constant 8 : i32
    %30 = vector.broadcast %c8_i32_5 : i32 to vector<1x32xi32>
    %31 = arith.cmpi sge, %22, %30 : vector<1x32xi32>
    %c16_i32 = arith.constant 16 : i32
    %32 = vector.broadcast %c16_i32 : i32 to vector<1x32xi32>
    %33 = arith.cmpi slt, %22, %32 : vector<1x32xi32>
    %34 = arith.andi %31, %33 : vector<1x32xi1>
    %35 = arith.extui %34 : vector<1x32xi1> to vector<1x32xi32>
    %36 = arith.sitofp %35 : vector<1x32xi32> to vector<1x32xf32>
    %c16_i32_6 = arith.constant 16 : i32
    %37 = vector.broadcast %c16_i32_6 : i32 to vector<1x32xi32>
    %38 = arith.cmpi sge, %22, %37 : vector<1x32xi32>
    %c24_i32 = arith.constant 24 : i32
    %39 = vector.broadcast %c24_i32 : i32 to vector<1x32xi32>
    %40 = arith.cmpi slt, %22, %39 : vector<1x32xi32>
    %41 = arith.andi %38, %40 : vector<1x32xi1>
    %42 = arith.extui %41 : vector<1x32xi1> to vector<1x32xi32>
    %43 = arith.sitofp %42 : vector<1x32xi32> to vector<1x32xf32>
    %c24_i32_7 = arith.constant 24 : i32
    %44 = vector.broadcast %c24_i32_7 : i32 to vector<1x32xi32>
    %45 = arith.cmpi sge, %22, %44 : vector<1x32xi32>
    %c32_i32 = arith.constant 32 : i32
    %46 = vector.broadcast %c32_i32 : i32 to vector<1x32xi32>
    %47 = arith.cmpi slt, %22, %46 : vector<1x32xi32>
    %48 = arith.andi %45, %47 : vector<1x32xi1>
    %49 = arith.extui %48 : vector<1x32xi1> to vector<1x32xi32>
    %50 = arith.sitofp %49 : vector<1x32xi32> to vector<1x32xf32>
    %c0_8 = arith.constant 0 : index
    %c0_9 = arith.constant 0 : index
    %51 = vector.load %arg0[%c0_8, %c0_9] : memref<16x32xf32, #tpu.memory_space<vmem>>, vector<16x32xf32>
    %c0_10 = arith.constant 0 : index
    %c0_11 = arith.constant 0 : index
    %52 = vector.load %arg3[%c0_10, %c0_11] : memref<24x128xf32, #tpu.memory_space<vmem>>, vector<1x32xf32>
    %c1 = arith.constant 1 : index
    %c0_12 = arith.constant 0 : index
    %53 = vector.load %arg3[%c1, %c0_12] : memref<24x128xf32, #tpu.memory_space<vmem>>, vector<1x32xf32>
    %cst_13 = arith.constant dense<0.000000e+00> : vector<16xf32>
    %54 = vector.multi_reduction <add>, %51, %cst_13 [1] : vector<16x32xf32> to vector<16xf32>
    %55 = vector.shape_cast %54 : vector<16xf32> to vector<16x1xf32>
    %cst_14 = arith.constant 3.200000e+01 : f32
    %56 = vector.broadcast %cst_14 : f32 to vector<16x1xf32>
    %57 = arith.divf %55, %56 : vector<16x1xf32>
    %58 = vector.broadcast %57 : vector<16x1xf32> to vector<16x32xf32>
    %59 = arith.subf %51, %58 : vector<16x32xf32>
    %60 = arith.mulf %59, %59 : vector<16x32xf32>
    %cst_15 = arith.constant dense<0.000000e+00> : vector<16xf32>
    %61 = vector.multi_reduction <add>, %60, %cst_15 [1] : vector<16x32xf32> to vector<16xf32>
    %62 = vector.shape_cast %61 : vector<16xf32> to vector<16x1xf32>
    %cst_16 = arith.constant 3.200000e+01 : f32
    %63 = vector.broadcast %cst_16 : f32 to vector<16x1xf32>
    %64 = arith.divf %62, %63 : vector<16x1xf32>
    %65 = vector.broadcast %57 : vector<16x1xf32> to vector<16x32xf32>
    %66 = arith.subf %51, %65 : vector<16x32xf32>
    %cst_17 = arith.constant 9.99999974E-6 : f32
    %67 = vector.broadcast %cst_17 : f32 to vector<16x1xf32>
    %68 = arith.addf %64, %67 : vector<16x1xf32>
    %69 = math.rsqrt %68 : vector<16x1xf32>
    %70 = vector.broadcast %69 : vector<16x1xf32> to vector<16x32xf32>
    %71 = arith.mulf %66, %70 : vector<16x32xf32>
    %72 = vector.broadcast %52 : vector<1x32xf32> to vector<16x32xf32>
    %73 = arith.mulf %71, %72 : vector<16x32xf32>
    %74 = vector.broadcast %53 : vector<1x32xf32> to vector<16x32xf32>
    %75 = arith.addf %73, %74 : vector<16x32xf32>
    %76 = arith.truncf %75 : vector<16x32xf32> to vector<16x32xbf16>
    %c0_18 = arith.constant 0 : index
    %c0_19 = arith.constant 0 : index
    %c0_20 = arith.constant 0 : index
    %77 = vector.load %arg4[%c0_18, %c0_19, %c0_20] : memref<6x32x32xbf16, #tpu.memory_space<vmem>>, vector<1x32x32xbf16>
    %78 = vector.shape_cast %77 : vector<1x32x32xbf16> to vector<32x32xbf16>
    %cst_21 = arith.constant dense<0.000000e+00> : vector<16x32xf32>
    %79 = tpu.matmul %76, %78, %cst_21 {dimension_numbers = #tpu.dot_dimension_numbers<[1], [0], [0], [1], [0, 0, 1, 1], [], []>} : vector<16x32xbf16>, vector<32x32xbf16>, vector<16x32xf32> -> vector<16x32xf32>
    %c3 = arith.constant 3 : index
    %c0_22 = arith.constant 0 : index
    %80 = vector.load %arg3[%c3, %c0_22] : memref<24x128xf32, #tpu.memory_space<vmem>>, vector<1x32xf32>
    %81 = vector.broadcast %80 : vector<1x32xf32> to vector<16x32xf32>
    %82 = arith.addf %79, %81 : vector<16x32xf32>
    %c1_23 = arith.constant 1 : index
    %c0_24 = arith.constant 0 : index
    %c0_25 = arith.constant 0 : index
    %83 = vector.load %arg4[%c1_23, %c0_24, %c0_25] : memref<6x32x32xbf16, #tpu.memory_space<vmem>>, vector<1x32x32xbf16>
    %84 = vector.shape_cast %83 : vector<1x32x32xbf16> to vector<32x32xbf16>
    %cst_26 = arith.constant dense<0.000000e+00> : vector<16x32xf32>
    %85 = tpu.matmul %76, %84, %cst_26 {dimension_numbers = #tpu.dot_dimension_numbers<[1], [0], [0], [1], [0, 0, 1, 1], [], []>} : vector<16x32xbf16>, vector<32x32xbf16>, vector<16x32xf32> -> vector<16x32xf32>
    %c4 = arith.constant 4 : index
    %c0_27 = arith.constant 0 : index
    %86 = vector.load %arg3[%c4, %c0_27] : memref<24x128xf32, #tpu.memory_space<vmem>>, vector<1x32xf32>
    %87 = vector.broadcast %86 : vector<1x32xf32> to vector<16x32xf32>
    %88 = arith.addf %85, %87 : vector<16x32xf32>
    %c2 = arith.constant 2 : index
    %c0_28 = arith.constant 0 : index
    %c0_29 = arith.constant 0 : index
    %89 = vector.load %arg4[%c2, %c0_28, %c0_29] : memref<6x32x32xbf16, #tpu.memory_space<vmem>>, vector<1x32x32xbf16>
    %90 = vector.shape_cast %89 : vector<1x32x32xbf16> to vector<32x32xbf16>
    %cst_30 = arith.constant dense<0.000000e+00> : vector<16x32xf32>
    %91 = tpu.matmul %76, %90, %cst_30 {dimension_numbers = #tpu.dot_dimension_numbers<[1], [0], [0], [1], [0, 0, 1, 1], [], []>} : vector<16x32xbf16>, vector<32x32xbf16>, vector<16x32xf32> -> vector<16x32xf32>
    %c5 = arith.constant 5 : index
    %c0_31 = arith.constant 0 : index
    %92 = vector.load %arg3[%c5, %c0_31] : memref<24x128xf32, #tpu.memory_space<vmem>>, vector<1x32xf32>
    %93 = vector.broadcast %92 : vector<1x32xf32> to vector<16x32xf32>
    %94 = arith.addf %91, %93 : vector<16x32xf32>
    %95 = arith.truncf %88 : vector<16x32xf32> to vector<16x32xbf16>
    %96 = vector.broadcast %29 : vector<1x32xf32> to vector<16x32xf32>
    %97 = arith.mulf %82, %96 : vector<16x32xf32>
    %98 = arith.truncf %97 : vector<16x32xf32> to vector<16x32xbf16>
    %cst_32 = arith.constant dense<0.000000e+00> : vector<16x16xf32>
    %99 = tpu.matmul %98, %95, %cst_32 {dimension_numbers = #tpu.dot_dimension_numbers<[1], [1], [0], [0], [0, 0, 1, 0], [], []>} : vector<16x32xbf16>, vector<16x32xbf16>, vector<16x16xf32> -> vector<16x16xf32>
    %100 = arith.addf %99, %21 : vector<16x16xf32>
    %cst_33 = arith.constant dense<0xFF800000> : vector<16xf32>
    %101 = vector.multi_reduction <maximumf>, %100, %cst_33 [1] : vector<16x16xf32> to vector<16xf32>
    %102 = vector.shape_cast %101 : vector<16xf32> to vector<16x1xf32>
    %103 = vector.broadcast %102 : vector<16x1xf32> to vector<16x16xf32>
    %104 = arith.subf %100, %103 : vector<16x16xf32>
    %105 = math.exp %104 : vector<16x16xf32>
    %cst_34 = arith.constant dense<0.000000e+00> : vector<16xf32>
    %106 = vector.multi_reduction <add>, %105, %cst_34 [1] : vector<16x16xf32> to vector<16xf32>
    %107 = vector.shape_cast %106 : vector<16xf32> to vector<16x1xf32>
    %108 = tpu.reciprocal %107 {approx = true} : vector<16x1xf32> -> vector<16x1xf32>
    %109 = vector.broadcast %108 : vector<16x1xf32> to vector<16x16xf32>
    %110 = arith.mulf %105, %109 : vector<16x16xf32>
    %111 = vector.broadcast %29 : vector<1x32xf32> to vector<16x32xf32>
    %112 = arith.mulf %94, %111 : vector<16x32xf32>
    %113 = arith.truncf %112 : vector<16x32xf32> to vector<16x32xbf16>
    %114 = arith.truncf %110 : vector<16x16xf32> to vector<16x16xbf16>
    %cst_35 = arith.constant dense<0.000000e+00> : vector<16x32xf32>
    %115 = tpu.matmul %114, %113, %cst_35 {dimension_numbers = #tpu.dot_dimension_numbers<[1], [0], [0], [1], [0, 0, 1, 1], [], []>} : vector<16x16xbf16>, vector<16x32xbf16>, vector<16x32xf32> -> vector<16x32xf32>
    %116 = vector.broadcast %36 : vector<1x32xf32> to vector<16x32xf32>
    %117 = arith.mulf %82, %116 : vector<16x32xf32>
    %118 = arith.truncf %117 : vector<16x32xf32> to vector<16x32xbf16>
    %cst_36 = arith.constant dense<0.000000e+00> : vector<16x16xf32>
    %119 = tpu.matmul %118, %95, %cst_36 {dimension_numbers = #tpu.dot_dimension_numbers<[1], [1], [0], [0], [0, 0, 1, 0], [], []>} : vector<16x32xbf16>, vector<16x32xbf16>, vector<16x16xf32> -> vector<16x16xf32>
    %120 = arith.addf %119, %21 : vector<16x16xf32>
    %cst_37 = arith.constant dense<0xFF800000> : vector<16xf32>
    %121 = vector.multi_reduction <maximumf>, %120, %cst_37 [1] : vector<16x16xf32> to vector<16xf32>
    %122 = vector.shape_cast %121 : vector<16xf32> to vector<16x1xf32>
    %123 = vector.broadcast %122 : vector<16x1xf32> to vector<16x16xf32>
    %124 = arith.subf %120, %123 : vector<16x16xf32>
    %125 = math.exp %124 : vector<16x16xf32>
    %cst_38 = arith.constant dense<0.000000e+00> : vector<16xf32>
    %126 = vector.multi_reduction <add>, %125, %cst_38 [1] : vector<16x16xf32> to vector<16xf32>
    %127 = vector.shape_cast %126 : vector<16xf32> to vector<16x1xf32>
    %128 = tpu.reciprocal %127 {approx = true} : vector<16x1xf32> -> vector<16x1xf32>
    %129 = vector.broadcast %128 : vector<16x1xf32> to vector<16x16xf32>
    %130 = arith.mulf %125, %129 : vector<16x16xf32>
    %131 = vector.broadcast %36 : vector<1x32xf32> to vector<16x32xf32>
    %132 = arith.mulf %94, %131 : vector<16x32xf32>
    %133 = arith.truncf %132 : vector<16x32xf32> to vector<16x32xbf16>
    %134 = arith.truncf %130 : vector<16x16xf32> to vector<16x16xbf16>
    %cst_39 = arith.constant dense<0.000000e+00> : vector<16x32xf32>
    %135 = tpu.matmul %134, %133, %cst_39 {dimension_numbers = #tpu.dot_dimension_numbers<[1], [0], [0], [1], [0, 0, 1, 1], [], []>} : vector<16x16xbf16>, vector<16x32xbf16>, vector<16x32xf32> -> vector<16x32xf32>
    %136 = arith.addf %115, %135 : vector<16x32xf32>
    %137 = vector.broadcast %43 : vector<1x32xf32> to vector<16x32xf32>
    %138 = arith.mulf %82, %137 : vector<16x32xf32>
    %139 = arith.truncf %138 : vector<16x32xf32> to vector<16x32xbf16>
    %cst_40 = arith.constant dense<0.000000e+00> : vector<16x16xf32>
    %140 = tpu.matmul %139, %95, %cst_40 {dimension_numbers = #tpu.dot_dimension_numbers<[1], [1], [0], [0], [0, 0, 1, 0], [], []>} : vector<16x32xbf16>, vector<16x32xbf16>, vector<16x16xf32> -> vector<16x16xf32>
    %141 = arith.addf %140, %21 : vector<16x16xf32>
    %cst_41 = arith.constant dense<0xFF800000> : vector<16xf32>
    %142 = vector.multi_reduction <maximumf>, %141, %cst_41 [1] : vector<16x16xf32> to vector<16xf32>
    %143 = vector.shape_cast %142 : vector<16xf32> to vector<16x1xf32>
    %144 = vector.broadcast %143 : vector<16x1xf32> to vector<16x16xf32>
    %145 = arith.subf %141, %144 : vector<16x16xf32>
    %146 = math.exp %145 : vector<16x16xf32>
    %cst_42 = arith.constant dense<0.000000e+00> : vector<16xf32>
    %147 = vector.multi_reduction <add>, %146, %cst_42 [1] : vector<16x16xf32> to vector<16xf32>
    %148 = vector.shape_cast %147 : vector<16xf32> to vector<16x1xf32>
    %149 = tpu.reciprocal %148 {approx = true} : vector<16x1xf32> -> vector<16x1xf32>
    %150 = vector.broadcast %149 : vector<16x1xf32> to vector<16x16xf32>
    %151 = arith.mulf %146, %150 : vector<16x16xf32>
    %152 = vector.broadcast %43 : vector<1x32xf32> to vector<16x32xf32>
    %153 = arith.mulf %94, %152 : vector<16x32xf32>
    %154 = arith.truncf %153 : vector<16x32xf32> to vector<16x32xbf16>
    %155 = arith.truncf %151 : vector<16x16xf32> to vector<16x16xbf16>
    %cst_43 = arith.constant dense<0.000000e+00> : vector<16x32xf32>
    %156 = tpu.matmul %155, %154, %cst_43 {dimension_numbers = #tpu.dot_dimension_numbers<[1], [0], [0], [1], [0, 0, 1, 1], [], []>} : vector<16x16xbf16>, vector<16x32xbf16>, vector<16x32xf32> -> vector<16x32xf32>
    %157 = arith.addf %136, %156 : vector<16x32xf32>
    %158 = vector.broadcast %50 : vector<1x32xf32> to vector<16x32xf32>
    %159 = arith.mulf %82, %158 : vector<16x32xf32>
    %160 = arith.truncf %159 : vector<16x32xf32> to vector<16x32xbf16>
    %cst_44 = arith.constant dense<0.000000e+00> : vector<16x16xf32>
    %161 = tpu.matmul %160, %95, %cst_44 {dimension_numbers = #tpu.dot_dimension_numbers<[1], [1], [0], [0], [0, 0, 1, 0], [], []>} : vector<16x32xbf16>, vector<16x32xbf16>, vector<16x16xf32> -> vector<16x16xf32>
    %162 = arith.addf %161, %21 : vector<16x16xf32>
    %cst_45 = arith.constant dense<0xFF800000> : vector<16xf32>
    %163 = vector.multi_reduction <maximumf>, %162, %cst_45 [1] : vector<16x16xf32> to vector<16xf32>
    %164 = vector.shape_cast %163 : vector<16xf32> to vector<16x1xf32>
    %165 = vector.broadcast %164 : vector<16x1xf32> to vector<16x16xf32>
    %166 = arith.subf %162, %165 : vector<16x16xf32>
    %167 = math.exp %166 : vector<16x16xf32>
    %cst_46 = arith.constant dense<0.000000e+00> : vector<16xf32>
    %168 = vector.multi_reduction <add>, %167, %cst_46 [1] : vector<16x16xf32> to vector<16xf32>
    %169 = vector.shape_cast %168 : vector<16xf32> to vector<16x1xf32>
    %170 = tpu.reciprocal %169 {approx = true} : vector<16x1xf32> -> vector<16x1xf32>
    %171 = vector.broadcast %170 : vector<16x1xf32> to vector<16x16xf32>
    %172 = arith.mulf %167, %171 : vector<16x16xf32>
    %173 = vector.broadcast %50 : vector<1x32xf32> to vector<16x32xf32>
    %174 = arith.mulf %94, %173 : vector<16x32xf32>
    %175 = arith.truncf %174 : vector<16x32xf32> to vector<16x32xbf16>
    %176 = arith.truncf %172 : vector<16x16xf32> to vector<16x16xbf16>
    %cst_47 = arith.constant dense<0.000000e+00> : vector<16x32xf32>
    %177 = tpu.matmul %176, %175, %cst_47 {dimension_numbers = #tpu.dot_dimension_numbers<[1], [0], [0], [1], [0, 0, 1, 1], [], []>} : vector<16x16xbf16>, vector<16x32xbf16>, vector<16x32xf32> -> vector<16x32xf32>
    %178 = arith.addf %157, %177 : vector<16x32xf32>
    %179 = arith.truncf %178 : vector<16x32xf32> to vector<16x32xbf16>
    %c0_48 = arith.constant 0 : index
    %c0_49 = arith.constant 0 : index
    %c0_50 = arith.constant 0 : index
    %180 = vector.load %arg5[%c0_48, %c0_49, %c0_50] : memref<2x32x32xbf16, #tpu.memory_space<vmem>>, vector<1x32x32xbf16>
    %181 = vector.shape_cast %180 : vector<1x32x32xbf16> to vector<32x32xbf16>
    %cst_51 = arith.constant dense<0.000000e+00> : vector<16x32xf32>
    %182 = tpu.matmul %179, %181, %cst_51 {dimension_numbers = #tpu.dot_dimension_numbers<[1], [0], [0], [1], [0, 0, 1, 1], [], []>} : vector<16x32xbf16>, vector<32x32xbf16>, vector<16x32xf32> -> vector<16x32xf32>
    %c6 = arith.constant 6 : index
    %c0_52 = arith.constant 0 : index
    %183 = vector.load %arg3[%c6, %c0_52] : memref<24x128xf32, #tpu.memory_space<vmem>>, vector<1x32xf32>
    %184 = vector.broadcast %183 : vector<1x32xf32> to vector<16x32xf32>
    %185 = arith.addf %182, %184 : vector<16x32xf32>
    %186 = arith.addf %185, %75 : vector<16x32xf32>
    %c7 = arith.constant 7 : index
    %c0_53 = arith.constant 0 : index
    %187 = vector.load %arg3[%c7, %c0_53] : memref<24x128xf32, #tpu.memory_space<vmem>>, vector<1x32xf32>
    %c8 = arith.constant 8 : index
    %c0_54 = arith.constant 0 : index
    %188 = vector.load %arg3[%c8, %c0_54] : memref<24x128xf32, #tpu.memory_space<vmem>>, vector<1x32xf32>
    %cst_55 = arith.constant dense<0.000000e+00> : vector<16xf32>
    %189 = vector.multi_reduction <add>, %186, %cst_55 [1] : vector<16x32xf32> to vector<16xf32>
    %190 = vector.shape_cast %189 : vector<16xf32> to vector<16x1xf32>
    %cst_56 = arith.constant 3.200000e+01 : f32
    %191 = vector.broadcast %cst_56 : f32 to vector<16x1xf32>
    %192 = arith.divf %190, %191 : vector<16x1xf32>
    %193 = vector.broadcast %192 : vector<16x1xf32> to vector<16x32xf32>
    %194 = arith.subf %186, %193 : vector<16x32xf32>
    %195 = arith.mulf %194, %194 : vector<16x32xf32>
    %cst_57 = arith.constant dense<0.000000e+00> : vector<16xf32>
    %196 = vector.multi_reduction <add>, %195, %cst_57 [1] : vector<16x32xf32> to vector<16xf32>
    %197 = vector.shape_cast %196 : vector<16xf32> to vector<16x1xf32>
    %cst_58 = arith.constant 3.200000e+01 : f32
    %198 = vector.broadcast %cst_58 : f32 to vector<16x1xf32>
    %199 = arith.divf %197, %198 : vector<16x1xf32>
    %200 = vector.broadcast %192 : vector<16x1xf32> to vector<16x32xf32>
    %201 = arith.subf %186, %200 : vector<16x32xf32>
    %cst_59 = arith.constant 9.99999974E-6 : f32
    %202 = vector.broadcast %cst_59 : f32 to vector<16x1xf32>
    %203 = arith.addf %199, %202 : vector<16x1xf32>
    %204 = math.rsqrt %203 : vector<16x1xf32>
    %205 = vector.broadcast %204 : vector<16x1xf32> to vector<16x32xf32>
    %206 = arith.mulf %201, %205 : vector<16x32xf32>
    %207 = vector.broadcast %187 : vector<1x32xf32> to vector<16x32xf32>
    %208 = arith.mulf %206, %207 : vector<16x32xf32>
    %209 = vector.broadcast %188 : vector<1x32xf32> to vector<16x32xf32>
    %210 = arith.addf %208, %209 : vector<16x32xf32>
    %211 = arith.truncf %210 : vector<16x32xf32> to vector<16x32xbf16>
    %c0_60 = arith.constant 0 : index
    %c0_61 = arith.constant 0 : index
    %c0_62 = arith.constant 0 : index
    %212 = vector.load %arg6[%c0_60, %c0_61, %c0_62] : memref<2x32x64xbf16, #tpu.memory_space<vmem>>, vector<1x32x64xbf16>
    %213 = vector.shape_cast %212 : vector<1x32x64xbf16> to vector<32x64xbf16>
    %cst_63 = arith.constant dense<0.000000e+00> : vector<16x64xf32>
    %214 = tpu.matmul %211, %213, %cst_63 {dimension_numbers = #tpu.dot_dimension_numbers<[1], [0], [0], [1], [0, 0, 1, 1], [], []>} : vector<16x32xbf16>, vector<32x64xbf16>, vector<16x64xf32> -> vector<16x64xf32>
    %c9 = arith.constant 9 : index
    %c0_64 = arith.constant 0 : index
    %215 = vector.load %arg3[%c9, %c0_64] : memref<24x128xf32, #tpu.memory_space<vmem>>, vector<1x64xf32>
    %216 = vector.broadcast %215 : vector<1x64xf32> to vector<16x64xf32>
    %217 = arith.addf %214, %216 : vector<16x64xf32>
    %218 = arith.mulf %217, %217 : vector<16x64xf32>
    %219 = arith.mulf %217, %218 : vector<16x64xf32>
    %cst_65 = arith.constant 4.471500e-02 : f32
    %220 = vector.broadcast %cst_65 : f32 to vector<16x64xf32>
    %221 = arith.mulf %220, %219 : vector<16x64xf32>
    %222 = arith.addf %217, %221 : vector<16x64xf32>
    %cst_66 = arith.constant 0.797884583 : f32
    %223 = vector.broadcast %cst_66 : f32 to vector<16x64xf32>
    %224 = arith.mulf %223, %222 : vector<16x64xf32>
    %225 = math.tanh %224 : vector<16x64xf32>
    %cst_67 = arith.constant 1.000000e+00 : f32
    %226 = vector.broadcast %cst_67 : f32 to vector<16x64xf32>
    %227 = arith.addf %226, %225 : vector<16x64xf32>
    %cst_68 = arith.constant 5.000000e-01 : f32
    %228 = vector.broadcast %cst_68 : f32 to vector<16x64xf32>
    %229 = arith.mulf %228, %227 : vector<16x64xf32>
    %230 = arith.mulf %217, %229 : vector<16x64xf32>
    %231 = arith.truncf %230 : vector<16x64xf32> to vector<16x64xbf16>
    %c0_69 = arith.constant 0 : index
    %c0_70 = arith.constant 0 : index
    %c0_71 = arith.constant 0 : index
    %232 = vector.load %arg7[%c0_69, %c0_70, %c0_71] : memref<2x64x32xbf16, #tpu.memory_space<vmem>>, vector<1x64x32xbf16>
    %233 = vector.shape_cast %232 : vector<1x64x32xbf16> to vector<64x32xbf16>
    %cst_72 = arith.constant dense<0.000000e+00> : vector<16x32xf32>
    %234 = tpu.matmul %231, %233, %cst_72 {dimension_numbers = #tpu.dot_dimension_numbers<[1], [0], [0], [1], [0, 0, 1, 1], [], []>} : vector<16x64xbf16>, vector<64x32xbf16>, vector<16x32xf32> -> vector<16x32xf32>
    %c10 = arith.constant 10 : index
    %c0_73 = arith.constant 0 : index
    %235 = vector.load %arg3[%c10, %c0_73] : memref<24x128xf32, #tpu.memory_space<vmem>>, vector<1x32xf32>
    %236 = vector.broadcast %235 : vector<1x32xf32> to vector<16x32xf32>
    %237 = arith.addf %234, %236 : vector<16x32xf32>
    %238 = arith.addf %237, %210 : vector<16x32xf32>
    %c11 = arith.constant 11 : index
    %c0_74 = arith.constant 0 : index
    %239 = vector.load %arg3[%c11, %c0_74] : memref<24x128xf32, #tpu.memory_space<vmem>>, vector<1x32xf32>
    %c12 = arith.constant 12 : index
    %c0_75 = arith.constant 0 : index
    %240 = vector.load %arg3[%c12, %c0_75] : memref<24x128xf32, #tpu.memory_space<vmem>>, vector<1x32xf32>
    %cst_76 = arith.constant dense<0.000000e+00> : vector<16xf32>
    %241 = vector.multi_reduction <add>, %238, %cst_76 [1] : vector<16x32xf32> to vector<16xf32>
    %242 = vector.shape_cast %241 : vector<16xf32> to vector<16x1xf32>
    %cst_77 = arith.constant 3.200000e+01 : f32
    %243 = vector.broadcast %cst_77 : f32 to vector<16x1xf32>
    %244 = arith.divf %242, %243 : vector<16x1xf32>
    %245 = vector.broadcast %244 : vector<16x1xf32> to vector<16x32xf32>
    %246 = arith.subf %238, %245 : vector<16x32xf32>
    %247 = arith.mulf %246, %246 : vector<16x32xf32>
    %cst_78 = arith.constant dense<0.000000e+00> : vector<16xf32>
    %248 = vector.multi_reduction <add>, %247, %cst_78 [1] : vector<16x32xf32> to vector<16xf32>
    %249 = vector.shape_cast %248 : vector<16xf32> to vector<16x1xf32>
    %cst_79 = arith.constant 3.200000e+01 : f32
    %250 = vector.broadcast %cst_79 : f32 to vector<16x1xf32>
    %251 = arith.divf %249, %250 : vector<16x1xf32>
    %252 = vector.broadcast %244 : vector<16x1xf32> to vector<16x32xf32>
    %253 = arith.subf %238, %252 : vector<16x32xf32>
    %cst_80 = arith.constant 9.99999974E-6 : f32
    %254 = vector.broadcast %cst_80 : f32 to vector<16x1xf32>
    %255 = arith.addf %251, %254 : vector<16x1xf32>
    %256 = math.rsqrt %255 : vector<16x1xf32>
    %257 = vector.broadcast %256 : vector<16x1xf32> to vector<16x32xf32>
    %258 = arith.mulf %253, %257 : vector<16x32xf32>
    %259 = vector.broadcast %239 : vector<1x32xf32> to vector<16x32xf32>
    %260 = arith.mulf %258, %259 : vector<16x32xf32>
    %261 = vector.broadcast %240 : vector<1x32xf32> to vector<16x32xf32>
    %262 = arith.addf %260, %261 : vector<16x32xf32>
    %263 = arith.truncf %262 : vector<16x32xf32> to vector<16x32xbf16>
    %c3_81 = arith.constant 3 : index
    %c0_82 = arith.constant 0 : index
    %c0_83 = arith.constant 0 : index
    %264 = vector.load %arg4[%c3_81, %c0_82, %c0_83] : memref<6x32x32xbf16, #tpu.memory_space<vmem>>, vector<1x32x32xbf16>
    %265 = vector.shape_cast %264 : vector<1x32x32xbf16> to vector<32x32xbf16>
    %cst_84 = arith.constant dense<0.000000e+00> : vector<16x32xf32>
    %266 = tpu.matmul %263, %265, %cst_84 {dimension_numbers = #tpu.dot_dimension_numbers<[1], [0], [0], [1], [0, 0, 1, 1], [], []>} : vector<16x32xbf16>, vector<32x32xbf16>, vector<16x32xf32> -> vector<16x32xf32>
    %c13 = arith.constant 13 : index
    %c0_85 = arith.constant 0 : index
    %267 = vector.load %arg3[%c13, %c0_85] : memref<24x128xf32, #tpu.memory_space<vmem>>, vector<1x32xf32>
    %268 = vector.broadcast %267 : vector<1x32xf32> to vector<16x32xf32>
    %269 = arith.addf %266, %268 : vector<16x32xf32>
    %c4_86 = arith.constant 4 : index
    %c0_87 = arith.constant 0 : index
    %c0_88 = arith.constant 0 : index
    %270 = vector.load %arg4[%c4_86, %c0_87, %c0_88] : memref<6x32x32xbf16, #tpu.memory_space<vmem>>, vector<1x32x32xbf16>
    %271 = vector.shape_cast %270 : vector<1x32x32xbf16> to vector<32x32xbf16>
    %cst_89 = arith.constant dense<0.000000e+00> : vector<16x32xf32>
    %272 = tpu.matmul %263, %271, %cst_89 {dimension_numbers = #tpu.dot_dimension_numbers<[1], [0], [0], [1], [0, 0, 1, 1], [], []>} : vector<16x32xbf16>, vector<32x32xbf16>, vector<16x32xf32> -> vector<16x32xf32>
    %c14 = arith.constant 14 : index
    %c0_90 = arith.constant 0 : index
    %273 = vector.load %arg3[%c14, %c0_90] : memref<24x128xf32, #tpu.memory_space<vmem>>, vector<1x32xf32>
    %274 = vector.broadcast %273 : vector<1x32xf32> to vector<16x32xf32>
    %275 = arith.addf %272, %274 : vector<16x32xf32>
    %c5_91 = arith.constant 5 : index
    %c0_92 = arith.constant 0 : index
    %c0_93 = arith.constant 0 : index
    %276 = vector.load %arg4[%c5_91, %c0_92, %c0_93] : memref<6x32x32xbf16, #tpu.memory_space<vmem>>, vector<1x32x32xbf16>
    %277 = vector.shape_cast %276 : vector<1x32x32xbf16> to vector<32x32xbf16>
    %cst_94 = arith.constant dense<0.000000e+00> : vector<16x32xf32>
    %278 = tpu.matmul %263, %277, %cst_94 {dimension_numbers = #tpu.dot_dimension_numbers<[1], [0], [0], [1], [0, 0, 1, 1], [], []>} : vector<16x32xbf16>, vector<32x32xbf16>, vector<16x32xf32> -> vector<16x32xf32>
    %c15 = arith.constant 15 : index
    %c0_95 = arith.constant 0 : index
    %279 = vector.load %arg3[%c15, %c0_95] : memref<24x128xf32, #tpu.memory_space<vmem>>, vector<1x32xf32>
    %280 = vector.broadcast %279 : vector<1x32xf32> to vector<16x32xf32>
    %281 = arith.addf %278, %280 : vector<16x32xf32>
    %282 = arith.truncf %275 : vector<16x32xf32> to vector<16x32xbf16>
    %283 = vector.broadcast %29 : vector<1x32xf32> to vector<16x32xf32>
    %284 = arith.mulf %269, %283 : vector<16x32xf32>
    %285 = arith.truncf %284 : vector<16x32xf32> to vector<16x32xbf16>
    %cst_96 = arith.constant dense<0.000000e+00> : vector<16x16xf32>
    %286 = tpu.matmul %285, %282, %cst_96 {dimension_numbers = #tpu.dot_dimension_numbers<[1], [1], [0], [0], [0, 0, 1, 0], [], []>} : vector<16x32xbf16>, vector<16x32xbf16>, vector<16x16xf32> -> vector<16x16xf32>
    %287 = arith.addf %286, %21 : vector<16x16xf32>
    %cst_97 = arith.constant dense<0xFF800000> : vector<16xf32>
    %288 = vector.multi_reduction <maximumf>, %287, %cst_97 [1] : vector<16x16xf32> to vector<16xf32>
    %289 = vector.shape_cast %288 : vector<16xf32> to vector<16x1xf32>
    %290 = vector.broadcast %289 : vector<16x1xf32> to vector<16x16xf32>
    %291 = arith.subf %287, %290 : vector<16x16xf32>
    %292 = math.exp %291 : vector<16x16xf32>
    %cst_98 = arith.constant dense<0.000000e+00> : vector<16xf32>
    %293 = vector.multi_reduction <add>, %292, %cst_98 [1] : vector<16x16xf32> to vector<16xf32>
    %294 = vector.shape_cast %293 : vector<16xf32> to vector<16x1xf32>
    %295 = tpu.reciprocal %294 {approx = true} : vector<16x1xf32> -> vector<16x1xf32>
    %296 = vector.broadcast %295 : vector<16x1xf32> to vector<16x16xf32>
    %297 = arith.mulf %292, %296 : vector<16x16xf32>
    %298 = vector.broadcast %29 : vector<1x32xf32> to vector<16x32xf32>
    %299 = arith.mulf %281, %298 : vector<16x32xf32>
    %300 = arith.truncf %299 : vector<16x32xf32> to vector<16x32xbf16>
    %301 = arith.truncf %297 : vector<16x16xf32> to vector<16x16xbf16>
    %cst_99 = arith.constant dense<0.000000e+00> : vector<16x32xf32>
    %302 = tpu.matmul %301, %300, %cst_99 {dimension_numbers = #tpu.dot_dimension_numbers<[1], [0], [0], [1], [0, 0, 1, 1], [], []>} : vector<16x16xbf16>, vector<16x32xbf16>, vector<16x32xf32> -> vector<16x32xf32>
    %303 = vector.broadcast %36 : vector<1x32xf32> to vector<16x32xf32>
    %304 = arith.mulf %269, %303 : vector<16x32xf32>
    %305 = arith.truncf %304 : vector<16x32xf32> to vector<16x32xbf16>
    %cst_100 = arith.constant dense<0.000000e+00> : vector<16x16xf32>
    %306 = tpu.matmul %305, %282, %cst_100 {dimension_numbers = #tpu.dot_dimension_numbers<[1], [1], [0], [0], [0, 0, 1, 0], [], []>} : vector<16x32xbf16>, vector<16x32xbf16>, vector<16x16xf32> -> vector<16x16xf32>
    %307 = arith.addf %306, %21 : vector<16x16xf32>
    %cst_101 = arith.constant dense<0xFF800000> : vector<16xf32>
    %308 = vector.multi_reduction <maximumf>, %307, %cst_101 [1] : vector<16x16xf32> to vector<16xf32>
    %309 = vector.shape_cast %308 : vector<16xf32> to vector<16x1xf32>
    %310 = vector.broadcast %309 : vector<16x1xf32> to vector<16x16xf32>
    %311 = arith.subf %307, %310 : vector<16x16xf32>
    %312 = math.exp %311 : vector<16x16xf32>
    %cst_102 = arith.constant dense<0.000000e+00> : vector<16xf32>
    %313 = vector.multi_reduction <add>, %312, %cst_102 [1] : vector<16x16xf32> to vector<16xf32>
    %314 = vector.shape_cast %313 : vector<16xf32> to vector<16x1xf32>
    %315 = tpu.reciprocal %314 {approx = true} : vector<16x1xf32> -> vector<16x1xf32>
    %316 = vector.broadcast %315 : vector<16x1xf32> to vector<16x16xf32>
    %317 = arith.mulf %312, %316 : vector<16x16xf32>
    %318 = vector.broadcast %36 : vector<1x32xf32> to vector<16x32xf32>
    %319 = arith.mulf %281, %318 : vector<16x32xf32>
    %320 = arith.truncf %319 : vector<16x32xf32> to vector<16x32xbf16>
    %321 = arith.truncf %317 : vector<16x16xf32> to vector<16x16xbf16>
    %cst_103 = arith.constant dense<0.000000e+00> : vector<16x32xf32>
    %322 = tpu.matmul %321, %320, %cst_103 {dimension_numbers = #tpu.dot_dimension_numbers<[1], [0], [0], [1], [0, 0, 1, 1], [], []>} : vector<16x16xbf16>, vector<16x32xbf16>, vector<16x32xf32> -> vector<16x32xf32>
    %323 = arith.addf %302, %322 : vector<16x32xf32>
    %324 = vector.broadcast %43 : vector<1x32xf32> to vector<16x32xf32>
    %325 = arith.mulf %269, %324 : vector<16x32xf32>
    %326 = arith.truncf %325 : vector<16x32xf32> to vector<16x32xbf16>
    %cst_104 = arith.constant dense<0.000000e+00> : vector<16x16xf32>
    %327 = tpu.matmul %326, %282, %cst_104 {dimension_numbers = #tpu.dot_dimension_numbers<[1], [1], [0], [0], [0, 0, 1, 0], [], []>} : vector<16x32xbf16>, vector<16x32xbf16>, vector<16x16xf32> -> vector<16x16xf32>
    %328 = arith.addf %327, %21 : vector<16x16xf32>
    %cst_105 = arith.constant dense<0xFF800000> : vector<16xf32>
    %329 = vector.multi_reduction <maximumf>, %328, %cst_105 [1] : vector<16x16xf32> to vector<16xf32>
    %330 = vector.shape_cast %329 : vector<16xf32> to vector<16x1xf32>
    %331 = vector.broadcast %330 : vector<16x1xf32> to vector<16x16xf32>
    %332 = arith.subf %328, %331 : vector<16x16xf32>
    %333 = math.exp %332 : vector<16x16xf32>
    %cst_106 = arith.constant dense<0.000000e+00> : vector<16xf32>
    %334 = vector.multi_reduction <add>, %333, %cst_106 [1] : vector<16x16xf32> to vector<16xf32>
    %335 = vector.shape_cast %334 : vector<16xf32> to vector<16x1xf32>
    %336 = tpu.reciprocal %335 {approx = true} : vector<16x1xf32> -> vector<16x1xf32>
    %337 = vector.broadcast %336 : vector<16x1xf32> to vector<16x16xf32>
    %338 = arith.mulf %333, %337 : vector<16x16xf32>
    %339 = vector.broadcast %43 : vector<1x32xf32> to vector<16x32xf32>
    %340 = arith.mulf %281, %339 : vector<16x32xf32>
    %341 = arith.truncf %340 : vector<16x32xf32> to vector<16x32xbf16>
    %342 = arith.truncf %338 : vector<16x16xf32> to vector<16x16xbf16>
    %cst_107 = arith.constant dense<0.000000e+00> : vector<16x32xf32>
    %343 = tpu.matmul %342, %341, %cst_107 {dimension_numbers = #tpu.dot_dimension_numbers<[1], [0], [0], [1], [0, 0, 1, 1], [], []>} : vector<16x16xbf16>, vector<16x32xbf16>, vector<16x32xf32> -> vector<16x32xf32>
    %344 = arith.addf %323, %343 : vector<16x32xf32>
    %345 = vector.broadcast %50 : vector<1x32xf32> to vector<16x32xf32>
    %346 = arith.mulf %269, %345 : vector<16x32xf32>
    %347 = arith.truncf %346 : vector<16x32xf32> to vector<16x32xbf16>
    %cst_108 = arith.constant dense<0.000000e+00> : vector<16x16xf32>
    %348 = tpu.matmul %347, %282, %cst_108 {dimension_numbers = #tpu.dot_dimension_numbers<[1], [1], [0], [0], [0, 0, 1, 0], [], []>} : vector<16x32xbf16>, vector<16x32xbf16>, vector<16x16xf32> -> vector<16x16xf32>
    %349 = arith.addf %348, %21 : vector<16x16xf32>
    %cst_109 = arith.constant dense<0xFF800000> : vector<16xf32>
    %350 = vector.multi_reduction <maximumf>, %349, %cst_109 [1] : vector<16x16xf32> to vector<16xf32>
    %351 = vector.shape_cast %350 : vector<16xf32> to vector<16x1xf32>
    %352 = vector.broadcast %351 : vector<16x1xf32> to vector<16x16xf32>
    %353 = arith.subf %349, %352 : vector<16x16xf32>
    %354 = math.exp %353 : vector<16x16xf32>
    %cst_110 = arith.constant dense<0.000000e+00> : vector<16xf32>
    %355 = vector.multi_reduction <add>, %354, %cst_110 [1] : vector<16x16xf32> to vector<16xf32>
    %356 = vector.shape_cast %355 : vector<16xf32> to vector<16x1xf32>
    %357 = tpu.reciprocal %356 {approx = true} : vector<16x1xf32> -> vector<16x1xf32>
    %358 = vector.broadcast %357 : vector<16x1xf32> to vector<16x16xf32>
    %359 = arith.mulf %354, %358 : vector<16x16xf32>
    %360 = vector.broadcast %50 : vector<1x32xf32> to vector<16x32xf32>
    %361 = arith.mulf %281, %360 : vector<16x32xf32>
    %362 = arith.truncf %361 : vector<16x32xf32> to vector<16x32xbf16>
    %363 = arith.truncf %359 : vector<16x16xf32> to vector<16x16xbf16>
    %cst_111 = arith.constant dense<0.000000e+00> : vector<16x32xf32>
    %364 = tpu.matmul %363, %362, %cst_111 {dimension_numbers = #tpu.dot_dimension_numbers<[1], [0], [0], [1], [0, 0, 1, 1], [], []>} : vector<16x16xbf16>, vector<16x32xbf16>, vector<16x32xf32> -> vector<16x32xf32>
    %365 = arith.addf %344, %364 : vector<16x32xf32>
    %366 = arith.truncf %365 : vector<16x32xf32> to vector<16x32xbf16>
    %c1_112 = arith.constant 1 : index
    %c0_113 = arith.constant 0 : index
    %c0_114 = arith.constant 0 : index
    %367 = vector.load %arg5[%c1_112, %c0_113, %c0_114] : memref<2x32x32xbf16, #tpu.memory_space<vmem>>, vector<1x32x32xbf16>
    %368 = vector.shape_cast %367 : vector<1x32x32xbf16> to vector<32x32xbf16>
    %cst_115 = arith.constant dense<0.000000e+00> : vector<16x32xf32>
    %369 = tpu.matmul %366, %368, %cst_115 {dimension_numbers = #tpu.dot_dimension_numbers<[1], [0], [0], [1], [0, 0, 1, 1], [], []>} : vector<16x32xbf16>, vector<32x32xbf16>, vector<16x32xf32> -> vector<16x32xf32>
    %c16 = arith.constant 16 : index
    %c0_116 = arith.constant 0 : index
    %370 = vector.load %arg3[%c16, %c0_116] : memref<24x128xf32, #tpu.memory_space<vmem>>, vector<1x32xf32>
    %371 = vector.broadcast %370 : vector<1x32xf32> to vector<16x32xf32>
    %372 = arith.addf %369, %371 : vector<16x32xf32>
    %373 = arith.addf %372, %262 : vector<16x32xf32>
    %c17 = arith.constant 17 : index
    %c0_117 = arith.constant 0 : index
    %374 = vector.load %arg3[%c17, %c0_117] : memref<24x128xf32, #tpu.memory_space<vmem>>, vector<1x32xf32>
    %c18 = arith.constant 18 : index
    %c0_118 = arith.constant 0 : index
    %375 = vector.load %arg3[%c18, %c0_118] : memref<24x128xf32, #tpu.memory_space<vmem>>, vector<1x32xf32>
    %cst_119 = arith.constant dense<0.000000e+00> : vector<16xf32>
    %376 = vector.multi_reduction <add>, %373, %cst_119 [1] : vector<16x32xf32> to vector<16xf32>
    %377 = vector.shape_cast %376 : vector<16xf32> to vector<16x1xf32>
    %cst_120 = arith.constant 3.200000e+01 : f32
    %378 = vector.broadcast %cst_120 : f32 to vector<16x1xf32>
    %379 = arith.divf %377, %378 : vector<16x1xf32>
    %380 = vector.broadcast %379 : vector<16x1xf32> to vector<16x32xf32>
    %381 = arith.subf %373, %380 : vector<16x32xf32>
    %382 = arith.mulf %381, %381 : vector<16x32xf32>
    %cst_121 = arith.constant dense<0.000000e+00> : vector<16xf32>
    %383 = vector.multi_reduction <add>, %382, %cst_121 [1] : vector<16x32xf32> to vector<16xf32>
    %384 = vector.shape_cast %383 : vector<16xf32> to vector<16x1xf32>
    %cst_122 = arith.constant 3.200000e+01 : f32
    %385 = vector.broadcast %cst_122 : f32 to vector<16x1xf32>
    %386 = arith.divf %384, %385 : vector<16x1xf32>
    %387 = vector.broadcast %379 : vector<16x1xf32> to vector<16x32xf32>
    %388 = arith.subf %373, %387 : vector<16x32xf32>
    %cst_123 = arith.constant 9.99999974E-6 : f32
    %389 = vector.broadcast %cst_123 : f32 to vector<16x1xf32>
    %390 = arith.addf %386, %389 : vector<16x1xf32>
    %391 = math.rsqrt %390 : vector<16x1xf32>
    %392 = vector.broadcast %391 : vector<16x1xf32> to vector<16x32xf32>
    %393 = arith.mulf %388, %392 : vector<16x32xf32>
    %394 = vector.broadcast %374 : vector<1x32xf32> to vector<16x32xf32>
    %395 = arith.mulf %393, %394 : vector<16x32xf32>
    %396 = vector.broadcast %375 : vector<1x32xf32> to vector<16x32xf32>
    %397 = arith.addf %395, %396 : vector<16x32xf32>
    %398 = arith.truncf %397 : vector<16x32xf32> to vector<16x32xbf16>
    %c1_124 = arith.constant 1 : index
    %c0_125 = arith.constant 0 : index
    %c0_126 = arith.constant 0 : index
    %399 = vector.load %arg6[%c1_124, %c0_125, %c0_126] : memref<2x32x64xbf16, #tpu.memory_space<vmem>>, vector<1x32x64xbf16>
    %400 = vector.shape_cast %399 : vector<1x32x64xbf16> to vector<32x64xbf16>
    %cst_127 = arith.constant dense<0.000000e+00> : vector<16x64xf32>
    %401 = tpu.matmul %398, %400, %cst_127 {dimension_numbers = #tpu.dot_dimension_numbers<[1], [0], [0], [1], [0, 0, 1, 1], [], []>} : vector<16x32xbf16>, vector<32x64xbf16>, vector<16x64xf32> -> vector<16x64xf32>
    %c19 = arith.constant 19 : index
    %c0_128 = arith.constant 0 : index
    %402 = vector.load %arg3[%c19, %c0_128] : memref<24x128xf32, #tpu.memory_space<vmem>>, vector<1x64xf32>
    %403 = vector.broadcast %402 : vector<1x64xf32> to vector<16x64xf32>
    %404 = arith.addf %401, %403 : vector<16x64xf32>
    %405 = arith.mulf %404, %404 : vector<16x64xf32>
    %406 = arith.mulf %404, %405 : vector<16x64xf32>
    %cst_129 = arith.constant 4.471500e-02 : f32
    %407 = vector.broadcast %cst_129 : f32 to vector<16x64xf32>
    %408 = arith.mulf %407, %406 : vector<16x64xf32>
    %409 = arith.addf %404, %408 : vector<16x64xf32>
    %cst_130 = arith.constant 0.797884583 : f32
    %410 = vector.broadcast %cst_130 : f32 to vector<16x64xf32>
    %411 = arith.mulf %410, %409 : vector<16x64xf32>
    %412 = math.tanh %411 : vector<16x64xf32>
    %cst_131 = arith.constant 1.000000e+00 : f32
    %413 = vector.broadcast %cst_131 : f32 to vector<16x64xf32>
    %414 = arith.addf %413, %412 : vector<16x64xf32>
    %cst_132 = arith.constant 5.000000e-01 : f32
    %415 = vector.broadcast %cst_132 : f32 to vector<16x64xf32>
    %416 = arith.mulf %415, %414 : vector<16x64xf32>
    %417 = arith.mulf %404, %416 : vector<16x64xf32>
    %418 = arith.truncf %417 : vector<16x64xf32> to vector<16x64xbf16>
    %c1_133 = arith.constant 1 : index
    %c0_134 = arith.constant 0 : index
    %c0_135 = arith.constant 0 : index
    %419 = vector.load %arg7[%c1_133, %c0_134, %c0_135] : memref<2x64x32xbf16, #tpu.memory_space<vmem>>, vector<1x64x32xbf16>
    %420 = vector.shape_cast %419 : vector<1x64x32xbf16> to vector<64x32xbf16>
    %cst_136 = arith.constant dense<0.000000e+00> : vector<16x32xf32>
    %421 = tpu.matmul %418, %420, %cst_136 {dimension_numbers = #tpu.dot_dimension_numbers<[1], [0], [0], [1], [0, 0, 1, 1], [], []>} : vector<16x64xbf16>, vector<64x32xbf16>, vector<16x32xf32> -> vector<16x32xf32>
    %c20 = arith.constant 20 : index
    %c0_137 = arith.constant 0 : index
    %422 = vector.load %arg3[%c20, %c0_137] : memref<24x128xf32, #tpu.memory_space<vmem>>, vector<1x32xf32>
    %423 = vector.broadcast %422 : vector<1x32xf32> to vector<16x32xf32>
    %424 = arith.addf %421, %423 : vector<16x32xf32>
    %425 = arith.addf %424, %397 : vector<16x32xf32>
    %c21 = arith.constant 21 : index
    %c0_138 = arith.constant 0 : index
    %426 = vector.load %arg3[%c21, %c0_138] : memref<24x128xf32, #tpu.memory_space<vmem>>, vector<1x32xf32>
    %c22 = arith.constant 22 : index
    %c0_139 = arith.constant 0 : index
    %427 = vector.load %arg3[%c22, %c0_139] : memref<24x128xf32, #tpu.memory_space<vmem>>, vector<1x32xf32>
    %cst_140 = arith.constant dense<0.000000e+00> : vector<16xf32>
    %428 = vector.multi_reduction <add>, %425, %cst_140 [1] : vector<16x32xf32> to vector<16xf32>
    %429 = vector.shape_cast %428 : vector<16xf32> to vector<16x1xf32>
    %cst_141 = arith.constant 3.200000e+01 : f32
    %430 = vector.broadcast %cst_141 : f32 to vector<16x1xf32>
    %431 = arith.divf %429, %430 : vector<16x1xf32>
    %432 = vector.broadcast %431 : vector<16x1xf32> to vector<16x32xf32>
    %433 = arith.subf %425, %432 : vector<16x32xf32>
    %434 = arith.mulf %433, %433 : vector<16x32xf32>
    %cst_142 = arith.constant dense<0.000000e+00> : vector<16xf32>
    %435 = vector.multi_reduction <add>, %434, %cst_142 [1] : vector<16x32xf32> to vector<16xf32>
    %436 = vector.shape_cast %435 : vector<16xf32> to vector<16x1xf32>
    %cst_143 = arith.constant 3.200000e+01 : f32
    %437 = vector.broadcast %cst_143 : f32 to vector<16x1xf32>
    %438 = arith.divf %436, %437 : vector<16x1xf32>
    %439 = vector.broadcast %431 : vector<16x1xf32> to vector<16x32xf32>
    %440 = arith.subf %425, %439 : vector<16x32xf32>
    %cst_144 = arith.constant 9.99999974E-6 : f32
    %441 = vector.broadcast %cst_144 : f32 to vector<16x1xf32>
    %442 = arith.addf %438, %441 : vector<16x1xf32>
    %443 = math.rsqrt %442 : vector<16x1xf32>
    %444 = vector.broadcast %443 : vector<16x1xf32> to vector<16x32xf32>
    %445 = arith.mulf %440, %444 : vector<16x32xf32>
    %446 = vector.broadcast %426 : vector<1x32xf32> to vector<16x32xf32>
    %447 = arith.mulf %445, %446 : vector<16x32xf32>
    %448 = vector.broadcast %427 : vector<1x32xf32> to vector<16x32xf32>
    %449 = arith.addf %447, %448 : vector<16x32xf32>
    %450 = tpu.iota {dimensions = array<i32: 0>} : vector<2x16xi32>
    %451 = tpu.iota {dimensions = array<i32: 1>} : vector<2x16xi32>
    %c8_i32_145 = arith.constant 8 : i32
    %452 = vector.broadcast %c8_i32_145 : i32 to vector<2x16xi32>
    %453 = arith.muli %450, %452 : vector<2x16xi32>
    %454 = arith.cmpi eq, %451, %453 : vector<2x16xi32>
    %455 = arith.extui %454 : vector<2x16xi1> to vector<2x16xi32>
    %456 = arith.sitofp %455 : vector<2x16xi32> to vector<2x16xf32>
    %457 = arith.truncf %456 : vector<2x16xf32> to vector<2x16xbf16>
    %458 = arith.truncf %449 : vector<16x32xf32> to vector<16x32xbf16>
    %cst_146 = arith.constant dense<0.000000e+00> : vector<2x32xf32>
    %459 = tpu.matmul %457, %458, %cst_146 {dimension_numbers = #tpu.dot_dimension_numbers<[1], [0], [0], [1], [0, 0, 1, 1], [], []>} : vector<2x16xbf16>, vector<16x32xbf16>, vector<2x32xf32> -> vector<2x32xf32>
    %c0_147 = arith.constant 0 : index
    %c0_148 = arith.constant 0 : index
    %460 = vector.load %arg8[%c0_147, %c0_148] : memref<36x6xbf16, #tpu.memory_space<vmem>>, vector<36x6xbf16>
    %461 = arith.truncf %459 : vector<2x32xf32> to vector<2x32xbf16>
    %462 = vector.extract_strided_slice %460 {offsets = [0, 0], sizes = [32, 6], strides = [1, 1]} : vector<36x6xbf16> to vector<32x6xbf16>
    %cst_149 = arith.constant dense<0.000000e+00> : vector<2x6xf32>
    %463 = tpu.matmul %461, %462, %cst_149 {dimension_numbers = #tpu.dot_dimension_numbers<[1], [0], [0], [1], [0, 0, 1, 1], [], []>} : vector<2x32xbf16>, vector<32x6xbf16>, vector<2x6xf32> -> vector<2x6xf32>
    %c0_150 = arith.constant 0 : index
    %c0_151 = arith.constant 0 : index
    %464 = vector.load %arg2[%c0_150, %c0_151] : memref<2x4xf32, #tpu.memory_space<vmem>>, vector<2x4xf32>
    %465 = arith.truncf %464 : vector<2x4xf32> to vector<2x4xbf16>
    %466 = vector.extract_strided_slice %460 {offsets = [32, 0], sizes = [4, 6], strides = [1, 1]} : vector<36x6xbf16> to vector<4x6xbf16>
    %cst_152 = arith.constant dense<0.000000e+00> : vector<2x6xf32>
    %467 = tpu.matmul %465, %466, %cst_152 {dimension_numbers = #tpu.dot_dimension_numbers<[1], [0], [0], [1], [0, 0, 1, 1], [], []>} : vector<2x4xbf16>, vector<4x6xbf16>, vector<2x6xf32> -> vector<2x6xf32>
    %468 = arith.addf %463, %467 : vector<2x6xf32>
    %c2_153 = arith.constant 2 : index
    %c0_154 = arith.constant 0 : index
    %469 = vector.load %arg3[%c2_153, %c0_154] : memref<24x128xf32, #tpu.memory_space<vmem>>, vector<1x6xf32>
    %470 = vector.broadcast %469 : vector<1x6xf32> to vector<2x6xf32>
    %471 = arith.addf %468, %470 : vector<2x6xf32>
    %c0_155 = arith.constant 0 : index
    %c0_156 = arith.constant 0 : index
    %472 = vector.load %arg9[%c0_155, %c0_156] : memref<2x6xf32, #tpu.memory_space<vmem>>, vector<2x6xf32>
    tpu.vector_store %arg9[%c0_155, %c0_156], %471 {strides = array<i32>} : memref<2x6xf32, #tpu.memory_space<vmem>>, vector<2x6xf32>,
    return
  }
}

</mosaic_0001>

<llo_original>
// kernel: pragtag_forward.1
$region0: #{pragtag_forward.1}
  #allocation0 [shape = 'u32[]', space=smem, size = 0x4, offset = 0x4, fixed_abs, tag = 'smem constant byte address 0x4 - core index']
  #allocation1 [shape = 'u32[144,128]{1,0:T(1,128)}', space=vmem, size = 0x12000, scoped, tag = 'internal scratch']
  %s0 = inlined_call_operand.vmem [shape: f32[16,32], index: 0, kind: input, shape index: {}]
  %s1 = inlined_call_operand.vmem [shape: f32[1,16], index: 1, kind: input, shape index: {}]
  %s2 = inlined_call_operand.vmem [shape: f32[2,4], index: 2, kind: input, shape index: {}]
  %s3 = inlined_call_operand.vmem [shape: f32[24,128], index: 3, kind: input, shape index: {}]
  %s4 = inlined_call_operand.vmem [shape: bf16[6,32,32], index: 4, kind: input, shape index: {}]
  %s5 = inlined_call_operand.vmem [shape: bf16[2,32,32], index: 5, kind: input, shape index: {}]
  %s6 = inlined_call_operand.vmem [shape: bf16[2,32,64], index: 6, kind: input, shape index: {}]
  %s7 = inlined_call_operand.vmem [shape: bf16[2,64,32], index: 7, kind: input, shape index: {}]
  %s8 = inlined_call_operand.vmem [shape: bf16[36,6], index: 8, kind: input, shape index: {}]
  %s9 = inlined_call_operand.hbm [shape: f32[2,6], index: 9, kind: output, shape index: {}]
  %s10 = sld [smem:[#allocation0]]
  $region46: #{pragtag_forward.1} parent=0
    _
  %s12 = ssub.s32 1, %s10
  %s13 = scalar_select 0, %s12, %s10
  $region1: #{pragtag_forward.1} parent=0
    #allocation2 [shape = 'u8[1024]{0}', space=vmem, size = 0x400, scoped, tag = 'output window, operand 0, single buffered']
    #allocation3 [shape = 's32[1]{0}', space=sflag, size = 0x4, scoped, tag = 'scoped memory for pragtag_forward.1']
    %14 = vsyncpa [#allocation3], 0
    // Predicated region
    $region2: #{pragtag_forward.1} parent=1 // pred_check
      _
    $region3: #{pragtag_forward.1} parent=1 // pred_check_branch
      %16 = sbr.rel (0) target = $region5
    $region4: #{pragtag_forward.1} parent=1 // pred_region
      _
    $region5: #{pragtag_forward.1} parent=1 // pred_fallthru
      _
    // Predicated region
    $region6: #{pragtag_forward.1} parent=1 // pred_check
      _
    $region7: #{pragtag_forward.1} parent=1 // pred_check_branch
      %18 = sbr.rel (0) target = $region9
    $region8: #{pragtag_forward.1} parent=1 // pred_region
      _
    $region9: #{pragtag_forward.1} parent=1 // pred_fallthru
      _
    // Predicated region
    $region10: #{pragtag_forward.1} parent=1 // pred_check
      _
    $region11: #{pragtag_forward.1} parent=1 // pred_check_branch
      %20 = sbr.rel (0) target = $region13
    $region12: #{pragtag_forward.1} parent=1 // pred_region
      _
    $region13: #{pragtag_forward.1} parent=1 // pred_fallthru
      _
    // Predicated region
    $region14: #{pragtag_forward.1} parent=1 // pred_check
      _
    $region15: #{pragtag_forward.1} parent=1 // pred_check_branch
      %22 = sbr.rel (0) target = $region17
    $region16: #{pragtag_forward.1} parent=1 // pred_region
      _
    $region17: #{pragtag_forward.1} parent=1 // pred_fallthru
      _
    // Predicated region
    $region18: #{pragtag_forward.1} parent=1 // pred_check
      _
    $region19: #{pragtag_forward.1} parent=1 // pred_check_branch
      %24 = sbr.rel (0) target = $region21
    $region20: #{pragtag_forward.1} parent=1 // pred_region
      _
    $region21: #{pragtag_forward.1} parent=1 // pred_fallthru
      _
    // Predicated region
    $region22: #{pragtag_forward.1} parent=1 // pred_check
      _
    $region23: #{pragtag_forward.1} parent=1 // pred_check_branch
      %26 = sbr.rel (0) target = $region25
    $region24: #{pragtag_forward.1} parent=1 // pred_region
      _
    $region25: #{pragtag_forward.1} parent=1 // pred_fallthru
      _
    // Predicated region
    $region26: #{pragtag_forward.1} parent=1 // pred_check
      _
    $region27: #{pragtag_forward.1} parent=1 // pred_check_branch
      %28 = sbr.rel (0) target = $region29
    $region28: #{pragtag_forward.1} parent=1 // pred_region
      _
    $region29: #{pragtag_forward.1} parent=1 // pred_fallthru
      _
    // Predicated region
    $region30: #{pragtag_forward.1} parent=1 // pred_check
      _
    $region31: #{pragtag_forward.1} parent=1 // pred_check_branch
      %30 = sbr.rel (0) target = $region33
    $region32: #{pragtag_forward.1} parent=1 // pred_region
      _
    $region33: #{pragtag_forward.1} parent=1 // pred_fallthru
      _
    // Predicated region
    $region34: #{pragtag_forward.1} parent=1 // pred_check
      _
    $region35: #{pragtag_forward.1} parent=1 // pred_check_branch
      %32 = sbr.rel (0) target = $region37
    $region36: #{pragtag_forward.1} parent=1 // pred_region
      _
    $region37: #{pragtag_forward.1} parent=1 // pred_fallthru
      _
    %v34 = vlaneseq
    %v35 = vshrl.u32 %v34, 7
    %v36 = vadd.s32 %v35, 8
    %v37 = vlaneseq
    %v38 = vand.u32 %v37, 127
    %v39 = vmul.u32 %v38, 8
    %vm40 = vcmp.ge.s32.totalorder %v35, %v39
    %vm41 = vcmp.ge.s32.totalorder %v36, %v39
    %v42 = vadd.s32 %v38, 1
    %v43 = vmul.u32 %v42, 8
    %vm44 = vcmp.lt.s32.totalorder %v35, %v43
    %vm45 = vcmp.lt.s32.totalorder %v36, %v43
    %vm46 = vmand %vm40, %vm44
    %vm47 = vmand %vm41, %vm45
    %v48 = vsel %vm46, 1, 0
    %v49 = vsel %vm47, 1, 0
    %v50 = vcvt.s32.f32 %v48
    %v51 = vcvt.s32.f32 %v49
    %v52 = vpack.c.bf16 %v51, %v50
    %vm53 = vcmask 15360
    %v55 = vsel %vm53, %v52, 0
    %57 = vmatprep.subr.bf16.mxu0 0
    %58 = vmatpush1.bf16.xpose.msra.mxu0 %v55
    %59 = vmatprep.subr.bf16.mxu0 0
    %60 = vmatpush1.bf16.xpose.msra.mxu0 0
    %61 = vmatprep.subr.bf16.mxu0 0
    %62 = vmatpush1.bf16.xpose.msra.mxu0 0
    %63 = vmatprep.subr.bf16.mxu0 0
    %64 = vmatpush1.bf16.xpose.msra.mxu0 0
    %65 = vmatprep.subr.bf16.mxu0 0
    %66 = vmatpush1.bf16.xpose.msra.mxu0 0
    %67 = vmatprep.subr.bf16.mxu0 0
    %68 = vmatpush1.bf16.xpose.msra.mxu0 0
    %69 = vmatprep.subr.bf16.mxu0 0
    %70 = vmatpush1.bf16.xpose.msra.mxu0 0
    %71 = vmatprep.subr.bf16.mxu0 0
    %72 = vmatpush1.bf16.xpose.msra.mxu0 0
    %73 = vmatprep.subr.bf16.mxu0 0
    %74 = vmatpush1.bf16.xpose.msra.mxu0 0
    %75 = vmatprep.subr.bf16.mxu0 0
    %76 = vmatpush1.bf16.xpose.msra.mxu0 0
    %77 = vmatprep.subr.bf16.mxu0 0
    %78 = vmatpush1.bf16.xpose.msra.mxu0 0
    %79 = vmatprep.subr.bf16.mxu0 0
    %80 = vmatpush1.bf16.xpose.msra.mxu0 0
    %81 = vmatprep.subr.bf16.mxu0 0
    %82 = vmatpush1.bf16.xpose.msra.mxu0 0
    %83 = vmatprep.subr.bf16.mxu0 0
    %84 = vmatpush1.bf16.xpose.msra.mxu0 0
    %85 = vmatprep.subr.bf16.mxu0 0
    %86 = vmatpush1.bf16.xpose.msra.mxu0 0
    %87 = vmatprep.subr.bf16.mxu0 0
    %88 = vmatpush1.bf16.xpose.msra.mxu0 0
    %89 = vmatprep.mubr.bf16.mxu0 0
    %90 = vmatmul.mubr.bf16.gmra.mrb[0].mxu0 %v55
    %v91 = vpop.f32.mrb[0].mxu0
    %v92 = vadd.f32 0.0, %v91
    %v93 = vpop.f32.mrb[0].mxu0
    %v94 = vpop.f32.mrb[0].mxu0
    %v95 = vadd.f32 0.0, %v94
    %v96 = vpop.f32.mrb[0].mxu0
    %97 = vdwg.mxu0
    %v98 = vld [vmem:[%s1] sm:$0x1]
    %v100 = vlaneseq
    %v101 = vshrl.u32 %v100, 7
    %v102 = vsub.s32 0, %v101
    %v103 = vrot.slane %v98, %v102
    %v105 = vmul.f32 %v92, %v103
    %v106 = vmul.f32 %v95, %v103
    %v107 = vsub.f32 %v105, 1.0
    %v108 = vsub.f32 %v106, 1.0
    %v109 = vmul.f32 %v107, 1e+09
    %v110 = vmul.f32 %v108, 1e+09
    %vm111 = vcmp.ge.s32.totalorder %v38, 0
    %vm112 = vcmp.lt.s32.totalorder %v38, 8
    %vm113 = vmand %vm111, %vm112
    %v114 = vsel %vm113, 1, 0
    %v115 = vcvt.s32.f32 %v114
    %vm116 = vcmp.ge.s32.totalorder %v38, 8
    %vm117 = vcmp.lt.s32.totalorder %v38, 16
    %vm118 = vmand %vm116, %vm117
    %v119 = vsel %vm118, 1, 0
    %v120 = vcvt.s32.f32 %v119
    %vm121 = vcmp.ge.s32.totalorder %v38, 16
    %vm122 = vcmp.lt.s32.totalorder %v38, 24
    %vm123 = vmand %vm121, %vm122
    %v124 = vsel %vm123, 1, 0
    %v125 = vcvt.s32.f32 %v124
    %vm126 = vcmp.ge.s32.totalorder %v38, 24
    %vm127 = vcmp.lt.s32.totalorder %v38, 32
    %vm128 = vmand %vm126, %vm127
    %v129 = vsel %vm128, 1, 0
    %v130 = vcvt.s32.f32 %v129
    %v131 = vld [vmem:[%s0] sm:$0xff]
    %v132 = vld [vmem:[%s0 + $0x8] sm:$0xff]
    %v133 = vld [vmem:[%s3] sm:$0x1]
    %v134 = vld [vmem:[%s3 + $0x1] sm:$0x1]
    %vm135 = vcmask 261120
    %v136 = vsel %vm135, %v131, 0.0
    %137 = vadd.xlane.f32.xlu0 %v136
    %v138 = vpop.xlane.xlu0 %137
    %v139 = vsel %vm135, %v132, 0.0
    %140 = vadd.xlane.f32.xlu0 %v139
    %v141 = vpop.xlane.xlu0 %140
    %v142 = vrcp.pop 32.0
    %v143 = vmul.f32 %v138, %v142
    %v144 = vmul.f32 %v141, %v142
    %v145 = vsub.f32 %v131, %v143
    %v146 = vsub.f32 %v132, %v144
    %v147 = vmul.f32 %v145, %v145
    %v148 = vmul.f32 %v146, %v146
    %v149 = vsel %vm135, %v147, 0.0
    %150 = vadd.xlane.f32.xlu0 %v149
    %v151 = vpop.xlane.xlu0 %150
    %v152 = vsel %vm135, %v148, 0.0
    %153 = vadd.xlane.f32.xlu0 %v152
    %v154 = vpop.xlane.xlu0 %153
    %v155 = vmul.f32 %v151, %v142
    %v156 = vmul.f32 %v154, %v142
    %v157 = vadd.f32 %v155, 1e-05
    %v158 = vadd.f32 %v156, 1e-05
    %v159 = vrsqrt.pop %v157
    %v160 = vrsqrt.pop %v158
    %v161 = vmul.f32 %v145, %v159
    %v162 = vmul.f32 %v146, %v160
    %v163 = vlaneseq
    %v164 = vshrl.u32 %v163, 7
    %v165 = vsub.s32 0, %v164
    %v166 = vrot.slane %v133, %v165
    %v167 = vmul.f32 %v161, %v166
    %v168 = vmul.f32 %v162, %v166
    %v169 = vlaneseq
    %v170 = vshrl.u32 %v169, 7
    %v171 = vsub.s32 0, %v170
    %v172 = vrot.slane %v134, %v171
    %v173 = vadd.f32 %v167, %v172
    %v174 = vadd.f32 %v168, %v172
    %v175 = vpack.c.bf16 %v174, %v173
    %v176 = vld [vmem:[%s4] sm:$0xf]
    %v177 = vld [vmem:[%s4 + $0x4] sm:$0xf]
    %v178 = vld [vmem:[%s4 + $0x8] sm:$0xf]
    %v179 = vld [vmem:[%s4 + $0xc] sm:$0xf]
    %v180 = vld [vmem:[%s3 + $0x3] sm:$0x1]
    %v181 = vlaneseq
    %v182 = vshrl.u32 %v181, 7
    %v183 = vsub.s32 0, %v182
    %v184 = vrot.slane %v180, %v183
    %v189 = vunpack.c.l.b16 %v176
    %v190 = vunpack.c.l.b16 %v177
    %v191 = vunpack.c.l.b16 %v178
    %v192 = vunpack.c.l.b16 %v179
    %v193 = vpack.c.b16 %v190, %v189
    %v194 = vpack.c.b16 %v192, %v191
    %v198 = vsel %vm135, %v175, 0
    %200 = vmatprep.subr.bf16.mxu0 0
    %201 = vmatpush1.bf16.msra.mxu0 %v193
    %202 = vmatprep.subr.bf16.mxu0 0
    %203 = vmatpush1.bf16.msra.mxu0 %v194
    %204 = vmatprep.subr.bf16.mxu0 0
    %205 = vmatpush1.bf16.msra.mxu0 0
    %206 = vmatprep.subr.bf16.mxu0 0
    %207 = vmatpush1.bf16.msra.mxu0 0
    %208 = vmatprep.subr.bf16.mxu0 0
    %209 = vmatpush1.bf16.msra.mxu0 0
    %210 = vmatprep.subr.bf16.mxu0 0
    %211 = vmatpush1.bf16.msra.mxu0 0
    %212 = vmatprep.subr.bf16.mxu0 0
    %213 = vmatpush1.bf16.msra.mxu0 0
    %214 = vmatprep.subr.bf16.mxu0 0
    %215 = vmatpush1.bf16.msra.mxu0 0
    %216 = vmatprep.subr.bf16.mxu0 0
    %217 = vmatpush1.bf16.msra.mxu0 0
    %218 = vmatprep.subr.bf16.mxu0 0
    %219 = vmatpush1.bf16.msra.mxu0 0
    %220 = vmatprep.subr.bf16.mxu0 0
    %221 = vmatpush1.bf16.msra.mxu0 0
    %222 = vmatprep.subr.bf16.mxu0 0
    %223 = vmatpush1.bf16.msra.mxu0 0
    %224 = vmatprep.subr.bf16.mxu0 0
    %225 = vmatpush1.bf16.msra.mxu0 0
    %226 = vmatprep.subr.bf16.mxu0 0
    %227 = vmatpush1.bf16.msra.mxu0 0
    %228 = vmatprep.subr.bf16.mxu0 0
    %229 = vmatpush1.bf16.msra.mxu0 0
    %230 = vmatprep.subr.bf16.mxu0 0
    %231 = vmatpush1.bf16.msra.mxu0 0
    %232 = vmatprep.mubr.bf16.mxu0 0
    %233 = vmatmul.mubr.bf16.gmra.mrb[0].mxu0 %v198
    %v234 = vpop.f32.mrb[0].mxu0
    %v235 = vadd.f32 %v184, %v234
    %v236 = vpop.f32.mrb[0].mxu0
    %v237 = vpop.f32.mrb[0].mxu0
    %v238 = vadd.f32 %v184, %v237
    %v239 = vpop.f32.mrb[0].mxu0
    %240 = vdwg.mxu0
    %s241 = scalar_lea.vmem %s4, 16
    %v242 = vld [vmem:[%s241] sm:$0xf]
    %v243 = vld [vmem:[%s241 + $0x4] sm:$0xf]
    %v244 = vld [vmem:[%s241 + $0x8] sm:$0xf]
    %v245 = vld [vmem:[%s241 + $0xc] sm:$0xf]
    %v246 = vld [vmem:[%s3 + $0x4] sm:$0x1]
    %v247 = vlaneseq
    %v248 = vshrl.u32 %v247, 7
    %v249 = vsub.s32 0, %v248
    %v250 = vrot.slane %v246, %v249
    %v255 = vunpack.c.l.b16 %v242
    %v256 = vunpack.c.l.b16 %v243
    %v257 = vunpack.c.l.b16 %v244
    %v258 = vunpack.c.l.b16 %v245
    %v259 = vpack.c.b16 %v256, %v255
    %v260 = vpack.c.b16 %v258, %v257
    %263 = vmatprep.subr.bf16.mxu0 0
    %264 = vmatpush1.bf16.msra.mxu0 %v259
    %265 = vmatprep.subr.bf16.mxu0 0
    %266 = vmatpush1.bf16.msra.mxu0 %v260
    %267 = vmatprep.subr.bf16.mxu0 0
    %268 = vmatpush1.bf16.msra.mxu0 0
    %269 = vmatprep.subr.bf16.mxu0 0
    %270 = vmatpush1.bf16.msra.mxu0 0
    %271 = vmatprep.subr.bf16.mxu0 0
    %272 = vmatpush1.bf16.msra.mxu0 0
    %273 = vmatprep.subr.bf16.mxu0 0
    %274 = vmatpush1.bf16.msra.mxu0 0
    %275 = vmatprep.subr.bf16.mxu0 0
    %276 = vmatpush1.bf16.msra.mxu0 0
    %277 = vmatprep.subr.bf16.mxu0 0
    %278 = vmatpush1.bf16.msra.mxu0 0
    %279 = vmatprep.subr.bf16.mxu0 0
    %280 = vmatpush1.bf16.msra.mxu0 0
    %281 = vmatprep.subr.bf16.mxu0 0
    %282 = vmatpush1.bf16.msra.mxu0 0
    %283 = vmatprep.subr.bf16.mxu0 0
    %284 = vmatpush1.bf16.msra.mxu0 0
    %285 = vmatprep.subr.bf16.mxu0 0
    %286 = vmatpush1.bf16.msra.mxu0 0
    %287 = vmatprep.subr.bf16.mxu0 0
    %288 = vmatpush1.bf16.msra.mxu0 0
    %289 = vmatprep.subr.bf16.mxu0 0
    %290 = vmatpush1.bf16.msra.mxu0 0
    %291 = vmatprep.subr.bf16.mxu0 0
    %292 = vmatpush1.bf16.msra.mxu0 0
    %293 = vmatprep.subr.bf16.mxu0 0
    %294 = vmatpush1.bf16.msra.mxu0 0
    %295 = vmatprep.mubr.bf16.mxu0 0
    %296 = vmatmul.mubr.bf16.gmra.mrb[0].mxu0 %v198
    %v297 = vpop.f32.mrb[0].mxu0
    %v298 = vadd.f32 %v250, %v297
    %v299 = vpop.f32.mrb[0].mxu0
    %v300 = vpop.f32.mrb[0].mxu0
    %v301 = vadd.f32 %v250, %v300
    %v302 = vpop.f32.mrb[0].mxu0
    %303 = vdwg.mxu0
    %s304 = scalar_lea.vmem %s4, 32
    %v305 = vld [vmem:[%s304] sm:$0xf]
    %v306 = vld [vmem:[%s304 + $0x4] sm:$0xf]
    %v307 = vld [vmem:[%s304 + $0x8] sm:$0xf]
    %v308 = vld [vmem:[%s304 + $0xc] sm:$0xf]
    %v309 = vld [vmem:[%s3 + $0x5] sm:$0x1]
    %v310 = vlaneseq
    %v311 = vshrl.u32 %v310, 7
    %v312 = vsub.s32 0, %v311
    %v313 = vrot.slane %v309, %v312
    %v318 = vunpack.c.l.b16 %v305
    %v319 = vunpack.c.l.b16 %v306
    %v320 = vunpack.c.l.b16 %v307
    %v321 = vunpack.c.l.b16 %v308
    %v322 = vpack.c.b16 %v319, %v318
    %v323 = vpack.c.b16 %v321, %v320
    %326 = vmatprep.subr.bf16.mxu0 0
    %327 = vmatpush1.bf16.msra.mxu0 %v322
    %328 = vmatprep.subr.bf16.mxu0 0
    %329 = vmatpush1.bf16.msra.mxu0 %v323
    %330 = vmatprep.subr.bf16.mxu0 0
    %331 = vmatpush1.bf16.msra.mxu0 0
    %332 = vmatprep.subr.bf16.mxu0 0
    %333 = vmatpush1.bf16.msra.mxu0 0
    %334 = vmatprep.subr.bf16.mxu0 0
    %335 = vmatpush1.bf16.msra.mxu0 0
    %336 = vmatprep.subr.bf16.mxu0 0
    %337 = vmatpush1.bf16.msra.mxu0 0
    %338 = vmatprep.subr.bf16.mxu0 0
    %339 = vmatpush1.bf16.msra.mxu0 0
    %340 = vmatprep.subr.bf16.mxu0 0
    %341 = vmatpush1.bf16.msra.mxu0 0
    %342 = vmatprep.subr.bf16.mxu0 0
    %343 = vmatpush1.bf16.msra.mxu0 0
    %344 = vmatprep.subr.bf16.mxu0 0
    %345 = vmatpush1.bf16.msra.mxu0 0
    %346 = vmatprep.subr.bf16.mxu0 0
    %347 = vmatpush1.bf16.msra.mxu0 0
    %348 = vmatprep.subr.bf16.mxu0 0
    %349 = vmatpush1.bf16.msra.mxu0 0
    %350 = vmatprep.subr.bf16.mxu0 0
    %351 = vmatpush1.bf16.msra.mxu0 0
    %352 = vmatprep.subr.bf16.mxu0 0
    %353 = vmatpush1.bf16.msra.mxu0 0
    %354 = vmatprep.subr.bf16.mxu0 0
    %355 = vmatpush1.bf16.msra.mxu0 0
    %356 = vmatprep.subr.bf16.mxu0 0
    %357 = vmatpush1.bf16.msra.mxu0 0
    %358 = vmatprep.mubr.bf16.mxu0 0
    %359 = vmatmul.mubr.bf16.gmra.mrb[0].mxu0 %v198
    %v360 = vpop.f32.mrb[0].mxu0
    %v361 = vadd.f32 %v313, %v360
    %v362 = vpop.f32.mrb[0].mxu0
    %v363 = vpop.f32.mrb[0].mxu0
    %v364 = vadd.f32 %v313, %v363
    %v365 = vpop.f32.mrb[0].mxu0
    %366 = vdwg.mxu0
    %v367 = vpack.c.bf16 %v301, %v298
    %v368 = vmul.f32 %v235, %v115
    %v369 = vmul.f32 %v238, %v115
    %v370 = vpack.c.bf16 %v369, %v368
    %v372 = vsel %vm135, %v370, 0
    %v375 = vsel %vm135, %v367, 0
    %377 = vmatprep.subr.bf16.mxu0 0
    %378 = vmatpush1.bf16.xpose.msra.mxu0 %v375
    %379 = vmatprep.subr.bf16.mxu0 0
    %380 = vmatpush1.bf16.xpose.msra.mxu0 0
    %381 = vmatprep.subr.bf16.mxu0 0
    %382 = vmatpush1.bf16.xpose.msra.mxu0 0
    %383 = vmatprep.subr.bf16.mxu0 0
    %384 = vmatpush1.bf16.xpose.msra.mxu0 0
    %385 = vmatprep.subr.bf16.mxu0 0
    %386 = vmatpush1.bf16.xpose.msra.mxu0 0
    %387 = vmatprep.subr.bf16.mxu0 0
    %388 = vmatpush1.bf16.xpose.msra.mxu0 0
    %389 = vmatprep.subr.bf16.mxu0 0
    %390 = vmatpush1.bf16.xpose.msra.mxu0 0
    %391 = vmatprep.subr.bf16.mxu0 0
    %392 = vmatpush1.bf16.xpose.msra.mxu0 0
    %393 = vmatprep.subr.bf16.mxu0 0
    %394 = vmatpush1.bf16.xpose.msra.mxu0 0
    %395 = vmatprep.subr.bf16.mxu0 0
    %396 = vmatpush1.bf16.xpose.msra.mxu0 0
    %397 = vmatprep.subr.bf16.mxu0 0
    %398 = vmatpush1.bf16.xpose.msra.mxu0 0
    %399 = vmatprep.subr.bf16.mxu0 0
    %400 = vmatpush1.bf16.xpose.msra.mxu0 0
    %401 = vmatprep.subr.bf16.mxu0 0
    %402 = vmatpush1.bf16.xpose.msra.mxu0 0
    %403 = vmatprep.subr.bf16.mxu0 0
    %404 = vmatpush1.bf16.xpose.msra.mxu0 0
    %405 = vmatprep.subr.bf16.mxu0 0
    %406 = vmatpush1.bf16.xpose.msra.mxu0 0
    %407 = vmatprep.subr.bf16.mxu0 0
    %408 = vmatpush1.bf16.xpose.msra.mxu0 0
    %409 = vmatprep.mubr.bf16.mxu0 0
    %410 = vmatmul.mubr.bf16.gmra.mrb[0].mxu0 %v372
    %v411 = vpop.f32.mrb[0].mxu0
    %v412 = vadd.f32 %v109, %v411
    %v413 = vpop.f32.mrb[0].mxu0
    %v414 = vpop.f32.mrb[0].mxu0
    %v415 = vadd.f32 %v110, %v414
    %v416 = vpop.f32.mrb[0].mxu0
    %417 = vdwg.mxu0
    %vm418 = vcmask 130048
    %v419 = vsel %vm418, %v412, -inf
    %420 = vmax.xlane.f32.xlu0 %v419
    %v421 = vpop.xlane.xlu0 %420
    %v422 = vsel %vm418, %v415, -inf
    %423 = vmax.xlane.f32.xlu0 %v422
    %v424 = vpop.xlane.xlu0 %423
    %v425 = vsub.f32 %v412, %v421
    %v426 = vsub.f32 %v415, %v424
    %v427 = vmul.f32 %v425, 1.442695
    %v428 = vpow.pop %v427
    %v429 = vmul.f32 %v426, 1.442695
    %v430 = vpow.pop %v429
    %v431 = vsel %vm418, %v428, 0.0
    %432 = vadd.xlane.f32.xlu0 %v431
    %v433 = vpop.xlane.xlu0 %432
    %v434 = vsel %vm418, %v430, 0.0
    %435 = vadd.xlane.f32.xlu0 %v434
    %v436 = vpop.xlane.xlu0 %435
    %v437 = vrcp.pop %v433
    %v438 = vrcp.pop %v436
    %v439 = vmul.f32 %v428, %v437
    %v440 = vmul.f32 %v430, %v438
    %v441 = vmul.f32 %v361, %v115
    %v442 = vmul.f32 %v364, %v115
    %v443 = vpack.c.bf16 %v442, %v441
    %v444 = vpack.c.bf16 %v440, %v439
    %v445 = vmul.f32 %v235, %v120
    %v446 = vmul.f32 %v238, %v120
    %v447 = vpack.c.bf16 %v446, %v445
    %v449 = vsel %vm135, %v447, 0
    %451 = vmatprep.subr.bf16.mxu0 0
    %452 = vmatpush1.bf16.xpose.msra.mxu0 %v375
    %453 = vmatprep.subr.bf16.mxu0 0
    %454 = vmatpush1.bf16.xpose.msra.mxu0 0
    %455 = vmatprep.subr.bf16.mxu0 0
    %456 = vmatpush1.bf16.xpose.msra.mxu0 0
    %457 = vmatprep.subr.bf16.mxu0 0
    %458 = vmatpush1.bf16.xpose.msra.mxu0 0
    %459 = vmatprep.subr.bf16.mxu0 0
    %460 = vmatpush1.bf16.xpose.msra.mxu0 0
    %461 = vmatprep.subr.bf16.mxu0 0
    %462 = vmatpush1.bf16.xpose.msra.mxu0 0
    %463 = vmatprep.subr.bf16.mxu0 0
    %464 = vmatpush1.bf16.xpose.msra.mxu0 0
    %465 = vmatprep.subr.bf16.mxu0 0
    %466 = vmatpush1.bf16.xpose.msra.mxu0 0
    %467 = vmatprep.subr.bf16.mxu0 0
    %468 = vmatpush1.bf16.xpose.msra.mxu0 0
    %469 = vmatprep.subr.bf16.mxu0 0
    %470 = vmatpush1.bf16.xpose.msra.mxu0 0
    %471 = vmatprep.subr.bf16.mxu0 0
    %472 = vmatpush1.bf16.xpose.msra.mxu0 0
    %473 = vmatprep.subr.bf16.mxu0 0
    %474 = vmatpush1.bf16.xpose.msra.mxu0 0
    %475 = vmatprep.subr.bf16.mxu0 0
    %476 = vmatpush1.bf16.xpose.msra.mxu0 0
    %477 = vmatprep.subr.bf16.mxu0 0
    %478 = vmatpush1.bf16.xpose.msra.mxu0 0
    %479 = vmatprep.subr.bf16.mxu0 0
    %480 = vmatpush1.bf16.xpose.msra.mxu0 0
    %481 = vmatprep.subr.bf16.mxu0 0
    %482 = vmatpush1.bf16.xpose.msra.mxu0 0
    %483 = vmatprep.mubr.bf16.mxu0 0
    %484 = vmatmul.mubr.bf16.gmra.mrb[0].mxu0 %v449
    %v485 = vpop.f32.mrb[0].mxu0
    %v486 = vadd.f32 %v109, %v485
    %v487 = vpop.f32.mrb[0].mxu0
    %v488 = vpop.f32.mrb[0].mxu0
    %v489 = vadd.f32 %v110, %v488
    %v490 = vpop.f32.mrb[0].mxu0
    %491 = vdwg.mxu0
    %v492 = vsel %vm418, %v486, -inf
    %493 = vmax.xlane.f32.xlu0 %v492
    %v494 = vpop.xlane.xlu0 %493
    %v495 = vsel %vm418, %v489, -inf
    %496 = vmax.xlane.f32.xlu0 %v495
    %v497 = vpop.xlane.xlu0 %496
    %v498 = vsub.f32 %v486, %v494
    %v499 = vsub.f32 %v489, %v497
    %v500 = vmul.f32 %v498, 1.442695
    %v501 = vpow.pop %v500
    %v502 = vmul.f32 %v499, 1.442695
    %v503 = vpow.pop %v502
    %v504 = vsel %vm418, %v501, 0.0
    %505 = vadd.xlane.f32.xlu0 %v504
    %v506 = vpop.xlane.xlu0 %505
    %v507 = vsel %vm418, %v503, 0.0
    %508 = vadd.xlane.f32.xlu0 %v507
    %v509 = vpop.xlane.xlu0 %508
    %v510 = vrcp.pop %v506
    %v511 = vrcp.pop %v509
    %v512 = vmul.f32 %v501, %v510
    %v513 = vmul.f32 %v503, %v511
    %v514 = vmul.f32 %v361, %v120
    %v515 = vmul.f32 %v364, %v120
    %v516 = vpack.c.bf16 %v515, %v514
    %v517 = vpack.c.bf16 %v513, %v512
    %v519 = vsel %vm418, %v517, 0
    %521 = vmatprep.subr.bf16.mxu0 0
    %522 = vmatpush1.bf16.msra.mxu0 %v516
    %523 = vmatprep.subr.bf16.mxu0 0
    %524 = vmatpush1.bf16.msra.mxu0 0
    %525 = vmatprep.subr.bf16.mxu0 0
    %526 = vmatpush1.bf16.msra.mxu0 0
    %527 = vmatprep.subr.bf16.mxu0 0
    %528 = vmatpush1.bf16.msra.mxu0 0
    %529 = vmatprep.subr.bf16.mxu0 0
    %530 = vmatpush1.bf16.msra.mxu0 0
    %531 = vmatprep.subr.bf16.mxu0 0
    %532 = vmatpush1.bf16.msra.mxu0 0
    %533 = vmatprep.subr.bf16.mxu0 0
    %534 = vmatpush1.bf16.msra.mxu0 0
    %535 = vmatprep.subr.bf16.mxu0 0
    %536 = vmatpush1.bf16.msra.mxu0 0
    %537 = vmatprep.subr.bf16.mxu0 0
    %538 = vmatpush1.bf16.msra.mxu0 0
    %539 = vmatprep.subr.bf16.mxu0 0
    %540 = vmatpush1.bf16.msra.mxu0 0
    %541 = vmatprep.subr.bf16.mxu0 0
    %542 = vmatpush1.bf16.msra.mxu0 0
    %543 = vmatprep.subr.bf16.mxu0 0
    %544 = vmatpush1.bf16.msra.mxu0 0
    %545 = vmatprep.subr.bf16.mxu0 0
    %546 = vmatpush1.bf16.msra.mxu0 0
    %547 = vmatprep.subr.bf16.mxu0 0
    %548 = vmatpush1.bf16.msra.mxu0 0
    %549 = vmatprep.subr.bf16.mxu0 0
    %550 = vmatpush1.bf16.msra.mxu0 0
    %551 = vmatprep.subr.bf16.mxu0 0
    %552 = vmatpush1.bf16.msra.mxu0 0
    %553 = vmatprep.mubr.bf16.mxu0 0
    %554 = vmatmul.mubr.bf16.gmra.mrb[0].mxu0 %v519
    %v555 = vpop.f32.mrb[0].mxu0
    %v556 = vadd.f32 0.0, %v555
    %v557 = vpop.f32.mrb[0].mxu0
    %v558 = vpop.f32.mrb[0].mxu0
    %v559 = vadd.f32 0.0, %v558
    %v560 = vpop.f32.mrb[0].mxu0
    %561 = vdwg.mxu0
    %v563 = vsel %vm418, %v444, 0
    %565 = vmatprep.subr.bf16.mxu0 0
    %566 = vmatpush1.bf16.msra.mxu0 %v443
    %567 = vmatprep.subr.bf16.mxu0 0
    %568 = vmatpush1.bf16.msra.mxu0 0
    %569 = vmatprep.subr.bf16.mxu0 0
    %570 = vmatpush1.bf16.msra.mxu0 0
    %571 = vmatprep.subr.bf16.mxu0 0
    %572 = vmatpush1.bf16.msra.mxu0 0
    %573 = vmatprep.subr.bf16.mxu0 0
    %574 = vmatpush1.bf16.msra.mxu0 0
    %575 = vmatprep.subr.bf16.mxu0 0
    %576 = vmatpush1.bf16.msra.mxu0 0
    %577 = vmatprep.subr.bf16.mxu0 0
    %578 = vmatpush1.bf16.msra.mxu0 0
    %579 = vmatprep.subr.bf16.mxu0 0
    %580 = vmatpush1.bf16.msra.mxu0 0
    %581 = vmatprep.subr.bf16.mxu0 0
    %582 = vmatpush1.bf16.msra.mxu0 0
    %583 = vmatprep.subr.bf16.mxu0 0
    %584 = vmatpush1.bf16.msra.mxu0 0
    %585 = vmatprep.subr.bf16.mxu0 0
    %586 = vmatpush1.bf16.msra.mxu0 0
    %587 = vmatprep.subr.bf16.mxu0 0
    %588 = vmatpush1.bf16.msra.mxu0 0
    %589 = vmatprep.subr.bf16.mxu0 0
    %590 = vmatpush1.bf16.msra.mxu0 0
    %591 = vmatprep.subr.bf16.mxu0 0
    %592 = vmatpush1.bf16.msra.mxu0 0
    %593 = vmatprep.subr.bf16.mxu0 0
    %594 = vmatpush1.bf16.msra.mxu0 0
    %595 = vmatprep.subr.bf16.mxu0 0
    %596 = vmatpush1.bf16.msra.mxu0 0
    %597 = vmatprep.mubr.bf16.mxu0 0
    %598 = vmatmul.mubr.bf16.gmra.mrb[0].mxu0 %v563
    %v599 = vpop.f32.mrb[0].mxu0
    %v600 = vadd.f32 %v556, %v599
    %v601 = vpop.f32.mrb[0].mxu0
    %v602 = vpop.f32.mrb[0].mxu0
    %v603 = vadd.f32 %v559, %v602
    %v604 = vpop.f32.mrb[0].mxu0
    %605 = vdwg.mxu0
    %v606 = vmul.f32 %v235, %v125
    %v607 = vmul.f32 %v238, %v125
    %v608 = vpack.c.bf16 %v607, %v606
    %v610 = vsel %vm135, %v608, 0
    %612 = vmatprep.subr.bf16.mxu0 0
    %613 = vmatpush1.bf16.xpose.msra.mxu0 %v375
    %614 = vmatprep.subr.bf16.mxu0 0
    %615 = vmatpush1.bf16.xpose.msra.mxu0 0
    %616 = vmatprep.subr.bf16.mxu0 0
    %617 = vmatpush1.bf16.xpose.msra.mxu0 0
    %618 = vmatprep.subr.bf16.mxu0 0
    %619 = vmatpush1.bf16.xpose.msra.mxu0 0
    %620 = vmatprep.subr.bf16.mxu0 0
    %621 = vmatpush1.bf16.xpose.msra.mxu0 0
    %622 = vmatprep.subr.bf16.mxu0 0
    %623 = vmatpush1.bf16.xpose.msra.mxu0 0
    %624 = vmatprep.subr.bf16.mxu0 0
    %625 = vmatpush1.bf16.xpose.msra.mxu0 0
    %626 = vmatprep.subr.bf16.mxu0 0
    %627 = vmatpush1.bf16.xpose.msra.mxu0 0
    %628 = vmatprep.subr.bf16.mxu0 0
    %629 = vmatpush1.bf16.xpose.msra.mxu0 0
    %630 = vmatprep.subr.bf16.mxu0 0
    %631 = vmatpush1.bf16.xpose.msra.mxu0 0
    %632 = vmatprep.subr.bf16.mxu0 0
    %633 = vmatpush1.bf16.xpose.msra.mxu0 0
    %634 = vmatprep.subr.bf16.mxu0 0
    %635 = vmatpush1.bf16.xpose.msra.mxu0 0
    %636 = vmatprep.subr.bf16.mxu0 0
    %637 = vmatpush1.bf16.xpose.msra.mxu0 0
    %638 = vmatprep.subr.bf16.mxu0 0
    %639 = vmatpush1.bf16.xpose.msra.mxu0 0
    %640 = vmatprep.subr.bf16.mxu0 0
    %641 = vmatpush1.bf16.xpose.msra.mxu0 0
    %642 = vmatprep.subr.bf16.mxu0 0
    %643 = vmatpush1.bf16.xpose.msra.mxu0 0
    %644 = vmatprep.mubr.bf16.mxu0 0
    %645 = vmatmul.mubr.bf16.gmra.mrb[0].mxu0 %v610
    %v646 = vpop.f32.mrb[0].mxu0
    %v647 = vadd.f32 %v109, %v646
    %v648 = vpop.f32.mrb[0].mxu0
    %v649 = vpop.f32.mrb[0].mxu0
    %v650 = vadd.f32 %v110, %v649
    %v651 = vpop.f32.mrb[0].mxu0
    %652 = vdwg.mxu0
    %v653 = vsel %vm418, %v647, -inf
    %654 = vmax.xlane.f32.xlu0 %v653
    %v655 = vpop.xlane.xlu0 %654
    %v656 = vsel %vm418, %v650, -inf
    %657 = vmax.xlane.f32.xlu0 %v656
    %v658 = vpop.xlane.xlu0 %657
    %v659 = vsub.f32 %v647, %v655
    %v660 = vsub.f32 %v650, %v658
    %v661 = vmul.f32 %v659, 1.442695
    %v662 = vpow.pop %v661
    %v663 = vmul.f32 %v660, 1.442695
    %v664 = vpow.pop %v663
    %v665 = vsel %vm418, %v662, 0.0
    %666 = vadd.xlane.f32.xlu0 %v665
    %v667 = vpop.xlane.xlu0 %666
    %v668 = vsel %vm418, %v664, 0.0
    %669 = vadd.xlane.f32.xlu0 %v668
    %v670 = vpop.xlane.xlu0 %669
    %v671 = vrcp.pop %v667
    %v672 = vrcp.pop %v670
    %v673 = vmul.f32 %v662, %v671
    %v674 = vmul.f32 %v664, %v672
    %v675 = vmul.f32 %v361, %v125
    %v676 = vmul.f32 %v364, %v125
    %v677 = vpack.c.bf16 %v676, %v675
    %v678 = vpack.c.bf16 %v674, %v673
    %v680 = vsel %vm418, %v678, 0
    %682 = vmatprep.subr.bf16.mxu0 0
    %683 = vmatpush1.bf16.msra.mxu0 %v677
    %684 = vmatprep.subr.bf16.mxu0 0
    %685 = vmatpush1.bf16.msra.mxu0 0
    %686 = vmatprep.subr.bf16.mxu0 0
    %687 = vmatpush1.bf16.msra.mxu0 0
    %688 = vmatprep.subr.bf16.mxu0 0
    %689 = vmatpush1.bf16.msra.mxu0 0
    %690 = vmatprep.subr.bf16.mxu0 0
    %691 = vmatpush1.bf16.msra.mxu0 0
    %692 = vmatprep.subr.bf16.mxu0 0
    %693 = vmatpush1.bf16.msra.mxu0 0
    %694 = vmatprep.subr.bf16.mxu0 0
    %695 = vmatpush1.bf16.msra.mxu0 0
    %696 = vmatprep.subr.bf16.mxu0 0
    %697 = vmatpush1.bf16.msra.mxu0 0
    %698 = vmatprep.subr.bf16.mxu0 0
    %699 = vmatpush1.bf16.msra.mxu0 0
    %700 = vmatprep.subr.bf16.mxu0 0
    %701 = vmatpush1.bf16.msra.mxu0 0
    %702 = vmatprep.subr.bf16.mxu0 0
    %703 = vmatpush1.bf16.msra.mxu0 0
    %704 = vmatprep.subr.bf16.mxu0 0
    %705 = vmatpush1.bf16.msra.mxu0 0
    %706 = vmatprep.subr.bf16.mxu0 0
    %707 = vmatpush1.bf16.msra.mxu0 0
    %708 = vmatprep.subr.bf16.mxu0 0
    %709 = vmatpush1.bf16.msra.mxu0 0
    %710 = vmatprep.subr.bf16.mxu0 0
    %711 = vmatpush1.bf16.msra.mxu0 0
    %712 = vmatprep.subr.bf16.mxu0 0
    %713 = vmatpush1.bf16.msra.mxu0 0
    %714 = vmatprep.mubr.bf16.mxu0 0
    %715 = vmatmul.mubr.bf16.gmra.mrb[0].mxu0 %v680
    %v716 = vpop.f32.mrb[0].mxu0
    %v717 = vadd.f32 0.0, %v716
    %v718 = vpop.f32.mrb[0].mxu0
    %v719 = vpop.f32.mrb[0].mxu0
    %v720 = vadd.f32 0.0, %v719
    %v721 = vpop.f32.mrb[0].mxu0
    %722 = vdwg.mxu0
    %v723 = vadd.f32 %v600, %v717
    %v724 = vadd.f32 %v603, %v720
    %v725 = vmul.f32 %v235, %v130
    %v726 = vmul.f32 %v238, %v130
    %v727 = vpack.c.bf16 %v726, %v725
    %v729 = vsel %vm135, %v727, 0
    %731 = vmatprep.subr.bf16.mxu0 0
    %732 = vmatpush1.bf16.xpose.msra.mxu0 %v375
    %733 = vmatprep.subr.bf16.mxu0 0
    %734 = vmatpush1.bf16.xpose.msra.mxu0 0
    %735 = vmatprep.subr.bf16.mxu0 0
    %736 = vmatpush1.bf16.xpose.msra.mxu0 0
    %737 = vmatprep.subr.bf16.mxu0 0
    %738 = vmatpush1.bf16.xpose.msra.mxu0 0
    %739 = vmatprep.subr.bf16.mxu0 0
    %740 = vmatpush1.bf16.xpose.msra.mxu0 0
    %741 = vmatprep.subr.bf16.mxu0 0
    %742 = vmatpush1.bf16.xpose.msra.mxu0 0
    %743 = vmatprep.subr.bf16.mxu0 0
    %744 = vmatpush1.bf16.xpose.msra.mxu0 0
    %745 = vmatprep.subr.bf16.mxu0 0
    %746 = vmatpush1.bf16.xpose.msra.mxu0 0
    %747 = vmatprep.subr.bf16.mxu0 0
    %748 = vmatpush1.bf16.xpose.msra.mxu0 0
    %749 = vmatprep.subr.bf16.mxu0 0
    %750 = vmatpush1.bf16.xpose.msra.mxu0 0
    %751 = vmatprep.subr.bf16.mxu0 0
    %752 = vmatpush1.bf16.xpose.msra.mxu0 0
    %753 = vmatprep.subr.bf16.mxu0 0
    %754 = vmatpush1.bf16.xpose.msra.mxu0 0
    %755 = vmatprep.subr.bf16.mxu0 0
    %756 = vmatpush1.bf16.xpose.msra.mxu0 0
    %757 = vmatprep.subr.bf16.mxu0 0
    %758 = vmatpush1.bf16.xpose.msra.mxu0 0
    %759 = vmatprep.subr.bf16.mxu0 0
    %760 = vmatpush1.bf16.xpose.msra.mxu0 0
    %761 = vmatprep.subr.bf16.mxu0 0
    %762 = vmatpush1.bf16.xpose.msra.mxu0 0
    %763 = vmatprep.mubr.bf16.mxu0 0
    %764 = vmatmul.mubr.bf16.gmra.mrb[0].mxu0 %v729
    %v765 = vpop.f32.mrb[0].mxu0
    %v766 = vadd.f32 %v109, %v765
    %v767 = vpop.f32.mrb[0].mxu0
    %v768 = vpop.f32.mrb[0].mxu0
    %v769 = vadd.f32 %v110, %v768
    %v770 = vpop.f32.mrb[0].mxu0
    %771 = vdwg.mxu0
    %v772 = vsel %vm418, %v766, -inf
    %773 = vmax.xlane.f32.xlu0 %v772
    %v774 = vpop.xlane.xlu0 %773
    %v775 = vsel %vm418, %v769, -inf
    %776 = vmax.xlane.f32.xlu0 %v775
    %v777 = vpop.xlane.xlu0 %776
    %v778 = vsub.f32 %v766, %v774
    %v779 = vsub.f32 %v769, %v777
    %v780 = vmul.f32 %v778, 1.442695
    %v781 = vpow.pop %v780
    %v782 = vmul.f32 %v779, 1.442695
    %v783 = vpow.pop %v782
    %v784 = vsel %vm418, %v781, 0.0
    %785 = vadd.xlane.f32.xlu0 %v784
    %v786 = vpop.xlane.xlu0 %785
    %v787 = vsel %vm418, %v783, 0.0
    %788 = vadd.xlane.f32.xlu0 %v787
    %v789 = vpop.xlane.xlu0 %788
    %v790 = vrcp.pop %v786
    %v791 = vrcp.pop %v789
    %v792 = vmul.f32 %v781, %v790
    %v793 = vmul.f32 %v783, %v791
    %v794 = vmul.f32 %v361, %v130
    %v795 = vmul.f32 %v364, %v130
    %v796 = vpack.c.bf16 %v795, %v794
    %v797 = vpack.c.bf16 %v793, %v792
    %v799 = vsel %vm418, %v797, 0
    %801 = vmatprep.subr.bf16.mxu0 0
    %802 = vmatpush1.bf16.msra.mxu0 %v796
    %803 = vmatprep.subr.bf16.mxu0 0
    %804 = vmatpush1.bf16.msra.mxu0 0
    %805 = vmatprep.subr.bf16.mxu0 0
    %806 = vmatpush1.bf16.msra.mxu0 0
    %807 = vmatprep.subr.bf16.mxu0 0
    %808 = vmatpush1.bf16.msra.mxu0 0
    %809 = vmatprep.subr.bf16.mxu0 0
    %810 = vmatpush1.bf16.msra.mxu0 0
    %811 = vmatprep.subr.bf16.mxu0 0
    %812 = vmatpush1.bf16.msra.mxu0 0
    %813 = vmatprep.subr.bf16.mxu0 0
    %814 = vmatpush1.bf16.msra.mxu0 0
    %815 = vmatprep.subr.bf16.mxu0 0
    %816 = vmatpush1.bf16.msra.mxu0 0
    %817 = vmatprep.subr.bf16.mxu0 0
    %818 = vmatpush1.bf16.msra.mxu0 0
    %819 = vmatprep.subr.bf16.mxu0 0
    %820 = vmatpush1.bf16.msra.mxu0 0
    %821 = vmatprep.subr.bf16.mxu0 0
    %822 = vmatpush1.bf16.msra.mxu0 0
    %823 = vmatprep.subr.bf16.mxu0 0
    %824 = vmatpush1.bf16.msra.mxu0 0
    %825 = vmatprep.subr.bf16.mxu0 0
    %826 = vmatpush1.bf16.msra.mxu0 0
    %827 = vmatprep.subr.bf16.mxu0 0
    %828 = vmatpush1.bf16.msra.mxu0 0
    %829 = vmatprep.subr.bf16.mxu0 0
    %830 = vmatpush1.bf16.msra.mxu0 0
    %831 = vmatprep.subr.bf16.mxu0 0
    %832 = vmatpush1.bf16.msra.mxu0 0
    %833 = vmatprep.mubr.bf16.mxu0 0
    %834 = vmatmul.mubr.bf16.gmra.mrb[0].mxu0 %v799
    %v835 = vpop.f32.mrb[0].mxu0
    %v836 = vadd.f32 0.0, %v835
    %v837 = vpop.f32.mrb[0].mxu0
    %v838 = vpop.f32.mrb[0].mxu0
    %v839 = vadd.f32 0.0, %v838
    %v840 = vpop.f32.mrb[0].mxu0
    %841 = vdwg.mxu0
    %v842 = vadd.f32 %v723, %v836
    %v843 = vadd.f32 %v724, %v839
    %v844 = vpack.c.bf16 %v843, %v842
    %v845 = vld [vmem:[%s5] sm:$0xf]
    %v846 = vld [vmem:[%s5 + $0x4] sm:$0xf]
    %v847 = vld [vmem:[%s5 + $0x8] sm:$0xf]
    %v848 = vld [vmem:[%s5 + $0xc] sm:$0xf]
    %v849 = vld [vmem:[%s3 + $0x6] sm:$0x1]
    %v850 = vlaneseq
    %v851 = vshrl.u32 %v850, 7
    %v852 = vsub.s32 0, %v851
    %v853 = vrot.slane %v849, %v852
    %v858 = vunpack.c.l.b16 %v845
    %v859 = vunpack.c.l.b16 %v846
    %v860 = vunpack.c.l.b16 %v847
    %v861 = vunpack.c.l.b16 %v848
    %v862 = vpack.c.b16 %v859, %v858
    %v863 = vpack.c.b16 %v861, %v860
    %v867 = vsel %vm135, %v844, 0
    %869 = vmatprep.subr.bf16.mxu0 0
    %870 = vmatpush1.bf16.msra.mxu0 %v862
    %871 = vmatprep.subr.bf16.mxu0 0
    %872 = vmatpush1.bf16.msra.mxu0 %v863
    %873 = vmatprep.subr.bf16.mxu0 0
    %874 = vmatpush1.bf16.msra.mxu0 0
    %875 = vmatprep.subr.bf16.mxu0 0
    %876 = vmatpush1.bf16.msra.mxu0 0
    %877 = vmatprep.subr.bf16.mxu0 0
    %878 = vmatpush1.bf16.msra.mxu0 0
    %879 = vmatprep.subr.bf16.mxu0 0
    %880 = vmatpush1.bf16.msra.mxu0 0
    %881 = vmatprep.subr.bf16.mxu0 0
    %882 = vmatpush1.bf16.msra.mxu0 0
    %883 = vmatprep.subr.bf16.mxu0 0
    %884 = vmatpush1.bf16.msra.mxu0 0
    %885 = vmatprep.subr.bf16.mxu0 0
    %886 = vmatpush1.bf16.msra.mxu0 0
    %887 = vmatprep.subr.bf16.mxu0 0
    %888 = vmatpush1.bf16.msra.mxu0 0
    %889 = vmatprep.subr.bf16.mxu0 0
    %890 = vmatpush1.bf16.msra.mxu0 0
    %891 = vmatprep.subr.bf16.mxu0 0
    %892 = vmatpush1.bf16.msra.mxu0 0
    %893 = vmatprep.subr.bf16.mxu0 0
    %894 = vmatpush1.bf16.msra.mxu0 0
    %895 = vmatprep.subr.bf16.mxu0 0
    %896 = vmatpush1.bf16.msra.mxu0 0
    %897 = vmatprep.subr.bf16.mxu0 0
    %898 = vmatpush1.bf16.msra.mxu0 0
    %899 = vmatprep.subr.bf16.mxu0 0
    %900 = vmatpush1.bf16.msra.mxu0 0
    %901 = vmatprep.mubr.bf16.mxu0 0
    %902 = vmatmul.mubr.bf16.gmra.mrb[0].mxu0 %v867
    %v903 = vpop.f32.mrb[0].mxu0
    %v904 = vadd.f32 %v853, %v903
    %v905 = vpop.f32.mrb[0].mxu0
    %v906 = vpop.f32.mrb[0].mxu0
    %v907 = vadd.f32 %v853, %v906
    %v908 = vpop.f32.mrb[0].mxu0
    %909 = vdwg.mxu0
    %v910 = vadd.f32 %v904, %v173
    %v911 = vadd.f32 %v907, %v174
    %v912 = vld [vmem:[%s3 + $0x7] sm:$0x1]
    %v913 = vld [vmem:[%s3 + $0x8] sm:$0x1]
    %v914 = vsel %vm135, %v910, 0.0
    %915 = vadd.xlane.f32.xlu0 %v914
    %v916 = vpop.xlane.xlu0 %915
    %v917 = vsel %vm135, %v911, 0.0
    %918 = vadd.xlane.f32.xlu0 %v917
    %v919 = vpop.xlane.xlu0 %918
    %v920 = vmul.f32 %v916, %v142
    %v921 = vmul.f32 %v919, %v142
    %v922 = vsub.f32 %v910, %v920
    %v923 = vsub.f32 %v911, %v921
    %v924 = vmul.f32 %v922, %v922
    %v925 = vmul.f32 %v923, %v923
    %v926 = vsel %vm135, %v924, 0.0
    %927 = vadd.xlane.f32.xlu0 %v926
    %v928 = vpop.xlane.xlu0 %927
    %v929 = vsel %vm135, %v925, 0.0
    %930 = vadd.xlane.f32.xlu0 %v929
    %v931 = vpop.xlane.xlu0 %930
    %v932 = vmul.f32 %v928, %v142
    %v933 = vmul.f32 %v931, %v142
    %v934 = vadd.f32 %v932, 1e-05
    %v935 = vadd.f32 %v933, 1e-05
    %v936 = vrsqrt.pop %v934
    %v937 = vrsqrt.pop %v935
    %v938 = vmul.f32 %v922, %v936
    %v939 = vmul.f32 %v923, %v937
    %v940 = vlaneseq
    %v941 = vshrl.u32 %v940, 7
    %v942 = vsub.s32 0, %v941
    %v943 = vrot.slane %v912, %v942
    %v944 = vmul.f32 %v938, %v943
    %v945 = vmul.f32 %v939, %v943
    %v946 = vlaneseq
    %v947 = vshrl.u32 %v946, 7
    %v948 = vsub.s32 0, %v947
    %v949 = vrot.slane %v913, %v948
    %v950 = vadd.f32 %v944, %v949
    %v951 = vadd.f32 %v945, %v949
    %v952 = vpack.c.bf16 %v951, %v950
    %v953 = vld [vmem:[%s6] sm:$0xf]
    %v954 = vld [vmem:[%s6 + $0x4] sm:$0xf]
    %v955 = vld [vmem:[%s6 + $0x8] sm:$0xf]
    %v956 = vld [vmem:[%s6 + $0xc] sm:$0xf]
    %v957 = vld [vmem:[%s3 + $0x9] sm:$0x1]
    %v958 = vlaneseq
    %v959 = vshrl.u32 %v958, 7
    %v960 = vsub.s32 0, %v959
    %v961 = vrot.slane %v957, %v960
    %v966 = vunpack.c.l.b16 %v953
    %v967 = vunpack.c.l.b16 %v954
    %v968 = vunpack.c.l.b16 %v955
    %v969 = vunpack.c.l.b16 %v956
    %v970 = vpack.c.b16 %v967, %v966
    %v971 = vpack.c.b16 %v969, %v968
    %v975 = vsel %vm135, %v952, 0
    %977 = vmatprep.subr.bf16.mxu0 0
    %978 = vmatpush1.bf16.msra.mxu0 %v970
    %979 = vmatprep.subr.bf16.mxu0 0
    %980 = vmatpush1.bf16.msra.mxu0 %v971
    %981 = vmatprep.subr.bf16.mxu0 0
    %982 = vmatpush1.bf16.msra.mxu0 0
    %983 = vmatprep.subr.bf16.mxu0 0
    %984 = vmatpush1.bf16.msra.mxu0 0
    %985 = vmatprep.subr.bf16.mxu0 0
    %986 = vmatpush1.bf16.msra.mxu0 0
    %987 = vmatprep.subr.bf16.mxu0 0
    %988 = vmatpush1.bf16.msra.mxu0 0
    %989 = vmatprep.subr.bf16.mxu0 0
    %990 = vmatpush1.bf16.msra.mxu0 0
    %991 = vmatprep.subr.bf16.mxu0 0
    %992 = vmatpush1.bf16.msra.mxu0 0
    %993 = vmatprep.subr.bf16.mxu0 0
    %994 = vmatpush1.bf16.msra.mxu0 0
    %995 = vmatprep.subr.bf16.mxu0 0
    %996 = vmatpush1.bf16.msra.mxu0 0
    %997 = vmatprep.subr.bf16.mxu0 0
    %998 = vmatpush1.bf16.msra.mxu0 0
    %999 = vmatprep.subr.bf16.mxu0 0
    %1000 = vmatpush1.bf16.msra.mxu0 0
    %1001 = vmatprep.subr.bf16.mxu0 0
    %1002 = vmatpush1.bf16.msra.mxu0 0
    %1003 = vmatprep.subr.bf16.mxu0 0
    %1004 = vmatpush1.bf16.msra.mxu0 0
    %1005 = vmatprep.subr.bf16.mxu0 0
    %1006 = vmatpush1.bf16.msra.mxu0 0
    %1007 = vmatprep.subr.bf16.mxu0 0
    %1008 = vmatpush1.bf16.msra.mxu0 0
    %1009 = vmatprep.mubr.bf16.mxu0 0
    %1010 = vmatmul.mubr.bf16.gmra.mrb[0].mxu0 %v975
    %v1011 = vpop.f32.mrb[0].mxu0
    %v1012 = vadd.f32 %v961, %v1011
    %v1013 = vpop.f32.mrb[0].mxu0
    %v1014 = vpop.f32.mrb[0].mxu0
    %v1015 = vadd.f32 %v961, %v1014
    %v1016 = vpop.f32.mrb[0].mxu0
    %1017 = vdwg.mxu0
    %v1018 = vmul.f32 %v1012, %v1012
    %v1019 = vmul.f32 %v1015, %v1015
    %v1020 = vmul.f32 %v1012, %v1018
    %v1021 = vmul.f32 %v1015, %v1019
    %v1022 = vmul.f32 %v1020, 0.044715
    %v1023 = vmul.f32 %v1021, 0.044715
    %v1024 = vadd.f32 %v1012, %v1022
    %v1025 = vadd.f32 %v1015, %v1023
    %v1026 = vmul.f32 %v1024, 0.7978846
    %v1027 = vmul.f32 %v1025, 0.7978846
    %v1028 = vtanh.pop %v1026
    %v1029 = vtanh.pop %v1027
    %v1030 = vadd.f32 %v1028, 1.0
    %v1031 = vadd.f32 %v1029, 1.0
    %v1032 = vmul.f32 %v1030, 0.5
    %v1033 = vmul.f32 %v1031, 0.5
    %v1034 = vmul.f32 %v1012, %v1032
    %v1035 = vmul.f32 %v1015, %v1033
    %v1036 = vpack.c.bf16 %v1035, %v1034
    %v1037 = vld [vmem:[%s7] sm:$0xf]
    %v1038 = vld [vmem:[%s7 + $0x4] sm:$0xf]
    %v1039 = vld [vmem:[%s7 + $0x8] sm:$0xf]
    %v1040 = vld [vmem:[%s7 + $0xc] sm:$0xf]
    %v1041 = vld [vmem:[%s7 + $0x10] sm:$0xf]
    %v1042 = vld [vmem:[%s7 + $0x14] sm:$0xf]
    %v1043 = vld [vmem:[%s7 + $0x18] sm:$0xf]
    %v1044 = vld [vmem:[%s7 + $0x1c] sm:$0xf]
    %v1045 = vld [vmem:[%s3 + $0xa] sm:$0x1]
    %v1046 = vlaneseq
    %v1047 = vshrl.u32 %v1046, 7
    %v1048 = vsub.s32 0, %v1047
    %v1049 = vrot.slane %v1045, %v1048
    %v1058 = vunpack.c.l.b16 %v1037
    %v1059 = vunpack.c.l.b16 %v1038
    %v1060 = vunpack.c.l.b16 %v1039
    %v1061 = vunpack.c.l.b16 %v1040
    %v1062 = vunpack.c.l.b16 %v1041
    %v1063 = vunpack.c.l.b16 %v1042
    %v1064 = vunpack.c.l.b16 %v1043
    %v1065 = vunpack.c.l.b16 %v1044
    %v1066 = vpack.c.b16 %v1059, %v1058
    %v1067 = vpack.c.b16 %v1061, %v1060
    %v1068 = vpack.c.b16 %v1063, %v1062
    %v1069 = vpack.c.b16 %v1065, %v1064
    %vm1074 = vcmask 523264
    %v1076 = vsel %vm1074, %v1036, 0
    %1078 = vmatprep.subr.bf16.mxu0 0
    %1079 = vmatpush1.bf16.msra.mxu0 %v1066
    %1080 = vmatprep.subr.bf16.mxu0 0
    %1081 = vmatpush1.bf16.msra.mxu0 %v1067
    %1082 = vmatprep.subr.bf16.mxu0 0
    %1083 = vmatpush1.bf16.msra.mxu0 %v1068
    %1084 = vmatprep.subr.bf16.mxu0 0
    %1085 = vmatpush1.bf16.msra.mxu0 %v1069
    %1086 = vmatprep.subr.bf16.mxu0 0
    %1087 = vmatpush1.bf16.msra.mxu0 0
    %1088 = vmatprep.subr.bf16.mxu0 0
    %1089 = vmatpush1.bf16.msra.mxu0 0
    %1090 = vmatprep.subr.bf16.mxu0 0
    %1091 = vmatpush1.bf16.msra.mxu0 0
    %1092 = vmatprep.subr.bf16.mxu0 0
    %1093 = vmatpush1.bf16.msra.mxu0 0
    %1094 = vmatprep.subr.bf16.mxu0 0
    %1095 = vmatpush1.bf16.msra.mxu0 0
    %1096 = vmatprep.subr.bf16.mxu0 0
    %1097 = vmatpush1.bf16.msra.mxu0 0
    %1098 = vmatprep.subr.bf16.mxu0 0
    %1099 = vmatpush1.bf16.msra.mxu0 0
    %1100 = vmatprep.subr.bf16.mxu0 0
    %1101 = vmatpush1.bf16.msra.mxu0 0
    %1102 = vmatprep.subr.bf16.mxu0 0
    %1103 = vmatpush1.bf16.msra.mxu0 0
    %1104 = vmatprep.subr.bf16.mxu0 0
    %1105 = vmatpush1.bf16.msra.mxu0 0
    %1106 = vmatprep.subr.bf16.mxu0 0
    %1107 = vmatpush1.bf16.msra.mxu0 0
    %1108 = vmatprep.subr.bf16.mxu0 0
    %1109 = vmatpush1.bf16.msra.mxu0 0
    %1110 = vmatprep.mubr.bf16.mxu0 0
    %1111 = vmatmul.mubr.bf16.gmra.mrb[0].mxu0 %v1076
    %v1112 = vpop.f32.mrb[0].mxu0
    %v1113 = vadd.f32 %v1049, %v1112
    %v1114 = vpop.f32.mrb[0].mxu0
    %v1115 = vpop.f32.mrb[0].mxu0
    %v1116 = vadd.f32 %v1049, %v1115
    %v1117 = vpop.f32.mrb[0].mxu0
    %1118 = vdwg.mxu0
    %v1119 = vadd.f32 %v1113, %v950
    %v1120 = vadd.f32 %v1116, %v951
    %v1121 = vld [vmem:[%s3 + $0xb] sm:$0x1]
    %v1122 = vld [vmem:[%s3 + $0xc] sm:$0x1]
    %v1123 = vsel %vm135, %v1119, 0.0
    %1124 = vadd.xlane.f32.xlu0 %v1123
    %v1125 = vpop.xlane.xlu0 %1124
    %v1126 = vsel %vm135, %v1120, 0.0
    %1127 = vadd.xlane.f32.xlu0 %v1126
    %v1128 = vpop.xlane.xlu0 %1127
    %v1129 = vmul.f32 %v1125, %v142
    %v1130 = vmul.f32 %v1128, %v142
    %v1131 = vsub.f32 %v1119, %v1129
    %v1132 = vsub.f32 %v1120, %v1130
    %v1133 = vmul.f32 %v1131, %v1131
    %v1134 = vmul.f32 %v1132, %v1132
    %v1135 = vsel %vm135, %v1133, 0.0
    %1136 = vadd.xlane.f32.xlu0 %v1135
    %v1137 = vpop.xlane.xlu0 %1136
    %v1138 = vsel %vm135, %v1134, 0.0
    %1139 = vadd.xlane.f32.xlu0 %v1138
    %v1140 = vpop.xlane.xlu0 %1139
    %v1141 = vmul.f32 %v1137, %v142
    %v1142 = vmul.f32 %v1140, %v142
    %v1143 = vadd.f32 %v1141, 1e-05
    %v1144 = vadd.f32 %v1142, 1e-05
    %v1145 = vrsqrt.pop %v1143
    %v1146 = vrsqrt.pop %v1144
    %v1147 = vmul.f32 %v1131, %v1145
    %v1148 = vmul.f32 %v1132, %v1146
    %v1149 = vlaneseq
    %v1150 = vshrl.u32 %v1149, 7
    %v1151 = vsub.s32 0, %v1150
    %v1152 = vrot.slane %v1121, %v1151
    %v1153 = vmul.f32 %v1147, %v1152
    %v1154 = vmul.f32 %v1148, %v1152
    %v1155 = vlaneseq
    %v1156 = vshrl.u32 %v1155, 7
    %v1157 = vsub.s32 0, %v1156
    %v1158 = vrot.slane %v1122, %v1157
    %v1159 = vadd.f32 %v1153, %v1158
    %v1160 = vadd.f32 %v1154, %v1158
    %v1161 = vpack.c.bf16 %v1160, %v1159
    %s1162 = scalar_lea.vmem %s4, 48
    %v1163 = vld [vmem:[%s1162] sm:$0xf]
    %v1164 = vld [vmem:[%s1162 + $0x4] sm:$0xf]
    %v1165 = vld [vmem:[%s1162 + $0x8] sm:$0xf]
    %v1166 = vld [vmem:[%s1162 + $0xc] sm:$0xf]
    %v1167 = vld [vmem:[%s3 + $0xd] sm:$0x1]
    %v1168 = vlaneseq
    %v1169 = vshrl.u32 %v1168, 7
    %v1170 = vsub.s32 0, %v1169
    %v1171 = vrot.slane %v1167, %v1170
    %v1176 = vunpack.c.l.b16 %v1163
    %v1177 = vunpack.c.l.b16 %v1164
    %v1178 = vunpack.c.l.b16 %v1165
    %v1179 = vunpack.c.l.b16 %v1166
    %v1180 = vpack.c.b16 %v1177, %v1176
    %v1181 = vpack.c.b16 %v1179, %v1178
    %v1185 = vsel %vm135, %v1161, 0
    %1187 = vmatprep.subr.bf16.mxu0 0
    %1188 = vmatpush1.bf16.msra.mxu0 %v1180
    %1189 = vmatprep.subr.bf16.mxu0 0
    %1190 = vmatpush1.bf16.msra.mxu0 %v1181
    %1191 = vmatprep.subr.bf16.mxu0 0
    %1192 = vmatpush1.bf16.msra.mxu0 0
    %1193 = vmatprep.subr.bf16.mxu0 0
    %1194 = vmatpush1.bf16.msra.mxu0 0
    %1195 = vmatprep.subr.bf16.mxu0 0
    %1196 = vmatpush1.bf16.msra.mxu0 0
    %1197 = vmatprep.subr.bf16.mxu0 0
    %1198 = vmatpush1.bf16.msra.mxu0 0
    %1199 = vmatprep.subr.bf16.mxu0 0
    %1200 = vmatpush1.bf16.msra.mxu0 0
    %1201 = vmatprep.subr.bf16.mxu0 0
    %1202 = vmatpush1.bf16.msra.mxu0 0
    %1203 = vmatprep.subr.bf16.mxu0 0
    %1204 = vmatpush1.bf16.msra.mxu0 0
    %1205 = vmatprep.subr.bf16.mxu0 0
    %1206 = vmatpush1.bf16.msra.mxu0 0
    %1207 = vmatprep.subr.bf16.mxu0 0
    %1208 = vmatpush1.bf16.msra.mxu0 0
    %1209 = vmatprep.subr.bf16.mxu0 0
    %1210 = vmatpush1.bf16.msra.mxu0 0
    %1211 = vmatprep.subr.bf16.mxu0 0
    %1212 = vmatpush1.bf16.msra.mxu0 0
    %1213 = vmatprep.subr.bf16.mxu0 0
    %1214 = vmatpush1.bf16.msra.mxu0 0
    %1215 = vmatprep.subr.bf16.mxu0 0
    %1216 = vmatpush1.bf16.msra.mxu0 0
    %1217 = vmatprep.subr.bf16.mxu0 0
    %1218 = vmatpush1.bf16.msra.mxu0 0
    %1219 = vmatprep.mubr.bf16.mxu0 0
    %1220 = vmatmul.mubr.bf16.gmra.mrb[0].mxu0 %v1185
    %v1221 = vpop.f32.mrb[0].mxu0
    %v1222 = vadd.f32 %v1171, %v1221
    %v1223 = vpop.f32.mrb[0].mxu0
    %v1224 = vpop.f32.mrb[0].mxu0
    %v1225 = vadd.f32 %v1171, %v1224
    %v1226 = vpop.f32.mrb[0].mxu0
    %1227 = vdwg.mxu0
    %s1228 = scalar_lea.vmem %s4, 64
    %v1229 = vld [vmem:[%s1228] sm:$0xf]
    %v1230 = vld [vmem:[%s1228 + $0x4] sm:$0xf]
    %v1231 = vld [vmem:[%s1228 + $0x8] sm:$0xf]
    %v1232 = vld [vmem:[%s1228 + $0xc] sm:$0xf]
    %v1233 = vld [vmem:[%s3 + $0xe] sm:$0x1]
    %v1234 = vlaneseq
    %v1235 = vshrl.u32 %v1234, 7
    %v1236 = vsub.s32 0, %v1235
    %v1237 = vrot.slane %v1233, %v1236
    %v1242 = vunpack.c.l.b16 %v1229
    %v1243 = vunpack.c.l.b16 %v1230
    %v1244 = vunpack.c.l.b16 %v1231
    %v1245 = vunpack.c.l.b16 %v1232
    %v1246 = vpack.c.b16 %v1243, %v1242
    %v1247 = vpack.c.b16 %v1245, %v1244
    %1250 = vmatprep.subr.bf16.mxu0 0
    %1251 = vmatpush1.bf16.msra.mxu0 %v1246
    %1252 = vmatprep.subr.bf16.mxu0 0
    %1253 = vmatpush1.bf16.msra.mxu0 %v1247
    %1254 = vmatprep.subr.bf16.mxu0 0
    %1255 = vmatpush1.bf16.msra.mxu0 0
    %1256 = vmatprep.subr.bf16.mxu0 0
    %1257 = vmatpush1.bf16.msra.mxu0 0
    %1258 = vmatprep.subr.bf16.mxu0 0
    %1259 = vmatpush1.bf16.msra.mxu0 0
    %1260 = vmatprep.subr.bf16.mxu0 0
    %1261 = vmatpush1.bf16.msra.mxu0 0
    %1262 = vmatprep.subr.bf16.mxu0 0
    %1263 = vmatpush1.bf16.msra.mxu0 0
    %1264 = vmatprep.subr.bf16.mxu0 0
    %1265 = vmatpush1.bf16.msra.mxu0 0
    %1266 = vmatprep.subr.bf16.mxu0 0
    %1267 = vmatpush1.bf16.msra.mxu0 0
    %1268 = vmatprep.subr.bf16.mxu0 0
    %1269 = vmatpush1.bf16.msra.mxu0 0
    %1270 = vmatprep.subr.bf16.mxu0 0
    %1271 = vmatpush1.bf16.msra.mxu0 0
    %1272 = vmatprep.subr.bf16.mxu0 0
    %1273 = vmatpush1.bf16.msra.mxu0 0
    %1274 = vmatprep.subr.bf16.mxu0 0
    %1275 = vmatpush1.bf16.msra.mxu0 0
    %1276 = vmatprep.subr.bf16.mxu0 0
    %1277 = vmatpush1.bf16.msra.mxu0 0
    %1278 = vmatprep.subr.bf16.mxu0 0
    %1279 = vmatpush1.bf16.msra.mxu0 0
    %1280 = vmatprep.subr.bf16.mxu0 0
    %1281 = vmatpush1.bf16.msra.mxu0 0
    %1282 = vmatprep.mubr.bf16.mxu0 0
    %1283 = vmatmul.mubr.bf16.gmra.mrb[0].mxu0 %v1185
    %v1284 = vpop.f32.mrb[0].mxu0
    %v1285 = vadd.f32 %v1237, %v1284
    %v1286 = vpop.f32.mrb[0].mxu0
    %v1287 = vpop.f32.mrb[0].mxu0
    %v1288 = vadd.f32 %v1237, %v1287
    %v1289 = vpop.f32.mrb[0].mxu0
    %1290 = vdwg.mxu0
    %s1291 = scalar_lea.vmem %s4, 80
    %v1292 = vld [vmem:[%s1291] sm:$0xf]
    %v1293 = vld [vmem:[%s1291 + $0x4] sm:$0xf]
    %v1294 = vld [vmem:[%s1291 + $0x8] sm:$0xf]
    %v1295 = vld [vmem:[%s1291 + $0xc] sm:$0xf]
    %v1296 = vld [vmem:[%s3 + $0xf] sm:$0x1]
    %v1297 = vlaneseq
    %v1298 = vshrl.u32 %v1297, 7
    %v1299 = vsub.s32 0, %v1298
    %v1300 = vrot.slane %v1296, %v1299
    %v1305 = vunpack.c.l.b16 %v1292
    %v1306 = vunpack.c.l.b16 %v1293
    %v1307 = vunpack.c.l.b16 %v1294
    %v1308 = vunpack.c.l.b16 %v1295
    %v1309 = vpack.c.b16 %v1306, %v1305
    %v1310 = vpack.c.b16 %v1308, %v1307
    %1313 = vmatprep.subr.bf16.mxu0 0
    %1314 = vmatpush1.bf16.msra.mxu0 %v1309
    %1315 = vmatprep.subr.bf16.mxu0 0
    %1316 = vmatpush1.bf16.msra.mxu0 %v1310
    %1317 = vmatprep.subr.bf16.mxu0 0
    %1318 = vmatpush1.bf16.msra.mxu0 0
    %1319 = vmatprep.subr.bf16.mxu0 0
    %1320 = vmatpush1.bf16.msra.mxu0 0
    %1321 = vmatprep.subr.bf16.mxu0 0
    %1322 = vmatpush1.bf16.msra.mxu0 0
    %1323 = vmatprep.subr.bf16.mxu0 0
    %1324 = vmatpush1.bf16.msra.mxu0 0
    %1325 = vmatprep.subr.bf16.mxu0 0
    %1326 = vmatpush1.bf16.msra.mxu0 0
    %1327 = vmatprep.subr.bf16.mxu0 0
    %1328 = vmatpush1.bf16.msra.mxu0 0
    %1329 = vmatprep.subr.bf16.mxu0 0
    %1330 = vmatpush1.bf16.msra.mxu0 0
    %1331 = vmatprep.subr.bf16.mxu0 0
    %1332 = vmatpush1.bf16.msra.mxu0 0
    %1333 = vmatprep.subr.bf16.mxu0 0
    %1334 = vmatpush1.bf16.msra.mxu0 0
    %1335 = vmatprep.subr.bf16.mxu0 0
    %1336 = vmatpush1.bf16.msra.mxu0 0
    %1337 = vmatprep.subr.bf16.mxu0 0
    %1338 = vmatpush1.bf16.msra.mxu0 0
    %1339 = vmatprep.subr.bf16.mxu0 0
    %1340 = vmatpush1.bf16.msra.mxu0 0
    %1341 = vmatprep.subr.bf16.mxu0 0
    %1342 = vmatpush1.bf16.msra.mxu0 0
    %1343 = vmatprep.subr.bf16.mxu0 0
    %1344 = vmatpush1.bf16.msra.mxu0 0
    %1345 = vmatprep.mubr.bf16.mxu0 0
    %1346 = vmatmul.mubr.bf16.gmra.mrb[0].mxu0 %v1185
    %v1347 = vpop.f32.mrb[0].mxu0
    %v1348 = vadd.f32 %v1300, %v1347
    %v1349 = vpop.f32.mrb[0].mxu0
    %v1350 = vpop.f32.mrb[0].mxu0
    %v1351 = vadd.f32 %v1300, %v1350
    %v1352 = vpop.f32.mrb[0].mxu0
    %1353 = vdwg.mxu0
    %v1354 = vpack.c.bf16 %v1288, %v1285
    %v1355 = vmul.f32 %v1222, %v115
    %v1356 = vmul.f32 %v1225, %v115
    %v1357 = vpack.c.bf16 %v1356, %v1355
    %v1359 = vsel %vm135, %v1357, 0
    %v1362 = vsel %vm135, %v1354, 0
    %1364 = vmatprep.subr.bf16.mxu0 0
    %1365 = vmatpush1.bf16.xpose.msra.mxu0 %v1362
    %1366 = vmatprep.subr.bf16.mxu0 0
    %1367 = vmatpush1.bf16.xpose.msra.mxu0 0
    %1368 = vmatprep.subr.bf16.mxu0 0
    %1369 = vmatpush1.bf16.xpose.msra.mxu0 0
    %1370 = vmatprep.subr.bf16.mxu0 0
    %1371 = vmatpush1.bf16.xpose.msra.mxu0 0
    %1372 = vmatprep.subr.bf16.mxu0 0
    %1373 = vmatpush1.bf16.xpose.msra.mxu0 0
    %1374 = vmatprep.subr.bf16.mxu0 0
    %1375 = vmatpush1.bf16.xpose.msra.mxu0 0
    %1376 = vmatprep.subr.bf16.mxu0 0
    %1377 = vmatpush1.bf16.xpose.msra.mxu0 0
    %1378 = vmatprep.subr.bf16.mxu0 0
    %1379 = vmatpush1.bf16.xpose.msra.mxu0 0
    %1380 = vmatprep.subr.bf16.mxu0 0
    %1381 = vmatpush1.bf16.xpose.msra.mxu0 0
    %1382 = vmatprep.subr.bf16.mxu0 0
    %1383 = vmatpush1.bf16.xpose.msra.mxu0 0
    %1384 = vmatprep.subr.bf16.mxu0 0
    %1385 = vmatpush1.bf16.xpose.msra.mxu0 0
    %1386 = vmatprep.subr.bf16.mxu0 0
    %1387 = vmatpush1.bf16.xpose.msra.mxu0 0
    %1388 = vmatprep.subr.bf16.mxu0 0
    %1389 = vmatpush1.bf16.xpose.msra.mxu0 0
    %1390 = vmatprep.subr.bf16.mxu0 0
    %1391 = vmatpush1.bf16.xpose.msra.mxu0 0
    %1392 = vmatprep.subr.bf16.mxu0 0
    %1393 = vmatpush1.bf16.xpose.msra.mxu0 0
    %1394 = vmatprep.subr.bf16.mxu0 0
    %1395 = vmatpush1.bf16.xpose.msra.mxu0 0
    %1396 = vmatprep.mubr.bf16.mxu0 0
    %1397 = vmatmul.mubr.bf16.gmra.mrb[0].mxu0 %v1359
    %v1398 = vpop.f32.mrb[0].mxu0
    %v1399 = vadd.f32 %v109, %v1398
    %v1400 = vpop.f32.mrb[0].mxu0
    %v1401 = vpop.f32.mrb[0].mxu0
    %v1402 = vadd.f32 %v110, %v1401
    %v1403 = vpop.f32.mrb[0].mxu0
    %1404 = vdwg.mxu0
    %v1405 = vsel %vm418, %v1399, -inf
    %1406 = vmax.xlane.f32.xlu0 %v1405
    %v1407 = vpop.xlane.xlu0 %1406
    %v1408 = vsel %vm418, %v1402, -inf
    %1409 = vmax.xlane.f32.xlu0 %v1408
    %v1410 = vpop.xlane.xlu0 %1409
    %v1411 = vsub.f32 %v1399, %v1407
    %v1412 = vsub.f32 %v1402, %v1410
    %v1413 = vmul.f32 %v1411, 1.442695
    %v1414 = vpow.pop %v1413
    %v1415 = vmul.f32 %v1412, 1.442695
    %v1416 = vpow.pop %v1415
    %v1417 = vsel %vm418, %v1414, 0.0
    %1418 = vadd.xlane.f32.xlu0 %v1417
    %v1419 = vpop.xlane.xlu0 %1418
    %v1420 = vsel %vm418, %v1416, 0.0
    %1421 = vadd.xlane.f32.xlu0 %v1420
    %v1422 = vpop.xlane.xlu0 %1421
    %v1423 = vrcp.pop %v1419
    %v1424 = vrcp.pop %v1422
    %v1425 = vmul.f32 %v1414, %v1423
    %v1426 = vmul.f32 %v1416, %v1424
    %v1427 = vmul.f32 %v1348, %v115
    %v1428 = vmul.f32 %v1351, %v115
    %v1429 = vpack.c.bf16 %v1428, %v1427
    %v1430 = vpack.c.bf16 %v1426, %v1425
    %v1431 = vmul.f32 %v1222, %v120
    %v1432 = vmul.f32 %v1225, %v120
    %v1433 = vpack.c.bf16 %v1432, %v1431
    %v1435 = vsel %vm135, %v1433, 0
    %1437 = vmatprep.subr.bf16.mxu0 0
    %1438 = vmatpush1.bf16.xpose.msra.mxu0 %v1362
    %1439 = vmatprep.subr.bf16.mxu0 0
    %1440 = vmatpush1.bf16.xpose.msra.mxu0 0
    %1441 = vmatprep.subr.bf16.mxu0 0
    %1442 = vmatpush1.bf16.xpose.msra.mxu0 0
    %1443 = vmatprep.subr.bf16.mxu0 0
    %1444 = vmatpush1.bf16.xpose.msra.mxu0 0
    %1445 = vmatprep.subr.bf16.mxu0 0
    %1446 = vmatpush1.bf16.xpose.msra.mxu0 0
    %1447 = vmatprep.subr.bf16.mxu0 0
    %1448 = vmatpush1.bf16.xpose.msra.mxu0 0
    %1449 = vmatprep.subr.bf16.mxu0 0
    %1450 = vmatpush1.bf16.xpose.msra.mxu0 0
    %1451 = vmatprep.subr.bf16.mxu0 0
    %1452 = vmatpush1.bf16.xpose.msra.mxu0 0
    %1453 = vmatprep.subr.bf16.mxu0 0
    %1454 = vmatpush1.bf16.xpose.msra.mxu0 0
    %1455 = vmatprep.subr.bf16.mxu0 0
    %1456 = vmatpush1.bf16.xpose.msra.mxu0 0
    %1457 = vmatprep.subr.bf16.mxu0 0
    %1458 = vmatpush1.bf16.xpose.msra.mxu0 0
    %1459 = vmatprep.subr.bf16.mxu0 0
    %1460 = vmatpush1.bf16.xpose.msra.mxu0 0
    %1461 = vmatprep.subr.bf16.mxu0 0
    %1462 = vmatpush1.bf16.xpose.msra.mxu0 0
    %1463 = vmatprep.subr.bf16.mxu0 0
    %1464 = vmatpush1.bf16.xpose.msra.mxu0 0
    %1465 = vmatprep.subr.bf16.mxu0 0
    %1466 = vmatpush1.bf16.xpose.msra.mxu0 0
    %1467 = vmatprep.subr.bf16.mxu0 0
    %1468 = vmatpush1.bf16.xpose.msra.mxu0 0
    %1469 = vmatprep.mubr.bf16.mxu0 0
    %1470 = vmatmul.mubr.bf16.gmra.mrb[0].mxu0 %v1435
    %v1471 = vpop.f32.mrb[0].mxu0
    %v1472 = vadd.f32 %v109, %v1471
    %v1473 = vpop.f32.mrb[0].mxu0
    %v1474 = vpop.f32.mrb[0].mxu0
    %v1475 = vadd.f32 %v110, %v1474
    %v1476 = vpop.f32.mrb[0].mxu0
    %1477 = vdwg.mxu0
    %v1478 = vsel %vm418, %v1472, -inf
    %1479 = vmax.xlane.f32.xlu0 %v1478
    %v1480 = vpop.xlane.xlu0 %1479
    %v1481 = vsel %vm418, %v1475, -inf
    %1482 = vmax.xlane.f32.xlu0 %v1481
    %v1483 = vpop.xlane.xlu0 %1482
    %v1484 = vsub.f32 %v1472, %v1480
    %v1485 = vsub.f32 %v1475, %v1483
    %v1486 = vmul.f32 %v1484, 1.442695
    %v1487 = vpow.pop %v1486
    %v1488 = vmul.f32 %v1485, 1.442695
    %v1489 = vpow.pop %v1488
    %v1490 = vsel %vm418, %v1487, 0.0
    %1491 = vadd.xlane.f32.xlu0 %v1490
    %v1492 = vpop.xlane.xlu0 %1491
    %v1493 = vsel %vm418, %v1489, 0.0
    %1494 = vadd.xlane.f32.xlu0 %v1493
    %v1495 = vpop.xlane.xlu0 %1494
    %v1496 = vrcp.pop %v1492
    %v1497 = vrcp.pop %v1495
    %v1498 = vmul.f32 %v1487, %v1496
    %v1499 = vmul.f32 %v1489, %v1497
    %v1500 = vmul.f32 %v1348, %v120
    %v1501 = vmul.f32 %v1351, %v120
    %v1502 = vpack.c.bf16 %v1501, %v1500
    %v1503 = vpack.c.bf16 %v1499, %v1498
    %v1505 = vsel %vm418, %v1503, 0
    %1507 = vmatprep.subr.bf16.mxu0 0
    %1508 = vmatpush1.bf16.msra.mxu0 %v1502
    %1509 = vmatprep.subr.bf16.mxu0 0
    %1510 = vmatpush1.bf16.msra.mxu0 0
    %1511 = vmatprep.subr.bf16.mxu0 0
    %1512 = vmatpush1.bf16.msra.mxu0 0
    %1513 = vmatprep.subr.bf16.mxu0 0
    %1514 = vmatpush1.bf16.msra.mxu0 0
    %1515 = vmatprep.subr.bf16.mxu0 0
    %1516 = vmatpush1.bf16.msra.mxu0 0
    %1517 = vmatprep.subr.bf16.mxu0 0
    %1518 = vmatpush1.bf16.msra.mxu0 0
    %1519 = vmatprep.subr.bf16.mxu0 0
    %1520 = vmatpush1.bf16.msra.mxu0 0
    %1521 = vmatprep.subr.bf16.mxu0 0
    %1522 = vmatpush1.bf16.msra.mxu0 0
    %1523 = vmatprep.subr.bf16.mxu0 0
    %1524 = vmatpush1.bf16.msra.mxu0 0
    %1525 = vmatprep.subr.bf16.mxu0 0
    %1526 = vmatpush1.bf16.msra.mxu0 0
    %1527 = vmatprep.subr.bf16.mxu0 0
    %1528 = vmatpush1.bf16.msra.mxu0 0
    %1529 = vmatprep.subr.bf16.mxu0 0
    %1530 = vmatpush1.bf16.msra.mxu0 0
    %1531 = vmatprep.subr.bf16.mxu0 0
    %1532 = vmatpush1.bf16.msra.mxu0 0
    %1533 = vmatprep.subr.bf16.mxu0 0
    %1534 = vmatpush1.bf16.msra.mxu0 0
    %1535 = vmatprep.subr.bf16.mxu0 0
    %1536 = vmatpush1.bf16.msra.mxu0 0
    %1537 = vmatprep.subr.bf16.mxu0 0
    %1538 = vmatpush1.bf16.msra.mxu0 0
    %1539 = vmatprep.mubr.bf16.mxu0 0
    %1540 = vmatmul.mubr.bf16.gmra.mrb[0].mxu0 %v1505
    %v1541 = vpop.f32.mrb[0].mxu0
    %v1542 = vadd.f32 0.0, %v1541
    %v1543 = vpop.f32.mrb[0].mxu0
    %v1544 = vpop.f32.mrb[0].mxu0
    %v1545 = vadd.f32 0.0, %v1544
    %v1546 = vpop.f32.mrb[0].mxu0
    %1547 = vdwg.mxu0
    %v1549 = vsel %vm418, %v1430, 0
    %1551 = vmatprep.subr.bf16.mxu0 0
    %1552 = vmatpush1.bf16.msra.mxu0 %v1429
    %1553 = vmatprep.subr.bf16.mxu0 0
    %1554 = vmatpush1.bf16.msra.mxu0 0
    %1555 = vmatprep.subr.bf16.mxu0 0
    %1556 = vmatpush1.bf16.msra.mxu0 0
    %1557 = vmatprep.subr.bf16.mxu0 0
    %1558 = vmatpush1.bf16.msra.mxu0 0
    %1559 = vmatprep.subr.bf16.mxu0 0
    %1560 = vmatpush1.bf16.msra.mxu0 0
    %1561 = vmatprep.subr.bf16.mxu0 0
    %1562 = vmatpush1.bf16.msra.mxu0 0
    %1563 = vmatprep.subr.bf16.mxu0 0
    %1564 = vmatpush1.bf16.msra.mxu0 0
    %1565 = vmatprep.subr.bf16.mxu0 0
    %1566 = vmatpush1.bf16.msra.mxu0 0
    %1567 = vmatprep.subr.bf16.mxu0 0
    %1568 = vmatpush1.bf16.msra.mxu0 0
    %1569 = vmatprep.subr.bf16.mxu0 0
    %1570 = vmatpush1.bf16.msra.mxu0 0
    %1571 = vmatprep.subr.bf16.mxu0 0
    %1572 = vmatpush1.bf16.msra.mxu0 0
    %1573 = vmatprep.subr.bf16.mxu0 0
    %1574 = vmatpush1.bf16.msra.mxu0 0
    %1575 = vmatprep.subr.bf16.mxu0 0
    %1576 = vmatpush1.bf16.msra.mxu0 0
    %1577 = vmatprep.subr.bf16.mxu0 0
    %1578 = vmatpush1.bf16.msra.mxu0 0
    %1579 = vmatprep.subr.bf16.mxu0 0
    %1580 = vmatpush1.bf16.msra.mxu0 0
    %1581 = vmatprep.subr.bf16.mxu0 0
    %1582 = vmatpush1.bf16.msra.mxu0 0
    %1583 = vmatprep.mubr.bf16.mxu0 0
    %1584 = vmatmul.mubr.bf16.gmra.mrb[0].mxu0 %v1549
    %v1585 = vpop.f32.mrb[0].mxu0
    %v1586 = vadd.f32 %v1542, %v1585
    %v1587 = vpop.f32.mrb[0].mxu0
    %v1588 = vpop.f32.mrb[0].mxu0
    %v1589 = vadd.f32 %v1545, %v1588
    %v1590 = vpop.f32.mrb[0].mxu0
    %1591 = vdwg.mxu0
    %v1592 = vmul.f32 %v1222, %v125
    %v1593 = vmul.f32 %v1225, %v125
    %v1594 = vpack.c.bf16 %v1593, %v1592
    %v1596 = vsel %vm135, %v1594, 0
    %1598 = vmatprep.subr.bf16.mxu0 0
    %1599 = vmatpush1.bf16.xpose.msra.mxu0 %v1362
    %1600 = vmatprep.subr.bf16.mxu0 0
    %1601 = vmatpush1.bf16.xpose.msra.mxu0 0
    %1602 = vmatprep.subr.bf16.mxu0 0
    %1603 = vmatpush1.bf16.xpose.msra.mxu0 0
    %1604 = vmatprep.subr.bf16.mxu0 0
    %1605 = vmatpush1.bf16.xpose.msra.mxu0 0
    %1606 = vmatprep.subr.bf16.mxu0 0
    %1607 = vmatpush1.bf16.xpose.msra.mxu0 0
    %1608 = vmatprep.subr.bf16.mxu0 0
    %1609 = vmatpush1.bf16.xpose.msra.mxu0 0
    %1610 = vmatprep.subr.bf16.mxu0 0
    %1611 = vmatpush1.bf16.xpose.msra.mxu0 0
    %1612 = vmatprep.subr.bf16.mxu0 0
    %1613 = vmatpush1.bf16.xpose.msra.mxu0 0
    %1614 = vmatprep.subr.bf16.mxu0 0
    %1615 = vmatpush1.bf16.xpose.msra.mxu0 0
    %1616 = vmatprep.subr.bf16.mxu0 0
    %1617 = vmatpush1.bf16.xpose.msra.mxu0 0
    %1618 = vmatprep.subr.bf16.mxu0 0
    %1619 = vmatpush1.bf16.xpose.msra.mxu0 0
    %1620 = vmatprep.subr.bf16.mxu0 0
    %1621 = vmatpush1.bf16.xpose.msra.mxu0 0
    %1622 = vmatprep.subr.bf16.mxu0 0
    %1623 = vmatpush1.bf16.xpose.msra.mxu0 0
    %1624 = vmatprep.subr.bf16.mxu0 0
    %1625 = vmatpush1.bf16.xpose.msra.mxu0 0
    %1626 = vmatprep.subr.bf16.mxu0 0
    %1627 = vmatpush1.bf16.xpose.msra.mxu0 0
    %1628 = vmatprep.subr.bf16.mxu0 0
    %1629 = vmatpush1.bf16.xpose.msra.mxu0 0
    %1630 = vmatprep.mubr.bf16.mxu0 0
    %1631 = vmatmul.mubr.bf16.gmra.mrb[0].mxu0 %v1596
    %v1632 = vpop.f32.mrb[0].mxu0
    %v1633 = vadd.f32 %v109, %v1632
    %v1634 = vpop.f32.mrb[0].mxu0
    %v1635 = vpop.f32.mrb[0].mxu0
    %v1636 = vadd.f32 %v110, %v1635
    %v1637 = vpop.f32.mrb[0].mxu0
    %1638 = vdwg.mxu0
    %v1639 = vsel %vm418, %v1633, -inf
    %1640 = vmax.xlane.f32.xlu0 %v1639
    %v1641 = vpop.xlane.xlu0 %1640
    %v1642 = vsel %vm418, %v1636, -inf
    %1643 = vmax.xlane.f32.xlu0 %v1642
    %v1644 = vpop.xlane.xlu0 %1643
    %v1645 = vsub.f32 %v1633, %v1641
    %v1646 = vsub.f32 %v1636, %v1644
    %v1647 = vmul.f32 %v1645, 1.442695
    %v1648 = vpow.pop %v1647
    %v1649 = vmul.f32 %v1646, 1.442695
    %v1650 = vpow.pop %v1649
    %v1651 = vsel %vm418, %v1648, 0.0
    %1652 = vadd.xlane.f32.xlu0 %v1651
    %v1653 = vpop.xlane.xlu0 %1652
    %v1654 = vsel %vm418, %v1650, 0.0
    %1655 = vadd.xlane.f32.xlu0 %v1654
    %v1656 = vpop.xlane.xlu0 %1655
    %v1657 = vrcp.pop %v1653
    %v1658 = vrcp.pop %v1656
    %v1659 = vmul.f32 %v1648, %v1657
    %v1660 = vmul.f32 %v1650, %v1658
    %v1661 = vmul.f32 %v1348, %v125
    %v1662 = vmul.f32 %v1351, %v125
    %v1663 = vpack.c.bf16 %v1662, %v1661
    %v1664 = vpack.c.bf16 %v1660, %v1659
    %v1666 = vsel %vm418, %v1664, 0
    %1668 = vmatprep.subr.bf16.mxu0 0
    %1669 = vmatpush1.bf16.msra.mxu0 %v1663
    %1670 = vmatprep.subr.bf16.mxu0 0
    %1671 = vmatpush1.bf16.msra.mxu0 0
    %1672 = vmatprep.subr.bf16.mxu0 0
    %1673 = vmatpush1.bf16.msra.mxu0 0
    %1674 = vmatprep.subr.bf16.mxu0 0
    %1675 = vmatpush1.bf16.msra.mxu0 0
    %1676 = vmatprep.subr.bf16.mxu0 0
    %1677 = vmatpush1.bf16.msra.mxu0 0
    %1678 = vmatprep.subr.bf16.mxu0 0
    %1679 = vmatpush1.bf16.msra.mxu0 0
    %1680 = vmatprep.subr.bf16.mxu0 0
    %1681 = vmatpush1.bf16.msra.mxu0 0
    %1682 = vmatprep.subr.bf16.mxu0 0
    %1683 = vmatpush1.bf16.msra.mxu0 0
    %1684 = vmatprep.subr.bf16.mxu0 0
    %1685 = vmatpush1.bf16.msra.mxu0 0
    %1686 = vmatprep.subr.bf16.mxu0 0
    %1687 = vmatpush1.bf16.msra.mxu0 0
    %1688 = vmatprep.subr.bf16.mxu0 0
    %1689 = vmatpush1.bf16.msra.mxu0 0
    %1690 = vmatprep.subr.bf16.mxu0 0
    %1691 = vmatpush1.bf16.msra.mxu0 0
    %1692 = vmatprep.subr.bf16.mxu0 0
    %1693 = vmatpush1.bf16.msra.mxu0 0
    %1694 = vmatprep.subr.bf16.mxu0 0
    %1695 = vmatpush1.bf16.msra.mxu0 0
    %1696 = vmatprep.subr.bf16.mxu0 0
    %1697 = vmatpush1.bf16.msra.mxu0 0
    %1698 = vmatprep.subr.bf16.mxu0 0
    %1699 = vmatpush1.bf16.msra.mxu0 0
    %1700 = vmatprep.mubr.bf16.mxu0 0
    %1701 = vmatmul.mubr.bf16.gmra.mrb[0].mxu0 %v1666
    %v1702 = vpop.f32.mrb[0].mxu0
    %v1703 = vadd.f32 0.0, %v1702
    %v1704 = vpop.f32.mrb[0].mxu0
    %v1705 = vpop.f32.mrb[0].mxu0
    %v1706 = vadd.f32 0.0, %v1705
    %v1707 = vpop.f32.mrb[0].mxu0
    %1708 = vdwg.mxu0
    %v1709 = vadd.f32 %v1586, %v1703
    %v1710 = vadd.f32 %v1589, %v1706
    %v1711 = vmul.f32 %v1222, %v130
    %v1712 = vmul.f32 %v1225, %v130
    %v1713 = vpack.c.bf16 %v1712, %v1711
    %v1715 = vsel %vm135, %v1713, 0
    %1717 = vmatprep.subr.bf16.mxu0 0
    %1718 = vmatpush1.bf16.xpose.msra.mxu0 %v1362
    %1719 = vmatprep.subr.bf16.mxu0 0
    %1720 = vmatpush1.bf16.xpose.msra.mxu0 0
    %1721 = vmatprep.subr.bf16.mxu0 0
    %1722 = vmatpush1.bf16.xpose.msra.mxu0 0
    %1723 = vmatprep.subr.bf16.mxu0 0
    %1724 = vmatpush1.bf16.xpose.msra.mxu0 0
    %1725 = vmatprep.subr.bf16.mxu0 0
    %1726 = vmatpush1.bf16.xpose.msra.mxu0 0
    %1727 = vmatprep.subr.bf16.mxu0 0
    %1728 = vmatpush1.bf16.xpose.msra.mxu0 0
    %1729 = vmatprep.subr.bf16.mxu0 0
    %1730 = vmatpush1.bf16.xpose.msra.mxu0 0
    %1731 = vmatprep.subr.bf16.mxu0 0
    %1732 = vmatpush1.bf16.xpose.msra.mxu0 0
    %1733 = vmatprep.subr.bf16.mxu0 0
    %1734 = vmatpush1.bf16.xpose.msra.mxu0 0
    %1735 = vmatprep.subr.bf16.mxu0 0
    %1736 = vmatpush1.bf16.xpose.msra.mxu0 0
    %1737 = vmatprep.subr.bf16.mxu0 0
    %1738 = vmatpush1.bf16.xpose.msra.mxu0 0
    %1739 = vmatprep.subr.bf16.mxu0 0
    %1740 = vmatpush1.bf16.xpose.msra.mxu0 0
    %1741 = vmatprep.subr.bf16.mxu0 0
    %1742 = vmatpush1.bf16.xpose.msra.mxu0 0
    %1743 = vmatprep.subr.bf16.mxu0 0
    %1744 = vmatpush1.bf16.xpose.msra.mxu0 0
    %1745 = vmatprep.subr.bf16.mxu0 0
    %1746 = vmatpush1.bf16.xpose.msra.mxu0 0
    %1747 = vmatprep.subr.bf16.mxu0 0
    %1748 = vmatpush1.bf16.xpose.msra.mxu0 0
    %1749 = vmatprep.mubr.bf16.mxu0 0
    %1750 = vmatmul.mubr.bf16.gmra.mrb[0].mxu0 %v1715
    %v1751 = vpop.f32.mrb[0].mxu0
    %v1752 = vadd.f32 %v109, %v1751
    %v1753 = vpop.f32.mrb[0].mxu0
    %v1754 = vpop.f32.mrb[0].mxu0
    %v1755 = vadd.f32 %v110, %v1754
    %v1756 = vpop.f32.mrb[0].mxu0
    %1757 = vdwg.mxu0
    %v1758 = vsel %vm418, %v1752, -inf
    %1759 = vmax.xlane.f32.xlu0 %v1758
    %v1760 = vpop.xlane.xlu0 %1759
    %v1761 = vsel %vm418, %v1755, -inf
    %1762 = vmax.xlane.f32.xlu0 %v1761
    %v1763 = vpop.xlane.xlu0 %1762
    %v1764 = vsub.f32 %v1752, %v1760
    %v1765 = vsub.f32 %v1755, %v1763
    %v1766 = vmul.f32 %v1764, 1.442695
    %v1767 = vpow.pop %v1766
    %v1768 = vmul.f32 %v1765, 1.442695
    %v1769 = vpow.pop %v1768
    %v1770 = vsel %vm418, %v1767, 0.0
    %1771 = vadd.xlane.f32.xlu0 %v1770
    %v1772 = vpop.xlane.xlu0 %1771
    %v1773 = vsel %vm418, %v1769, 0.0
    %1774 = vadd.xlane.f32.xlu0 %v1773
    %v1775 = vpop.xlane.xlu0 %1774
    %v1776 = vrcp.pop %v1772
    %v1777 = vrcp.pop %v1775
    %v1778 = vmul.f32 %v1767, %v1776
    %v1779 = vmul.f32 %v1769, %v1777
    %v1780 = vmul.f32 %v1348, %v130
    %v1781 = vmul.f32 %v1351, %v130
    %v1782 = vpack.c.bf16 %v1781, %v1780
    %v1783 = vpack.c.bf16 %v1779, %v1778
    %v1785 = vsel %vm418, %v1783, 0
    %1787 = vmatprep.subr.bf16.mxu0 0
    %1788 = vmatpush1.bf16.msra.mxu0 %v1782
    %1789 = vmatprep.subr.bf16.mxu0 0
    %1790 = vmatpush1.bf16.msra.mxu0 0
    %1791 = vmatprep.subr.bf16.mxu0 0
    %1792 = vmatpush1.bf16.msra.mxu0 0
    %1793 = vmatprep.subr.bf16.mxu0 0
    %1794 = vmatpush1.bf16.msra.mxu0 0
    %1795 = vmatprep.subr.bf16.mxu0 0
    %1796 = vmatpush1.bf16.msra.mxu0 0
    %1797 = vmatprep.subr.bf16.mxu0 0
    %1798 = vmatpush1.bf16.msra.mxu0 0
    %1799 = vmatprep.subr.bf16.mxu0 0
    %1800 = vmatpush1.bf16.msra.mxu0 0
    %1801 = vmatprep.subr.bf16.mxu0 0
    %1802 = vmatpush1.bf16.msra.mxu0 0
    %1803 = vmatprep.subr.bf16.mxu0 0
    %1804 = vmatpush1.bf16.msra.mxu0 0
    %1805 = vmatprep.subr.bf16.mxu0 0
    %1806 = vmatpush1.bf16.msra.mxu0 0
    %1807 = vmatprep.subr.bf16.mxu0 0
    %1808 = vmatpush1.bf16.msra.mxu0 0
    %1809 = vmatprep.subr.bf16.mxu0 0
    %1810 = vmatpush1.bf16.msra.mxu0 0
    %1811 = vmatprep.subr.bf16.mxu0 0
    %1812 = vmatpush1.bf16.msra.mxu0 0
    %1813 = vmatprep.subr.bf16.mxu0 0
    %1814 = vmatpush1.bf16.msra.mxu0 0
    %1815 = vmatprep.subr.bf16.mxu0 0
    %1816 = vmatpush1.bf16.msra.mxu0 0
    %1817 = vmatprep.subr.bf16.mxu0 0
    %1818 = vmatpush1.bf16.msra.mxu0 0
    %1819 = vmatprep.mubr.bf16.mxu0 0
    %1820 = vmatmul.mubr.bf16.gmra.mrb[0].mxu0 %v1785
    %v1821 = vpop.f32.mrb[0].mxu0
    %v1822 = vadd.f32 0.0, %v1821
    %v1823 = vpop.f32.mrb[0].mxu0
    %v1824 = vpop.f32.mrb[0].mxu0
    %v1825 = vadd.f32 0.0, %v1824
    %v1826 = vpop.f32.mrb[0].mxu0
    %1827 = vdwg.mxu0
    %v1828 = vadd.f32 %v1709, %v1822
    %v1829 = vadd.f32 %v1710, %v1825
    %v1830 = vpack.c.bf16 %v1829, %v1828
    %s1831 = scalar_lea.vmem %s5, 16
    %v1832 = vld [vmem:[%s1831] sm:$0xf]
    %v1833 = vld [vmem:[%s1831 + $0x4] sm:$0xf]
    %v1834 = vld [vmem:[%s1831 + $0x8] sm:$0xf]
    %v1835 = vld [vmem:[%s1831 + $0xc] sm:$0xf]
    %v1836 = vld [vmem:[%s3 + $0x10] sm:$0x1]
    %v1837 = vlaneseq
    %v1838 = vshrl.u32 %v1837, 7
    %v1839 = vsub.s32 0, %v1838
    %v1840 = vrot.slane %v1836, %v1839
    %v1845 = vunpack.c.l.b16 %v1832
    %v1846 = vunpack.c.l.b16 %v1833
    %v1847 = vunpack.c.l.b16 %v1834
    %v1848 = vunpack.c.l.b16 %v1835
    %v1849 = vpack.c.b16 %v1846, %v1845
    %v1850 = vpack.c.b16 %v1848, %v1847
    %v1854 = vsel %vm135, %v1830, 0
    %1856 = vmatprep.subr.bf16.mxu0 0
    %1857 = vmatpush1.bf16.msra.mxu0 %v1849
    %1858 = vmatprep.subr.bf16.mxu0 0
    %1859 = vmatpush1.bf16.msra.mxu0 %v1850
    %1860 = vmatprep.subr.bf16.mxu0 0
    %1861 = vmatpush1.bf16.msra.mxu0 0
    %1862 = vmatprep.subr.bf16.mxu0 0
    %1863 = vmatpush1.bf16.msra.mxu0 0
    %1864 = vmatprep.subr.bf16.mxu0 0
    %1865 = vmatpush1.bf16.msra.mxu0 0
    %1866 = vmatprep.subr.bf16.mxu0 0
    %1867 = vmatpush1.bf16.msra.mxu0 0
    %1868 = vmatprep.subr.bf16.mxu0 0
    %1869 = vmatpush1.bf16.msra.mxu0 0
    %1870 = vmatprep.subr.bf16.mxu0 0
    %1871 = vmatpush1.bf16.msra.mxu0 0
    %1872 = vmatprep.subr.bf16.mxu0 0
    %1873 = vmatpush1.bf16.msra.mxu0 0
    %1874 = vmatprep.subr.bf16.mxu0 0
    %1875 = vmatpush1.bf16.msra.mxu0 0
    %1876 = vmatprep.subr.bf16.mxu0 0
    %1877 = vmatpush1.bf16.msra.mxu0 0
    %1878 = vmatprep.subr.bf16.mxu0 0
    %1879 = vmatpush1.bf16.msra.mxu0 0
    %1880 = vmatprep.subr.bf16.mxu0 0
    %1881 = vmatpush1.bf16.msra.mxu0 0
    %1882 = vmatprep.subr.bf16.mxu0 0
    %1883 = vmatpush1.bf16.msra.mxu0 0
    %1884 = vmatprep.subr.bf16.mxu0 0
    %1885 = vmatpush1.bf16.msra.mxu0 0
    %1886 = vmatprep.subr.bf16.mxu0 0
    %1887 = vmatpush1.bf16.msra.mxu0 0
    %1888 = vmatprep.mubr.bf16.mxu0 0
    %1889 = vmatmul.mubr.bf16.gmra.mrb[0].mxu0 %v1854
    %v1890 = vpop.f32.mrb[0].mxu0
    %v1891 = vadd.f32 %v1840, %v1890
    %v1892 = vpop.f32.mrb[0].mxu0
    %v1893 = vpop.f32.mrb[0].mxu0
    %v1894 = vadd.f32 %v1840, %v1893
    %v1895 = vpop.f32.mrb[0].mxu0
    %1896 = vdwg.mxu0
    %v1897 = vadd.f32 %v1891, %v1159
    %v1898 = vadd.f32 %v1894, %v1160
    %v1899 = vld [vmem:[%s3 + $0x11] sm:$0x1]
    %v1900 = vld [vmem:[%s3 + $0x12] sm:$0x1]
    %v1901 = vsel %vm135, %v1897, 0.0
    %1902 = vadd.xlane.f32.xlu0 %v1901
    %v1903 = vpop.xlane.xlu0 %1902
    %v1904 = vsel %vm135, %v1898, 0.0
    %1905 = vadd.xlane.f32.xlu0 %v1904
    %v1906 = vpop.xlane.xlu0 %1905
    %v1907 = vmul.f32 %v1903, %v142
    %v1908 = vmul.f32 %v1906, %v142
    %v1909 = vsub.f32 %v1897, %v1907
    %v1910 = vsub.f32 %v1898, %v1908
    %v1911 = vmul.f32 %v1909, %v1909
    %v1912 = vmul.f32 %v1910, %v1910
    %v1913 = vsel %vm135, %v1911, 0.0
    %1914 = vadd.xlane.f32.xlu0 %v1913
    %v1915 = vpop.xlane.xlu0 %1914
    %v1916 = vsel %vm135, %v1912, 0.0
    %1917 = vadd.xlane.f32.xlu0 %v1916
    %v1918 = vpop.xlane.xlu0 %1917
    %v1919 = vmul.f32 %v1915, %v142
    %v1920 = vmul.f32 %v1918, %v142
    %v1921 = vadd.f32 %v1919, 1e-05
    %v1922 = vadd.f32 %v1920, 1e-05
    %v1923 = vrsqrt.pop %v1921
    %v1924 = vrsqrt.pop %v1922
    %v1925 = vmul.f32 %v1909, %v1923
    %v1926 = vmul.f32 %v1910, %v1924
    %v1927 = vlaneseq
    %v1928 = vshrl.u32 %v1927, 7
    %v1929 = vsub.s32 0, %v1928
    %v1930 = vrot.slane %v1899, %v1929
    %v1931 = vmul.f32 %v1925, %v1930
    %v1932 = vmul.f32 %v1926, %v1930
    %v1933 = vlaneseq
    %v1934 = vshrl.u32 %v1933, 7
    %v1935 = vsub.s32 0, %v1934
    %v1936 = vrot.slane %v1900, %v1935
    %v1937 = vadd.f32 %v1931, %v1936
    %v1938 = vadd.f32 %v1932, %v1936
    %v1939 = vpack.c.bf16 %v1938, %v1937
    %s1940 = scalar_lea.vmem %s6, 16
    %v1941 = vld [vmem:[%s1940] sm:$0xf]
    %v1942 = vld [vmem:[%s1940 + $0x4] sm:$0xf]
    %v1943 = vld [vmem:[%s1940 + $0x8] sm:$0xf]
    %v1944 = vld [vmem:[%s1940 + $0xc] sm:$0xf]
    %v1945 = vld [vmem:[%s3 + $0x13] sm:$0x1]
    %v1946 = vlaneseq
    %v1947 = vshrl.u32 %v1946, 7
    %v1948 = vsub.s32 0, %v1947
    %v1949 = vrot.slane %v1945, %v1948
    %v1954 = vunpack.c.l.b16 %v1941
    %v1955 = vunpack.c.l.b16 %v1942
    %v1956 = vunpack.c.l.b16 %v1943
    %v1957 = vunpack.c.l.b16 %v1944
    %v1958 = vpack.c.b16 %v1955, %v1954
    %v1959 = vpack.c.b16 %v1957, %v1956
    %v1963 = vsel %vm135, %v1939, 0
    %1965 = vmatprep.subr.bf16.mxu0 0
    %1966 = vmatpush1.bf16.msra.mxu0 %v1958
    %1967 = vmatprep.subr.bf16.mxu0 0
    %1968 = vmatpush1.bf16.msra.mxu0 %v1959
    %1969 = vmatprep.subr.bf16.mxu0 0
    %1970 = vmatpush1.bf16.msra.mxu0 0
    %1971 = vmatprep.subr.bf16.mxu0 0
    %1972 = vmatpush1.bf16.msra.mxu0 0
    %1973 = vmatprep.subr.bf16.mxu0 0
    %1974 = vmatpush1.bf16.msra.mxu0 0
    %1975 = vmatprep.subr.bf16.mxu0 0
    %1976 = vmatpush1.bf16.msra.mxu0 0
    %1977 = vmatprep.subr.bf16.mxu0 0
    %1978 = vmatpush1.bf16.msra.mxu0 0
    %1979 = vmatprep.subr.bf16.mxu0 0
    %1980 = vmatpush1.bf16.msra.mxu0 0
    %1981 = vmatprep.subr.bf16.mxu0 0
    %1982 = vmatpush1.bf16.msra.mxu0 0
    %1983 = vmatprep.subr.bf16.mxu0 0
    %1984 = vmatpush1.bf16.msra.mxu0 0
    %1985 = vmatprep.subr.bf16.mxu0 0
    %1986 = vmatpush1.bf16.msra.mxu0 0
    %1987 = vmatprep.subr.bf16.mxu0 0
    %1988 = vmatpush1.bf16.msra.mxu0 0
    %1989 = vmatprep.subr.bf16.mxu0 0
    %1990 = vmatpush1.bf16.msra.mxu0 0
    %1991 = vmatprep.subr.bf16.mxu0 0
    %1992 = vmatpush1.bf16.msra.mxu0 0
    %1993 = vmatprep.subr.bf16.mxu0 0
    %1994 = vmatpush1.bf16.msra.mxu0 0
    %1995 = vmatprep.subr.bf16.mxu0 0
    %1996 = vmatpush1.bf16.msra.mxu0 0
    %1997 = vmatprep.mubr.bf16.mxu0 0
    %1998 = vmatmul.mubr.bf16.gmra.mrb[0].mxu0 %v1963
    %v1999 = vpop.f32.mrb[0].mxu0
    %v2000 = vadd.f32 %v1949, %v1999
    %v2001 = vpop.f32.mrb[0].mxu0
    %v2002 = vpop.f32.mrb[0].mxu0
    %v2003 = vadd.f32 %v1949, %v2002
    %v2004 = vpop.f32.mrb[0].mxu0
    %2005 = vdwg.mxu0
    %v2006 = vmul.f32 %v2000, %v2000
    %v2007 = vmul.f32 %v2003, %v2003
    %v2008 = vmul.f32 %v2000, %v2006
    %v2009 = vmul.f32 %v2003, %v2007
    %v2010 = vmul.f32 %v2008, 0.044715
    %v2011 = vmul.f32 %v2009, 0.044715
    %v2012 = vadd.f32 %v2000, %v2010
    %v2013 = vadd.f32 %v2003, %v2011
    %v2014 = vmul.f32 %v2012, 0.7978846
    %v2015 = vmul.f32 %v2013, 0.7978846
    %v2016 = vtanh.pop %v2014
    %v2017 = vtanh.pop %v2015
    %v2018 = vadd.f32 %v2016, 1.0
    %v2019 = vadd.f32 %v2017, 1.0
    %v2020 = vmul.f32 %v2018, 0.5
    %v2021 = vmul.f32 %v2019, 0.5
    %v2022 = vmul.f32 %v2000, %v2020
    %v2023 = vmul.f32 %v2003, %v2021
    %v2024 = vpack.c.bf16 %v2023, %v2022
    %s2025 = scalar_lea.vmem %s7, 32
    %v2026 = vld [vmem:[%s2025] sm:$0xf]
    %v2027 = vld [vmem:[%s2025 + $0x4] sm:$0xf]
    %v2028 = vld [vmem:[%s2025 + $0x8] sm:$0xf]
    %v2029 = vld [vmem:[%s2025 + $0xc] sm:$0xf]
    %v2030 = vld [vmem:[%s2025 + $0x10] sm:$0xf]
    %v2031 = vld [vmem:[%s2025 + $0x14] sm:$0xf]
    %v2032 = vld [vmem:[%s2025 + $0x18] sm:$0xf]
    %v2033 = vld [vmem:[%s2025 + $0x1c] sm:$0xf]
    %v2034 = vld [vmem:[%s3 + $0x14] sm:$0x1]
    %v2035 = vlaneseq
    %v2036 = vshrl.u32 %v2035, 7
    %v2037 = vsub.s32 0, %v2036
    %v2038 = vrot.slane %v2034, %v2037
    %v2047 = vunpack.c.l.b16 %v2026
    %v2048 = vunpack.c.l.b16 %v2027
    %v2049 = vunpack.c.l.b16 %v2028
    %v2050 = vunpack.c.l.b16 %v2029
    %v2051 = vunpack.c.l.b16 %v2030
    %v2052 = vunpack.c.l.b16 %v2031
    %v2053 = vunpack.c.l.b16 %v2032
    %v2054 = vunpack.c.l.b16 %v2033
    %v2055 = vpack.c.b16 %v2048, %v2047
    %v2056 = vpack.c.b16 %v2050, %v2049
    %v2057 = vpack.c.b16 %v2052, %v2051
    %v2058 = vpack.c.b16 %v2054, %v2053
    %v2064 = vsel %vm1074, %v2024, 0
    %2066 = vmatprep.subr.bf16.mxu0 0
    %2067 = vmatpush1.bf16.msra.mxu0 %v2055
    %2068 = vmatprep.subr.bf16.mxu0 0
    %2069 = vmatpush1.bf16.msra.mxu0 %v2056
    %2070 = vmatprep.subr.bf16.mxu0 0
    %2071 = vmatpush1.bf16.msra.mxu0 %v2057
    %2072 = vmatprep.subr.bf16.mxu0 0
    %2073 = vmatpush1.bf16.msra.mxu0 %v2058
    %2074 = vmatprep.subr.bf16.mxu0 0
    %2075 = vmatpush1.bf16.msra.mxu0 0
    %2076 = vmatprep.subr.bf16.mxu0 0
    %2077 = vmatpush1.bf16.msra.mxu0 0
    %2078 = vmatprep.subr.bf16.mxu0 0
    %2079 = vmatpush1.bf16.msra.mxu0 0
    %2080 = vmatprep.subr.bf16.mxu0 0
    %2081 = vmatpush1.bf16.msra.mxu0 0
    %2082 = vmatprep.subr.bf16.mxu0 0
    %2083 = vmatpush1.bf16.msra.mxu0 0
    %2084 = vmatprep.subr.bf16.mxu0 0
    %2085 = vmatpush1.bf16.msra.mxu0 0
    %2086 = vmatprep.subr.bf16.mxu0 0
    %2087 = vmatpush1.bf16.msra.mxu0 0
    %2088 = vmatprep.subr.bf16.mxu0 0
    %2089 = vmatpush1.bf16.msra.mxu0 0
    %2090 = vmatprep.subr.bf16.mxu0 0
    %2091 = vmatpush1.bf16.msra.mxu0 0
    %2092 = vmatprep.subr.bf16.mxu0 0
    %2093 = vmatpush1.bf16.msra.mxu0 0
    %2094 = vmatprep.subr.bf16.mxu0 0
    %2095 = vmatpush1.bf16.msra.mxu0 0
    %2096 = vmatprep.subr.bf16.mxu0 0
    %2097 = vmatpush1.bf16.msra.mxu0 0
    %2098 = vmatprep.mubr.bf16.mxu0 0
    %2099 = vmatmul.mubr.bf16.gmra.mrb[0].mxu0 %v2064
    %v2100 = vpop.f32.mrb[0].mxu0
    %v2101 = vadd.f32 %v2038, %v2100
    %v2102 = vpop.f32.mrb[0].mxu0
    %v2103 = vpop.f32.mrb[0].mxu0
    %v2104 = vadd.f32 %v2038, %v2103
    %v2105 = vpop.f32.mrb[0].mxu0
    %2106 = vdwg.mxu0
    %v2107 = vadd.f32 %v2101, %v1937
    %v2108 = vadd.f32 %v2104, %v1938
    %v2109 = vld [vmem:[%s3 + $0x15] sm:$0x1]
    %v2110 = vld [vmem:[%s3 + $0x16] sm:$0x1]
    %v2111 = vsel %vm135, %v2107, 0.0
    %2112 = vadd.xlane.f32.xlu0 %v2111
    %v2113 = vpop.xlane.xlu0 %2112
    %v2114 = vsel %vm135, %v2108, 0.0
    %2115 = vadd.xlane.f32.xlu0 %v2114
    %v2116 = vpop.xlane.xlu0 %2115
    %v2117 = vmul.f32 %v2113, %v142
    %v2118 = vmul.f32 %v2116, %v142
    %v2119 = vsub.f32 %v2107, %v2117
    %v2120 = vsub.f32 %v2108, %v2118
    %v2121 = vmul.f32 %v2119, %v2119
    %v2122 = vmul.f32 %v2120, %v2120
    %v2123 = vsel %vm135, %v2121, 0.0
    %2124 = vadd.xlane.f32.xlu0 %v2123
    %v2125 = vpop.xlane.xlu0 %2124
    %v2126 = vsel %vm135, %v2122, 0.0
    %2127 = vadd.xlane.f32.xlu0 %v2126
    %v2128 = vpop.xlane.xlu0 %2127
    %v2129 = vmul.f32 %v2125, %v142
    %v2130 = vmul.f32 %v2128, %v142
    %v2131 = vadd.f32 %v2129, 1e-05
    %v2132 = vadd.f32 %v2130, 1e-05
    %v2133 = vrsqrt.pop %v2131
    %v2134 = vrsqrt.pop %v2132
    %v2135 = vmul.f32 %v2119, %v2133
    %v2136 = vmul.f32 %v2120, %v2134
    %v2137 = vlaneseq
    %v2138 = vshrl.u32 %v2137, 7
    %v2139 = vsub.s32 0, %v2138
    %v2140 = vrot.slane %v2109, %v2139
    %v2141 = vmul.f32 %v2135, %v2140
    %v2142 = vmul.f32 %v2136, %v2140
    %v2143 = vlaneseq
    %v2144 = vshrl.u32 %v2143, 7
    %v2145 = vsub.s32 0, %v2144
    %v2146 = vrot.slane %v2110, %v2145
    %v2147 = vadd.f32 %v2141, %v2146
    %v2148 = vadd.f32 %v2142, %v2146
    %v2149 = vmul.u32 %v35, 8
    %vm2150 = vcmp.eq.s32.totalorder %v38, %v2149
    %v2151 = vsel %vm2150, 1, 0
    %v2152 = vcvt.s32.f32 %v2151
    %v2153 = vpack.c.bf16 %v2152, %v2152
    %v2154 = vpack.c.bf16 %v2148, %v2147
    %v2156 = vsel %vm418, %v2153, 0
    %2158 = vmatprep.subr.bf16.mxu0 0
    %2159 = vmatpush1.bf16.msra.mxu0 %v2154
    %2160 = vmatprep.subr.bf16.mxu0 0
    %2161 = vmatpush1.bf16.msra.mxu0 0
    %2162 = vmatprep.subr.bf16.mxu0 0
    %2163 = vmatpush1.bf16.msra.mxu0 0
    %2164 = vmatprep.subr.bf16.mxu0 0
    %2165 = vmatpush1.bf16.msra.mxu0 0
    %2166 = vmatprep.subr.bf16.mxu0 0
    %2167 = vmatpush1.bf16.msra.mxu0 0
    %2168 = vmatprep.subr.bf16.mxu0 0
    %2169 = vmatpush1.bf16.msra.mxu0 0
    %2170 = vmatprep.subr.bf16.mxu0 0
    %2171 = vmatpush1.bf16.msra.mxu0 0
    %2172 = vmatprep.subr.bf16.mxu0 0
    %2173 = vmatpush1.bf16.msra.mxu0 0
    %2174 = vmatprep.subr.bf16.mxu0 0
    %2175 = vmatpush1.bf16.msra.mxu0 0
    %2176 = vmatprep.subr.bf16.mxu0 0
    %2177 = vmatpush1.bf16.msra.mxu0 0
    %2178 = vmatprep.subr.bf16.mxu0 0
    %2179 = vmatpush1.bf16.msra.mxu0 0
    %2180 = vmatprep.subr.bf16.mxu0 0
    %2181 = vmatpush1.bf16.msra.mxu0 0
    %2182 = vmatprep.subr.bf16.mxu0 0
    %2183 = vmatpush1.bf16.msra.mxu0 0
    %2184 = vmatprep.subr.bf16.mxu0 0
    %2185 = vmatpush1.bf16.msra.mxu0 0
    %2186 = vmatprep.subr.bf16.mxu0 0
    %2187 = vmatpush1.bf16.msra.mxu0 0
    %2188 = vmatprep.subr.bf16.mxu0 0
    %2189 = vmatpush1.bf16.msra.mxu0 0
    %2190 = vmatprep.mubr.bf16.mxu0 0
    %2191 = vmatmul.mubr.bf16.gmra.mrb[0].mxu0 %v2156
    %v2192 = vpop.f32.mrb[0].mxu0
    %v2193 = vadd.f32 0.0, %v2192
    %v2194 = vpop.f32.mrb[0].mxu0
    %v2195 = vpop.f32.mrb[0].mxu0
    %v2196 = vpop.f32.mrb[0].mxu0
    %2197 = vdwg.mxu0
    %v2198 = vld [vmem:[%s8] sm:$0xf]
    %v2199 = vld [vmem:[%s8 + $0x4] sm:$0xf]
    %v2200 = vld [vmem:[%s8 + $0x8] sm:$0xf]
    %v2201 = vld [vmem:[%s8 + $0xc] sm:$0xf]
    %v2202 = vld [vmem:[%s8 + $0x10] sm:$0x3]
    %v2203 = vpack.c.bf16 %v2193, %v2193
    %v2204 = vld [vmem:[%s2] sm:$0x3]
    %v2205 = vpack.c.bf16 %v2204, %v2204
    %vm2206 = vcmask 31744
    %v2208 = vsel %vm2206, %v2205, 0
    %vm2210 = vcmask 1041408
    %v2212 = vsel %vm2210, %v2202, 0
    %2214 = vmatprep.subr.bf16.mxu0 0
    %2215 = vmatpush1.bf16.msra.mxu0 %v2212
    %2216 = vmatprep.subr.bf16.mxu0 0
    %2217 = vmatpush1.bf16.msra.mxu0 0
    %2218 = vmatprep.subr.bf16.mxu0 0
    %2219 = vmatpush1.bf16.msra.mxu0 0
    %2220 = vmatprep.subr.bf16.mxu0 0
    %2221 = vmatpush1.bf16.msra.mxu0 0
    %2222 = vmatprep.subr.bf16.mxu0 0
    %2223 = vmatpush1.bf16.msra.mxu0 0
    %2224 = vmatprep.subr.bf16.mxu0 0
    %2225 = vmatpush1.bf16.msra.mxu0 0
    %2226 = vmatprep.subr.bf16.mxu0 0
    %2227 = vmatpush1.bf16.msra.mxu0 0
    %2228 = vmatprep.subr.bf16.mxu0 0
    %2229 = vmatpush1.bf16.msra.mxu0 0
    %2230 = vmatprep.subr.bf16.mxu0 0
    %2231 = vmatpush1.bf16.msra.mxu0 0
    %2232 = vmatprep.subr.bf16.mxu0 0
    %2233 = vmatpush1.bf16.msra.mxu0 0
    %2234 = vmatprep.subr.bf16.mxu0 0
    %2235 = vmatpush1.bf16.msra.mxu0 0
    %2236 = vmatprep.subr.bf16.mxu0 0
    %2237 = vmatpush1.bf16.msra.mxu0 0
    %2238 = vmatprep.subr.bf16.mxu0 0
    %2239 = vmatpush1.bf16.msra.mxu0 0
    %2240 = vmatprep.subr.bf16.mxu0 0
    %2241 = vmatpush1.bf16.msra.mxu0 0
    %2242 = vmatprep.subr.bf16.mxu0 0
    %2243 = vmatpush1.bf16.msra.mxu0 0
    %2244 = vmatprep.subr.bf16.mxu0 0
    %2245 = vmatpush1.bf16.msra.mxu0 0
    %2246 = vmatprep.mubr.bf16.mxu0 0
    %2247 = vmatmul.mubr.bf16.gmra.mrb[0].mxu0 %v2208
    %v2248 = vpop.f32.mrb[0].mxu0
    %v2249 = vadd.f32 0.0, %v2248
    %v2250 = vpop.f32.mrb[0].mxu0
    %v2251 = vpop.f32.mrb[0].mxu0
    %v2252 = vpop.f32.mrb[0].mxu0
    %2253 = vdwg.mxu0
    %v2258 = vunpack.c.l.b16 %v2198
    %v2259 = vunpack.c.l.b16 %v2199
    %v2260 = vunpack.c.l.b16 %v2200
    %v2261 = vunpack.c.l.b16 %v2201
    %v2262 = vpack.c.b16 %v2259, %v2258
    %v2263 = vpack.c.b16 %v2261, %v2260
    %v2267 = vsel %vm135, %v2203, 0
    %2269 = vmatprep.subr.bf16.mxu0 0
    %2270 = vmatpush1.bf16.msra.mxu0 %v2262
    %2271 = vmatprep.subr.bf16.mxu0 0
    %2272 = vmatpush1.bf16.msra.mxu0 %v2263
    %2273 = vmatprep.subr.bf16.mxu0 0
    %2274 = vmatpush1.bf16.msra.mxu0 0
    %2275 = vmatprep.subr.bf16.mxu0 0
    %2276 = vmatpush1.bf16.msra.mxu0 0
    %2277 = vmatprep.subr.bf16.mxu0 0
    %2278 = vmatpush1.bf16.msra.mxu0 0
    %2279 = vmatprep.subr.bf16.mxu0 0
    %2280 = vmatpush1.bf16.msra.mxu0 0
    %2281 = vmatprep.subr.bf16.mxu0 0
    %2282 = vmatpush1.bf16.msra.mxu0 0
    %2283 = vmatprep.subr.bf16.mxu0 0
    %2284 = vmatpush1.bf16.msra.mxu0 0
    %2285 = vmatprep.subr.bf16.mxu0 0
    %2286 = vmatpush1.bf16.msra.mxu0 0
    %2287 = vmatprep.subr.bf16.mxu0 0
    %2288 = vmatpush1.bf16.msra.mxu0 0
    %2289 = vmatprep.subr.bf16.mxu0 0
    %2290 = vmatpush1.bf16.msra.mxu0 0
    %2291 = vmatprep.subr.bf16.mxu0 0
    %2292 = vmatpush1.bf16.msra.mxu0 0
    %2293 = vmatprep.subr.bf16.mxu0 0
    %2294 = vmatpush1.bf16.msra.mxu0 0
    %2295 = vmatprep.subr.bf16.mxu0 0
    %2296 = vmatpush1.bf16.msra.mxu0 0
    %2297 = vmatprep.subr.bf16.mxu0 0
    %2298 = vmatpush1.bf16.msra.mxu0 0
    %2299 = vmatprep.subr.bf16.mxu0 0
    %2300 = vmatpush1.bf16.msra.mxu0 0
    %2301 = vmatprep.mubr.bf16.mxu0 0
    %2302 = vmatmul.mubr.bf16.gmra.mrb[0].mxu0 %v2267
    %v2303 = vpop.f32.mrb[0].mxu0
    %v2304 = vadd.f32 %v2249, %v2303
    %v2305 = vpop.f32.mrb[0].mxu0
    %v2306 = vpop.f32.mrb[0].mxu0
    %v2307 = vpop.f32.mrb[0].mxu0
    %2308 = vdwg.mxu0
    %v2309 = vld [vmem:[%s3 + $0x2] sm:$0x1]
    %v2310 = vlaneseq
    %v2311 = vshrl.u32 %v2310, 7
    %v2312 = vsub.s32 0, %v2311
    %v2313 = vrot.slane %v2309, %v2312
    %v2314 = vadd.f32 %v2304, %v2313
    %vm2315 = vcmask 41984
    %2316 = vst.msk [vmem:[#allocation2] sm:$0x3] %vm2315, %v2314
    // Predicated region
    $region38: #{pragtag_forward.1} parent=1 // pred_check
      _
    $region39: #{pragtag_forward.1} parent=1 // pred_check_branch
      %2318 = sbr.rel (0) target = $region41
    $region40: #{pragtag_forward.1} parent=1 // pred_region
      %s2320 = ssub.s32 32, 32
      %2321 = vsyncadd [#allocation3], %s2320
      %s2323 = sshll.u32 [#allocation2], 4
      %s2324 = int_to_ptr.vmem [resolvable:$true] %s2323
      %2326 = dma.vmem_to_hbm [thread:$0]  %s2324, 32, %s9, [#allocation3]
    $region41: #{pragtag_forward.1} parent=1 // pred_fallthru
      _
    // Predicated region
    $region42: #{pragtag_forward.1} parent=1 // pred_check
      _
    $region43: #{pragtag_forward.1} parent=1 // pred_check_branch
      %2328 = sbr.rel (0) target = $region45
    $region44: #{pragtag_forward.1} parent=1 // pred_region
      %2329 = dma.done [#allocation3], 32
    $region45: #{pragtag_forward.1} parent=1 // pred_fallthru
      _
    %2330 = vsyncpa [#allocation3], 1

</llo_original>
